<compile_context>
chip_gen: v6e
topology: v6e:2x2x1
jax: 0.10.0
libtpu: 0.0.40
codegen_flags: <defaults>
</compile_context>

<pallas_src>
import math
import jax
import jax.numpy as jnp
from jax import lax
from jax.experimental import pallas as pl
from jax.experimental.pallas import tpu as pltpu


def _round_up(n, m):
    return ((n + m - 1) // m) * m


def _pad2(a, rows, cols):
    pr, pc = rows - a.shape[0], cols - a.shape[1]
    if pr or pc:
        a = jnp.pad(a, ((0, pr), (0, pc)))
    return a


def _gelu_exact(x):
    # PyTorch F.gelu default = exact erf-based GELU (computed in f32).
    return 0.5 * x * (1.0 + lax.erf(x * (1.0 / math.sqrt(2.0))))


def simple_mlp_kernel(
    x_ref, t_ref, emb_ref,
    wx_ref, bx_ref,
    w1_ref, b1_ref,
    w2_ref, b2_ref,
    w3_ref, b3_ref,
    o_ref,
):
    f32 = jnp.float32
    cdt = x_ref.dtype  # bf16 compute dtype for MXU operands

    tb = x_ref.shape[0]
    tp = emb_ref.shape[0]

    # Timestep embedding lookup fused as a one-hot matmul on the MXU:
    # onehot[b, T] @ emb[T, H] -> temb[b, H]  (f32 accumulation).
    iota = lax.broadcasted_iota(jnp.int32, (tb, tp), 1)
    onehot = jnp.where(t_ref[...] == iota, 1.0, 0.0).astype(cdt)
    temb = jnp.dot(onehot, emb_ref[...], preferred_element_type=f32)

    # x_proj: [tb, d] @ [d, H] + b   (f32 accumulate, f32 elementwise)
    h = jnp.dot(x_ref[...], wx_ref[...], preferred_element_type=f32) + bx_ref[...]
    h = _gelu_exact(h + temb).astype(cdt)
    # backbone layer 1: [tb, H] @ [H, 2H]
    h = _gelu_exact(
        jnp.dot(h, w1_ref[...], preferred_element_type=f32) + b1_ref[...]
    ).astype(cdt)
    # backbone layer 2: [tb, 2H] @ [2H, 2H]
    h = _gelu_exact(
        jnp.dot(h, w2_ref[...], preferred_element_type=f32) + b2_ref[...]
    ).astype(cdt)
    # backbone layer 3 (output, no GELU): [tb, 2H] @ [2H, d]
    o_ref[...] = (
        jnp.dot(h, w3_ref[...], preferred_element_type=f32) + b3_ref[...]
    ).astype(o_ref.dtype)


def simple_mlp_forward(x, t, params, *, tile_b=None):
    """x: [B, d_in] float32, t: [B] int (timesteps)."""
    B, d_in = x.shape
    H = params["wx"].shape[1]
    T = params["emb"].shape[0]

    # Lane-dense padded sizes (zeros in padded rows/cols keep the math exact:
    # GELU(0) = 0 and zero weight rows/cols contribute nothing).
    d_p = _round_up(d_in, 128)
    H_p = _round_up(H, 128)
    H2_p = 2 * H_p
    T_p = _round_up(T, 16)

    # MXU-aligned batch tile: >=256 rows when the batch allows it, always a
    # multiple of 8 (f32 sublane) / 16 (bf16 sublane via 256/8 choices).
    if tile_b is None:
        tile_b = 256 if B >= 256 else _round_up(B, 8)
    B_p = _round_up(B, tile_b)
    n_steps = B_p // tile_b

    bf16 = jnp.bfloat16
    # bf16 MXU operands at the pallas_call boundary; biases stay f32.
    x_p = _pad2(x, B_p, d_p).astype(bf16)
    t_p = jnp.pad(t.astype(jnp.int32), (0, B_p - B)).reshape(B_p, 1)
    emb = _pad2(params["emb"], T_p, H_p).astype(bf16)
    wx = _pad2(params["wx"], d_p, H_p).astype(bf16)
    bx = _pad2(params["bx"], 1, H_p)
    w1 = _pad2(params["w1"], H_p, H2_p).astype(bf16)
    b1 = _pad2(params["b1"], 1, H2_p)
    w2 = _pad2(params["w2"], H2_p, H2_p).astype(bf16)
    b2 = _pad2(params["b2"], 1, H2_p)
    w3 = _pad2(params["w3"], H2_p, d_p).astype(bf16)
    b3 = _pad2(params["b3"], 1, d_p)

    def resident(shape):
        # Grid-invariant operand: constant index map, single VMEM buffer
        # (double-buffering it would be pure VMEM waste).
        return pl.BlockSpec(shape, lambda i: (0,) * len(shape),
                            pipeline_mode=pl.Buffered(1))

    in_specs = [
        pl.BlockSpec((tile_b, d_p), lambda i: (i, 0)),   # x tile (pipelined)
        pl.BlockSpec((tile_b, 1), lambda i: (i, 0)),     # t tile (pipelined)
        resident((T_p, H_p)),                            # embedding table
        resident((d_p, H_p)), resident((1, H_p)),        # x_proj W, b
        resident((H_p, H2_p)), resident((1, H2_p)),      # backbone[0] W, b
        resident((H2_p, H2_p)), resident((1, H2_p)),     # backbone[2] W, b
        resident((H2_p, d_p)), resident((1, d_p)),       # backbone[4] W, b
    ]
    out_spec = pl.BlockSpec((tile_b, d_p), lambda i: (i, 0))

    # Advisory cost estimate for XLA's scheduler.
    flops = 2 * B_p * (T_p * H_p + d_p * H_p + H_p * H2_p + H2_p * H2_p + H2_p * d_p)
    transcendentals = B_p * (H_p + 2 * H2_p)  # three erf GELUs
    bytes_accessed = int(
        x_p.size * 2 + t_p.size * 4 + B_p * d_p * 4
        + (emb.size + wx.size + w1.size + w2.size + w3.size) * 2
        + (bx.size + b1.size + b2.size + b3.size) * 4
    )
    cost = pl.CostEstimate(flops=int(flops),
                           transcendentals=int(transcendentals),
                           bytes_accessed=bytes_accessed)

    # Explicit VMEM budget: resident weights (1x) + double-buffered streams +
    # f32 intermediates, with 2x headroom; clamped to be safe on v7x (64 MiB).
    weight_vmem = ((T_p * H_p + d_p * H_p + H_p * H2_p + H2_p * H2_p + H2_p * d_p) * 2
                   + (H_p + 2 * H2_p + d_p) * 4)
    stream_vmem = 2 * tile_b * (d_p * 2 + 4 + d_p * 4)
    act_vmem = 2 * tile_b * (T_p + H_p + 2 * H2_p + d_p) * 4
    vmem_limit = int(min(max(2 * (weight_vmem + stream_vmem + act_vmem),
                             32 * 1024 * 1024),
                         64 * 1024 * 1024))

    out = pl.pallas_call(
        simple_mlp_kernel,
        out_shape=jax.ShapeDtypeStruct((B_p, d_p), jnp.float32),
        grid_spec=pltpu.PrefetchScalarGridSpec(
            num_scalar_prefetch=0,
            grid=(n_steps,),
            in_specs=in_specs,
            out_specs=out_spec,
        ),
        compiler_params=pltpu.CompilerParams(
            dimension_semantics=("parallel",),   # batch tiles are independent
            vmem_limit_bytes=vmem_limit,
        ),
        cost_estimate=cost,
    )(x_p, t_p, emb, wx, bx, w1, b1, w2, b2, w3, b3)

    return out[:B, :d_in]


def init_params(key, d_in, T, hidden):
    """Deterministic synthetic parameters (same shapes/init style as the PyTorch module)."""
    ks = jax.random.split(key, 10)
    H, H2 = hidden, 2 * hidden

    def lin(kw, kb, fan_in, fan_out):
        bound = 1.0 / math.sqrt(fan_in)
        w = jax.random.uniform(kw, (fan_in, fan_out), jnp.float32, -bound, bound)
        b = jax.random.uniform(kb, (1, fan_out), jnp.float32, -bound, bound)
        return w, b

    wx, bx = lin(ks[0], ks[1], d_in, H)
    w1, b1 = lin(ks[2], ks[3], H, H2)
    w2, b2 = lin(ks[4], ks[5], H2, H2)
    w3, b3 = lin(ks[6], ks[7], H2, d_in)
    emb = jax.random.normal(ks[8], (T, H), jnp.float32)  # nn.Embedding ~ N(0,1)
    return dict(wx=wx, bx=bx, w1=w1, b1=b1, w2=w2, b2=b2, w3=w3, b3=b3, emb=emb)


def reference_forward(x, t, p):
    h = x @ p["wx"] + p["bx"]
    h = jax.nn.gelu(h + p["emb"][t], approximate=False)
    h = jax.nn.gelu(h @ p["w1"] + p["b1"], approximate=False)
    h = jax.nn.gelu(h @ p["w2"] + p["b2"], approximate=False)
    return h @ p["w3"] + p["b3"]


if __name__ == "__main__":
    # hidden = module default (128), d_in/T small; B=512 so the grid has >1 step
    # (exercises pipelining / parallel semantics) while staying tiny.
    d_in, T, hidden = 16, 10, 128
    B = 512

    key = jax.random.PRNGKey(0)
    kx, kt, kp = jax.random.split(key, 3)

    x = jax.random.normal(kx, (B, d_in), jnp.float32)
    t = jax.random.randint(kt, (B,), 0, T, jnp.int32)
    params = init_params(kp, d_in, T, hidden)

    out = simple_mlp_forward(x, t, params)
    out = jax.block_until_ready(out)

    ref = reference_forward(x, t, params)
    assert out.shape == (B, d_in)
    # bf16 matmul operands with f32 accumulation -> relaxed tolerance vs f32 ref.
    assert jnp.allclose(out, ref, atol=5e-2, rtol=5e-2)

    print("KERNEL_OK")
</pallas_src>

<mosaic_0001>
module attributes {stable_mosaic.version = 11 : i64} {
  func.func @simple_mlp_kernel(%arg0: i32, %arg1: memref<256x128xbf16, #tpu.memory_space<vmem>>, %arg2: memref<256x1xi32, #tpu.memory_space<vmem>>, %arg3: memref<16x128xbf16, #tpu.memory_space<vmem>>, %arg4: memref<128x128xbf16, #tpu.memory_space<vmem>>, %arg5: memref<1x128xf32, #tpu.memory_space<vmem>>, %arg6: memref<128x256xbf16, #tpu.memory_space<vmem>>, %arg7: memref<1x256xf32, #tpu.memory_space<vmem>>, %arg8: memref<256x256xbf16, #tpu.memory_space<vmem>>, %arg9: memref<1x256xf32, #tpu.memory_space<vmem>>, %arg10: memref<256x128xbf16, #tpu.memory_space<vmem>>, %arg11: memref<1x128xf32, #tpu.memory_space<vmem>>, %arg12: memref<256x128xf32, #tpu.memory_space<vmem>>) attributes {dimension_semantics = [#tpu.dimension_semantics<parallel>], iteration_bounds = array<i64: 2>, scalar_prefetch = 0 : i64, scratch_operands = 0 : i64, tpu.core_type = #tpu.core_type<tc>, window_params = [{transform_indices = @transform_0, window_bounds = array<i64: 256, 128>}, {transform_indices = @transform_1, window_bounds = array<i64: 256, 1>}, {pipeline_mode = #tpu.pipeline_mode<synchronous>, transform_indices = @transform_2, window_bounds = array<i64: 16, 128>}, {pipeline_mode = #tpu.pipeline_mode<synchronous>, transform_indices = @transform_3, window_bounds = array<i64: 128, 128>}, {pipeline_mode = #tpu.pipeline_mode<synchronous>, transform_indices = @transform_4, window_bounds = array<i64: 1, 128>}, {pipeline_mode = #tpu.pipeline_mode<synchronous>, transform_indices = @transform_5, window_bounds = array<i64: 128, 256>}, {pipeline_mode = #tpu.pipeline_mode<synchronous>, transform_indices = @transform_6, window_bounds = array<i64: 1, 256>}, {pipeline_mode = #tpu.pipeline_mode<synchronous>, transform_indices = @transform_7, window_bounds = array<i64: 256, 256>}, {pipeline_mode = #tpu.pipeline_mode<synchronous>, transform_indices = @transform_8, window_bounds = array<i64: 1, 256>}, {pipeline_mode = #tpu.pipeline_mode<synchronous>, transform_indices = @transform_9, window_bounds = array<i64: 256, 128>}, {pipeline_mode = #tpu.pipeline_mode<synchronous>, transform_indices = @transform_10, window_bounds = array<i64: 1, 128>}, {transform_indices = @transform_11, window_bounds = array<i64: 256, 128>}]} {
    %0 = tpu.iota {dimensions = array<i32: 1>} : vector<256x16xi32>
    %c0 = arith.constant 0 : index
    %c0_0 = arith.constant 0 : index
    %1 = vector.load %arg2[%c0, %c0_0] : memref<256x1xi32, #tpu.memory_space<vmem>>, vector<256x1xi32>
    %2 = vector.broadcast %1 : vector<256x1xi32> to vector<256x16xi32>
    %3 = arith.cmpi eq, %2, %0 : vector<256x16xi32>
    %cst = arith.constant 1.000000e+00 : f32
    %cst_1 = arith.constant 0.000000e+00 : f32
    %4 = vector.broadcast %cst : f32 to vector<256x16xf32>
    %5 = vector.broadcast %cst_1 : f32 to vector<256x16xf32>
    %6 = arith.select %3, %4, %5 : vector<256x16xi1>, vector<256x16xf32>
    %7 = arith.truncf %6 : vector<256x16xf32> to vector<256x16xbf16>
    %c0_2 = arith.constant 0 : index
    %c0_3 = arith.constant 0 : index
    %8 = vector.load %arg3[%c0_2, %c0_3] : memref<16x128xbf16, #tpu.memory_space<vmem>>, vector<16x128xbf16>
    %cst_4 = arith.constant dense<0.000000e+00> : vector<256x128xf32>
    %9 = tpu.matmul %7, %8, %cst_4 {dimension_numbers = #tpu.dot_dimension_numbers<[1], [0], [0], [1], [0, 0, 1, 1], [], []>} : vector<256x16xbf16>, vector<16x128xbf16>, vector<256x128xf32> -> vector<256x128xf32>
    %c0_5 = arith.constant 0 : index
    %c0_6 = arith.constant 0 : index
    %10 = vector.load %arg1[%c0_5, %c0_6] : memref<256x128xbf16, #tpu.memory_space<vmem>>, vector<256x128xbf16>
    %c0_7 = arith.constant 0 : index
    %c0_8 = arith.constant 0 : index
    %11 = vector.load %arg4[%c0_7, %c0_8] : memref<128x128xbf16, #tpu.memory_space<vmem>>, vector<128x128xbf16>
    %cst_9 = arith.constant dense<0.000000e+00> : vector<256x128xf32>
    %12 = tpu.matmul %10, %11, %cst_9 {dimension_numbers = #tpu.dot_dimension_numbers<[1], [0], [0], [1], [0, 0, 1, 1], [], []>} : vector<256x128xbf16>, vector<128x128xbf16>, vector<256x128xf32> -> vector<256x128xf32>
    %c0_10 = arith.constant 0 : index
    %c0_11 = arith.constant 0 : index
    %13 = vector.load %arg5[%c0_10, %c0_11] : memref<1x128xf32, #tpu.memory_space<vmem>>, vector<1x128xf32>
    %14 = vector.broadcast %13 : vector<1x128xf32> to vector<256x128xf32>
    %15 = arith.addf %12, %14 : vector<256x128xf32>
    %16 = arith.addf %15, %9 : vector<256x128xf32>
    %cst_12 = arith.constant 5.000000e-01 : f32
    %17 = vector.broadcast %cst_12 : f32 to vector<256x128xf32>
    %18 = arith.mulf %17, %16 : vector<256x128xf32>
    %cst_13 = arith.constant 0.707106769 : f32
    %19 = vector.broadcast %cst_13 : f32 to vector<256x128xf32>
    %20 = arith.mulf %16, %19 : vector<256x128xf32>
    %21 = math.erf %20 : vector<256x128xf32>
    %cst_14 = arith.constant 1.000000e+00 : f32
    %22 = vector.broadcast %cst_14 : f32 to vector<256x128xf32>
    %23 = arith.addf %22, %21 : vector<256x128xf32>
    %24 = arith.mulf %18, %23 : vector<256x128xf32>
    %25 = arith.truncf %24 : vector<256x128xf32> to vector<256x128xbf16>
    %c0_15 = arith.constant 0 : index
    %c0_16 = arith.constant 0 : index
    %26 = vector.load %arg6[%c0_15, %c0_16] : memref<128x256xbf16, #tpu.memory_space<vmem>>, vector<128x256xbf16>
    %cst_17 = arith.constant dense<0.000000e+00> : vector<256x256xf32>
    %27 = tpu.matmul %25, %26, %cst_17 {dimension_numbers = #tpu.dot_dimension_numbers<[1], [0], [0], [1], [0, 0, 1, 1], [], []>} : vector<256x128xbf16>, vector<128x256xbf16>, vector<256x256xf32> -> vector<256x256xf32>
    %c0_18 = arith.constant 0 : index
    %c0_19 = arith.constant 0 : index
    %28 = vector.load %arg7[%c0_18, %c0_19] : memref<1x256xf32, #tpu.memory_space<vmem>>, vector<1x256xf32>
    %29 = vector.broadcast %28 : vector<1x256xf32> to vector<256x256xf32>
    %30 = arith.addf %27, %29 : vector<256x256xf32>
    %cst_20 = arith.constant 5.000000e-01 : f32
    %31 = vector.broadcast %cst_20 : f32 to vector<256x256xf32>
    %32 = arith.mulf %31, %30 : vector<256x256xf32>
    %cst_21 = arith.constant 0.707106769 : f32
    %33 = vector.broadcast %cst_21 : f32 to vector<256x256xf32>
    %34 = arith.mulf %30, %33 : vector<256x256xf32>
    %35 = math.erf %34 : vector<256x256xf32>
    %cst_22 = arith.constant 1.000000e+00 : f32
    %36 = vector.broadcast %cst_22 : f32 to vector<256x256xf32>
    %37 = arith.addf %36, %35 : vector<256x256xf32>
    %38 = arith.mulf %32, %37 : vector<256x256xf32>
    %39 = arith.truncf %38 : vector<256x256xf32> to vector<256x256xbf16>
    %c0_23 = arith.constant 0 : index
    %c0_24 = arith.constant 0 : index
    %40 = vector.load %arg8[%c0_23, %c0_24] : memref<256x256xbf16, #tpu.memory_space<vmem>>, vector<256x256xbf16>
    %cst_25 = arith.constant dense<0.000000e+00> : vector<256x256xf32>
    %41 = tpu.matmul %39, %40, %cst_25 {dimension_numbers = #tpu.dot_dimension_numbers<[1], [0], [0], [1], [0, 0, 1, 1], [], []>} : vector<256x256xbf16>, vector<256x256xbf16>, vector<256x256xf32> -> vector<256x256xf32>
    %c0_26 = arith.constant 0 : index
    %c0_27 = arith.constant 0 : index
    %42 = vector.load %arg9[%c0_26, %c0_27] : memref<1x256xf32, #tpu.memory_space<vmem>>, vector<1x256xf32>
    %43 = vector.broadcast %42 : vector<1x256xf32> to vector<256x256xf32>
    %44 = arith.addf %41, %43 : vector<256x256xf32>
    %cst_28 = arith.constant 5.000000e-01 : f32
    %45 = vector.broadcast %cst_28 : f32 to vector<256x256xf32>
    %46 = arith.mulf %45, %44 : vector<256x256xf32>
    %cst_29 = arith.constant 0.707106769 : f32
    %47 = vector.broadcast %cst_29 : f32 to vector<256x256xf32>
    %48 = arith.mulf %44, %47 : vector<256x256xf32>
    %49 = math.erf %48 : vector<256x256xf32>
    %cst_30 = arith.constant 1.000000e+00 : f32
    %50 = vector.broadcast %cst_30 : f32 to vector<256x256xf32>
    %51 = arith.addf %50, %49 : vector<256x256xf32>
    %52 = arith.mulf %46, %51 : vector<256x256xf32>
    %53 = arith.truncf %52 : vector<256x256xf32> to vector<256x256xbf16>
    %c0_31 = arith.constant 0 : index
    %c0_32 = arith.constant 0 : index
    %54 = vector.load %arg10[%c0_31, %c0_32] : memref<256x128xbf16, #tpu.memory_space<vmem>>, vector<256x128xbf16>
    %cst_33 = arith.constant dense<0.000000e+00> : vector<256x128xf32>
    %55 = tpu.matmul %53, %54, %cst_33 {dimension_numbers = #tpu.dot_dimension_numbers<[1], [0], [0], [1], [0, 0, 1, 1], [], []>} : vector<256x256xbf16>, vector<256x128xbf16>, vector<256x128xf32> -> vector<256x128xf32>
    %c0_34 = arith.constant 0 : index
    %c0_35 = arith.constant 0 : index
    %56 = vector.load %arg11[%c0_34, %c0_35] : memref<1x128xf32, #tpu.memory_space<vmem>>, vector<1x128xf32>
    %57 = vector.broadcast %56 : vector<1x128xf32> to vector<256x128xf32>
    %58 = arith.addf %55, %57 : vector<256x128xf32>
    %c0_36 = arith.constant 0 : index
    %c0_37 = arith.constant 0 : index
    %59 = vector.load %arg12[%c0_36, %c0_37] : memref<256x128xf32, #tpu.memory_space<vmem>>, vector<256x128xf32>
    tpu.vector_store %arg12[%c0_36, %c0_37], %58 {strides = array<i32>} : memref<256x128xf32, #tpu.memory_space<vmem>>, vector<256x128xf32>,
    return
  }
  func.func @transform_0(%arg0: i32) -> (i32, i32) {
    %c0_i32 = arith.constant 0 : i32
    %c0_i32_0 = arith.constant 0 : i32
    return %arg0, %c0_i32 : i32, i32
  }
  func.func @transform_1(%arg0: i32) -> (i32, i32) {
    %c0_i32 = arith.constant 0 : i32
    %c0_i32_0 = arith.constant 0 : i32
    return %arg0, %c0_i32 : i32, i32
  }
  func.func @transform_2(%arg0: i32) -> (i32, i32) {
    %c0_i32 = arith.constant 0 : i32
    %c0_i32_0 = arith.constant 0 : i32
    %c0_i32_1 = arith.constant 0 : i32
    return %c0_i32, %c0_i32_0 : i32, i32
  }
  func.func @transform_3(%arg0: i32) -> (i32, i32) {
    %c0_i32 = arith.constant 0 : i32
    %c0_i32_0 = arith.constant 0 : i32
    %c0_i32_1 = arith.constant 0 : i32
    return %c0_i32, %c0_i32_0 : i32, i32
  }
  func.func @transform_4(%arg0: i32) -> (i32, i32) {
    %c0_i32 = arith.constant 0 : i32
    %c0_i32_0 = arith.constant 0 : i32
    %c0_i32_1 = arith.constant 0 : i32
    return %c0_i32, %c0_i32_0 : i32, i32
  }
  func.func @transform_5(%arg0: i32) -> (i32, i32) {
    %c0_i32 = arith.constant 0 : i32
    %c0_i32_0 = arith.constant 0 : i32
    %c0_i32_1 = arith.constant 0 : i32
    return %c0_i32, %c0_i32_0 : i32, i32
  }
  func.func @transform_6(%arg0: i32) -> (i32, i32) {
    %c0_i32 = arith.constant 0 : i32
    %c0_i32_0 = arith.constant 0 : i32
    %c0_i32_1 = arith.constant 0 : i32
    return %c0_i32, %c0_i32_0 : i32, i32
  }
  func.func @transform_7(%arg0: i32) -> (i32, i32) {
    %c0_i32 = arith.constant 0 : i32
    %c0_i32_0 = arith.constant 0 : i32
    %c0_i32_1 = arith.constant 0 : i32
    return %c0_i32, %c0_i32_0 : i32, i32
  }
  func.func @transform_8(%arg0: i32) -> (i32, i32) {
    %c0_i32 = arith.constant 0 : i32
    %c0_i32_0 = arith.constant 0 : i32
    %c0_i32_1 = arith.constant 0 : i32
    return %c0_i32, %c0_i32_0 : i32, i32
  }
  func.func @transform_9(%arg0: i32) -> (i32, i32) {
    %c0_i32 = arith.constant 0 : i32
    %c0_i32_0 = arith.constant 0 : i32
    %c0_i32_1 = arith.constant 0 : i32
    return %c0_i32, %c0_i32_0 : i32, i32
  }
  func.func @transform_10(%arg0: i32) -> (i32, i32) {
    %c0_i32 = arith.constant 0 : i32
    %c0_i32_0 = arith.constant 0 : i32
    %c0_i32_1 = arith.constant 0 : i32
    return %c0_i32, %c0_i32_0 : i32, i32
  }
  func.func @transform_11(%arg0: i32) -> (i32, i32) {
    %c0_i32 = arith.constant 0 : i32
    %c0_i32_0 = arith.constant 0 : i32
    return %arg0, %c0_i32 : i32, i32
  }
}

</mosaic_0001>

<llo_original>
// kernel: tpu_custom_call.1
$region0: #{tpu_custom_call.1}
  #allocation0 [shape = 'u32[]', space=smem, size = 0x4, offset = 0x4, fixed_abs, tag = 'smem constant byte address 0x4 - core index']
  #allocation1 [shape = 'u32[144,128]{1,0:T(1,128)}', space=vmem, size = 0x12000, scoped, tag = 'internal scratch']
  %s0 = inlined_call_operand.vmem [shape: bf16[512,128], index: 0, kind: input, shape index: {}]
  %s1 = inlined_call_operand.vmem [shape: s32[512,1], index: 1, kind: input, shape index: {}]
  %s2 = inlined_call_operand.hbm [shape: bf16[16,128], index: 2, kind: input, shape index: {}]
  %s3 = inlined_call_operand.hbm [shape: bf16[128,128], index: 3, kind: input, shape index: {}]
  %s4 = inlined_call_operand.vmem [shape: f32[1,128], index: 4, kind: input, shape index: {}]
  %s5 = inlined_call_operand.hbm [shape: bf16[128,256], index: 5, kind: input, shape index: {}]
  %s6 = inlined_call_operand.vmem [shape: f32[1,256], index: 6, kind: input, shape index: {}]
  %s7 = inlined_call_operand.vmem [shape: bf16[256,256], index: 7, kind: input, shape index: {}]
  %s8 = inlined_call_operand.vmem [shape: f32[1,256], index: 8, kind: input, shape index: {}]
  %s9 = inlined_call_operand.hbm [shape: bf16[256,128], index: 9, kind: input, shape index: {}]
  %s10 = inlined_call_operand.vmem [shape: f32[1,128], index: 10, kind: input, shape index: {}]
  %s11 = inlined_call_operand.hbm [shape: f32[512,128], index: 11, kind: output, shape index: {}]
  %s12 = sld [smem:[#allocation0]]
  $region93: #{tpu_custom_call.1} parent=0
    _
  %s14 = ssub.s32 1, %s12
  %s15 = scalar_select 0, %s14, %s12
  $region1: #{tpu_custom_call.1} parent=0
    #allocation2 [shape = 'u8[4096]{0}', space=vmem, size = 0x1000, scoped, tag = 'input window, operand 2, single buffered']
    #allocation3 [shape = 's32[2]{0}', space=sflag, size = 0x8, scoped, tag = 'scoped memory for tpu_custom_call.1']
    #allocation4 [shape = 's32[2]{0}', space=sflag, size = 0x8, scoped, tag = 'scoped memory for tpu_custom_call.1']
    #allocation5 [shape = 'u8[32768]{0}', space=vmem, size = 0x8000, scoped, tag = 'input window, operand 3, single buffered']
    #allocation6 [shape = 's32[1]{0}', space=sflag, size = 0x4, scoped, tag = 'scoped memory for tpu_custom_call.1']
    #allocation7 [shape = 'u8[65536]{0}', space=vmem, size = 0x10000, scoped, tag = 'input window, operand 5, single buffered']
    #allocation8 [shape = 'u8[65536]{0}', space=vmem, size = 0x10000, scoped, tag = 'input window, operand 9, single buffered']
    #allocation9 [shape = 's32[1]{0}', space=sflag, size = 0x4, scoped, tag = 'scoped memory for tpu_custom_call.1']
    #allocation10 [shape = 'u8[262144]{0}', space=vmem, size = 0x40000, scoped, tag = 'output window, operand 0']
    %16 = vsyncpa [#allocation3], 0
    %17 = vsyncpa [#allocation6], 0
    %18 = vsyncpa [#allocation9], 0
    %19 = vsyncpa [#allocation4], 0
    %s20 = scalar_lea.sflag [#allocation4], 1
    %21 = vsyncpa %s20, 0
    loop: start=0, step=1, limit=4
    $region2: #{tpu_custom_call.1} parent=1 // loop_pre_header
      _
    $region3: #{tpu_custom_call.1} parent=1 // loop_header
      %s23 = sphi 0, %s27
      %p24 = scmp.ge.s32.totalorder %s23, 4
      %s33 = sphi 0, %s35
      %s36 = sphi 0, %s33
      %s37 = sphi 0, %s36
      %s53 = sphi 0, %s37
      %s59 = sphi 0, %s61
      %s62 = sphi 0, %s59
      %s63 = sphi 0, %s62
      %s79 = sphi 0, %s63
      %s83 = sphi 0, %s83
      %s85 = sphi 0, %s83
      %s86 = sphi 0, %s85
      %s100 = sphi 0, %s86
      %s104 = sphi 0, %s104
      %s106 = sphi 0, %s104
      %s107 = sphi 0, %s106
      %s121 = sphi 0, %s107
      %s125 = sphi 0, %s125
      %s127 = sphi 0, %s125
      %s128 = sphi 0, %s127
      %s142 = sphi 0, %s128
      %s146 = sphi 0, %s146
      %s148 = sphi 0, %s146
      %s149 = sphi 0, %s148
      %s163 = sphi 0, %s149
      %s167 = sphi 0, %s167
      %s169 = sphi 0, %s167
      %s170 = sphi 0, %s169
      %s184 = sphi 0, %s170
      %s188 = sphi 0, %s188
      %s190 = sphi 0, %s188
      %s191 = sphi 0, %s190
      %s205 = sphi 0, %s191
      %s209 = sphi 0, %s209
      %s211 = sphi 0, %s209
      %s212 = sphi 0, %s211
      %s226 = sphi 0, %s212
      %s230 = sphi 0, %s230
      %s232 = sphi 0, %s230
      %s233 = sphi 0, %s232
      %s247 = sphi 0, %s233
      %s251 = sphi 0, %s251
      %s253 = sphi 0, %s251
      %s254 = sphi 0, %s253
      %s268 = sphi 0, %s254
      %s274 = sphi 0, %s276
      %s277 = sphi 0, %s274
      %s278 = sphi 0, %s277
      %s294 = sphi 0, %s278
    $region4: #{tpu_custom_call.1} parent=1 // loop_header_branch
      %26 = sbr.rel (%p24) target = $region8
    $region5: #{tpu_custom_call.1} parent=1 // loop_body
      %s28 = ssub.s32 %s23, 1
      %s29 = ssub.s32 %s23, 2
      %s30 = sadd.s32 %s23, 1
      %s31 = ssub.s32 %s23, %s30
      %p32 = scmp.eq.s32.totalorder %s31, 0
      %s34 = sadd.s32 %s33, 1
      %s35 = scalar_select %p32, %s33, %s34
      %p38 = pneg %p32
      %p39 = scmp.eq.s32.totalorder %s23, 1
      %p40 = por %p38, %p39
      %p41 = scmp.ne.s32.totalorder %s33, %s36
      %p42 = scmp.eq.s32.totalorder %s23, 0
      %p43 = por %p41, %p42
      %p44 = scmp.ne.s32.totalorder %s33, %s36
      %p45 = scmp.eq.s32.totalorder %s28, 1
      %p46 = por %p44, %p45
      %p47 = scmp.ne.s32.totalorder %s36, %s37
      %p48 = scmp.eq.s32.totalorder %s28, 0
      %p49 = por %p47, %p48
      %p50 = scmp.ne.s32.totalorder %s36, %s37
      %p51 = scmp.eq.s32.totalorder %s29, 1
      %p52 = por %p50, %p51
      %p54 = scmp.ne.s32.totalorder %s37, %s53
      %p55 = scmp.eq.s32.totalorder %s29, 0
      %p56 = por %p54, %p55
      %s57 = ssub.s32 %s23, %s30
      %p58 = scmp.eq.s32.totalorder %s57, 0
      %s60 = sadd.s32 %s59, 1
      %s61 = scalar_select %p58, %s59, %s60
      %p64 = pneg %p58
      %p65 = scmp.eq.s32.totalorder %s23, 1
      %p66 = por %p64, %p65
      %p67 = scmp.ne.s32.totalorder %s59, %s62
      %p68 = scmp.eq.s32.totalorder %s23, 0
      %p69 = por %p67, %p68
      %p70 = scmp.ne.s32.totalorder %s59, %s62
      %p71 = scmp.eq.s32.totalorder %s28, 1
      %p72 = por %p70, %p71
      %p73 = scmp.ne.s32.totalorder %s62, %s63
      %p74 = scmp.eq.s32.totalorder %s28, 0
      %p75 = por %p73, %p74
      %p76 = scmp.ne.s32.totalorder %s62, %s63
      %p77 = scmp.eq.s32.totalorder %s29, 1
      %p78 = por %p76, %p77
      %p80 = scmp.ne.s32.totalorder %s63, %s79
      %p81 = scmp.eq.s32.totalorder %s29, 0
      %p82 = por %p80, %p81
      %s84 = sadd.s32 %s83, 1
      %p87 = scmp.eq.s32.totalorder %s23, 1
      %p88 = scmp.ne.s32.totalorder %s83, %s85
      %p89 = scmp.eq.s32.totalorder %s23, 0
      %p90 = por %p88, %p89
      %p91 = scmp.ne.s32.totalorder %s83, %s85
      %p92 = scmp.eq.s32.totalorder %s28, 1
      %p93 = por %p91, %p92
      %p94 = scmp.ne.s32.totalorder %s85, %s86
      %p95 = scmp.eq.s32.totalorder %s28, 0
      %p96 = por %p94, %p95
      %p97 = scmp.ne.s32.totalorder %s85, %s86
      %p98 = scmp.eq.s32.totalorder %s29, 1
      %p99 = por %p97, %p98
      %p101 = scmp.ne.s32.totalorder %s86, %s100
      %p102 = scmp.eq.s32.totalorder %s29, 0
      %p103 = por %p101, %p102
      %s105 = sadd.s32 %s104, 1
      %p108 = scmp.eq.s32.totalorder %s23, 1
      %p109 = scmp.ne.s32.totalorder %s104, %s106
      %p110 = scmp.eq.s32.totalorder %s23, 0
      %p111 = por %p109, %p110
      %p112 = scmp.ne.s32.totalorder %s104, %s106
      %p113 = scmp.eq.s32.totalorder %s28, 1
      %p114 = por %p112, %p113
      %p115 = scmp.ne.s32.totalorder %s106, %s107
      %p116 = scmp.eq.s32.totalorder %s28, 0
      %p117 = por %p115, %p116
      %p118 = scmp.ne.s32.totalorder %s106, %s107
      %p119 = scmp.eq.s32.totalorder %s29, 1
      %p120 = por %p118, %p119
      %p122 = scmp.ne.s32.totalorder %s107, %s121
      %p123 = scmp.eq.s32.totalorder %s29, 0
      %p124 = por %p122, %p123
      %s126 = sadd.s32 %s125, 1
      %p129 = scmp.eq.s32.totalorder %s23, 1
      %p130 = scmp.ne.s32.totalorder %s125, %s127
      %p131 = scmp.eq.s32.totalorder %s23, 0
      %p132 = por %p130, %p131
      %p133 = scmp.ne.s32.totalorder %s125, %s127
      %p134 = scmp.eq.s32.totalorder %s28, 1
      %p135 = por %p133, %p134
      %p136 = scmp.ne.s32.totalorder %s127, %s128
      %p137 = scmp.eq.s32.totalorder %s28, 0
      %p138 = por %p136, %p137
      %p139 = scmp.ne.s32.totalorder %s127, %s128
      %p140 = scmp.eq.s32.totalorder %s29, 1
      %p141 = por %p139, %p140
      %p143 = scmp.ne.s32.totalorder %s128, %s142
      %p144 = scmp.eq.s32.totalorder %s29, 0
      %p145 = por %p143, %p144
      %s147 = sadd.s32 %s146, 1
      %p150 = scmp.eq.s32.totalorder %s23, 1
      %p151 = scmp.ne.s32.totalorder %s146, %s148
      %p152 = scmp.eq.s32.totalorder %s23, 0
      %p153 = por %p151, %p152
      %p154 = scmp.ne.s32.totalorder %s146, %s148
      %p155 = scmp.eq.s32.totalorder %s28, 1
      %p156 = por %p154, %p155
      %p157 = scmp.ne.s32.totalorder %s148, %s149
      %p158 = scmp.eq.s32.totalorder %s28, 0
      %p159 = por %p157, %p158
      %p160 = scmp.ne.s32.totalorder %s148, %s149
      %p161 = scmp.eq.s32.totalorder %s29, 1
      %p162 = por %p160, %p161
      %p164 = scmp.ne.s32.totalorder %s149, %s163
      %p165 = scmp.eq.s32.totalorder %s29, 0
      %p166 = por %p164, %p165
      %s168 = sadd.s32 %s167, 1
      %p171 = scmp.eq.s32.totalorder %s23, 1
      %p172 = scmp.ne.s32.totalorder %s167, %s169
      %p173 = scmp.eq.s32.totalorder %s23, 0
      %p174 = por %p172, %p173
      %p175 = scmp.ne.s32.totalorder %s167, %s169
      %p176 = scmp.eq.s32.totalorder %s28, 1
      %p177 = por %p175, %p176
      %p178 = scmp.ne.s32.totalorder %s169, %s170
      %p179 = scmp.eq.s32.totalorder %s28, 0
      %p180 = por %p178, %p179
      %p181 = scmp.ne.s32.totalorder %s169, %s170
      %p182 = scmp.eq.s32.totalorder %s29, 1
      %p183 = por %p181, %p182
      %p185 = scmp.ne.s32.totalorder %s170, %s184
      %p186 = scmp.eq.s32.totalorder %s29, 0
      %p187 = por %p185, %p186
      %s189 = sadd.s32 %s188, 1
      %p192 = scmp.eq.s32.totalorder %s23, 1
      %p193 = scmp.ne.s32.totalorder %s188, %s190
      %p194 = scmp.eq.s32.totalorder %s23, 0
      %p195 = por %p193, %p194
      %p196 = scmp.ne.s32.totalorder %s188, %s190
      %p197 = scmp.eq.s32.totalorder %s28, 1
      %p198 = por %p196, %p197
      %p199 = scmp.ne.s32.totalorder %s190, %s191
      %p200 = scmp.eq.s32.totalorder %s28, 0
      %p201 = por %p199, %p200
      %p202 = scmp.ne.s32.totalorder %s190, %s191
      %p203 = scmp.eq.s32.totalorder %s29, 1
      %p204 = por %p202, %p203
      %p206 = scmp.ne.s32.totalorder %s191, %s205
      %p207 = scmp.eq.s32.totalorder %s29, 0
      %p208 = por %p206, %p207
      %s210 = sadd.s32 %s209, 1
      %p213 = scmp.eq.s32.totalorder %s23, 1
      %p214 = scmp.ne.s32.totalorder %s209, %s211
      %p215 = scmp.eq.s32.totalorder %s23, 0
      %p216 = por %p214, %p215
      %p217 = scmp.ne.s32.totalorder %s209, %s211
      %p218 = scmp.eq.s32.totalorder %s28, 1
      %p219 = por %p217, %p218
      %p220 = scmp.ne.s32.totalorder %s211, %s212
      %p221 = scmp.eq.s32.totalorder %s28, 0
      %p222 = por %p220, %p221
      %p223 = scmp.ne.s32.totalorder %s211, %s212
      %p224 = scmp.eq.s32.totalorder %s29, 1
      %p225 = por %p223, %p224
      %p227 = scmp.ne.s32.totalorder %s212, %s226
      %p228 = scmp.eq.s32.totalorder %s29, 0
      %p229 = por %p227, %p228
      %s231 = sadd.s32 %s230, 1
      %p234 = scmp.eq.s32.totalorder %s23, 1
      %p235 = scmp.ne.s32.totalorder %s230, %s232
      %p236 = scmp.eq.s32.totalorder %s23, 0
      %p237 = por %p235, %p236
      %p238 = scmp.ne.s32.totalorder %s230, %s232
      %p239 = scmp.eq.s32.totalorder %s28, 1
      %p240 = por %p238, %p239
      %p241 = scmp.ne.s32.totalorder %s232, %s233
      %p242 = scmp.eq.s32.totalorder %s28, 0
      %p243 = por %p241, %p242
      %p244 = scmp.ne.s32.totalorder %s232, %s233
      %p245 = scmp.eq.s32.totalorder %s29, 1
      %p246 = por %p244, %p245
      %p248 = scmp.ne.s32.totalorder %s233, %s247
      %p249 = scmp.eq.s32.totalorder %s29, 0
      %p250 = por %p248, %p249
      %s252 = sadd.s32 %s251, 1
      %p255 = scmp.eq.s32.totalorder %s23, 1
      %p256 = scmp.ne.s32.totalorder %s251, %s253
      %p257 = scmp.eq.s32.totalorder %s23, 0
      %p258 = por %p256, %p257
      %p259 = scmp.ne.s32.totalorder %s251, %s253
      %p260 = scmp.eq.s32.totalorder %s28, 1
      %p261 = por %p259, %p260
      %p262 = scmp.ne.s32.totalorder %s253, %s254
      %p263 = scmp.eq.s32.totalorder %s28, 0
      %p264 = por %p262, %p263
      %p265 = scmp.ne.s32.totalorder %s253, %s254
      %p266 = scmp.eq.s32.totalorder %s29, 1
      %p267 = por %p265, %p266
      %p269 = scmp.ne.s32.totalorder %s254, %s268
      %p270 = scmp.eq.s32.totalorder %s29, 0
      %p271 = por %p269, %p270
      %s272 = ssub.s32 %s23, %s30
      %p273 = scmp.eq.s32.totalorder %s272, 0
      %s275 = sadd.s32 %s274, 1
      %s276 = scalar_select %p273, %s274, %s275
      %p279 = pneg %p273
      %p280 = scmp.eq.s32.totalorder %s23, 1
      %p281 = por %p279, %p280
      %p282 = scmp.ne.s32.totalorder %s274, %s277
      %p283 = scmp.eq.s32.totalorder %s23, 0
      %p284 = por %p282, %p283
      %p285 = scmp.ne.s32.totalorder %s274, %s277
      %p286 = scmp.eq.s32.totalorder %s28, 1
      %p287 = por %p285, %p286
      %p288 = scmp.ne.s32.totalorder %s277, %s278
      %p289 = scmp.eq.s32.totalorder %s28, 0
      %p290 = por %p288, %p289
      %p291 = scmp.ne.s32.totalorder %s277, %s278
      %p292 = scmp.eq.s32.totalorder %s29, 1
      %p293 = por %p291, %p292
      %p295 = scmp.ne.s32.totalorder %s278, %s294
      %p296 = scmp.eq.s32.totalorder %s29, 0
      %p297 = por %p295, %p296
      %p298 = scmp.le.s32.totalorder 1, %s23
      %p299 = scmp.lt.s32.totalorder %s23, 3
      %p300 = pnand %p298, %p299
      %p301 = pneg %p300
      // Predicated region
      $region9: #{tpu_custom_call.1} parent=5 // pred_check
        _
      $region10: #{tpu_custom_call.1} parent=5 // pred_check_branch
        %303 = sbr.rel (%p300) target = $region12
      $region11: #{tpu_custom_call.1} parent=5 // pred_region
        %s304 = ssub.s32 %s23, 1
        // Predicated region
        $region13: #{tpu_custom_call.1} parent=11 // pred_check
          %p305 = pneg %p96
        $region14: #{tpu_custom_call.1} parent=11 // pred_check_branch
          %307 = sbr.rel (%p305) target = $region16
        $region15: #{tpu_custom_call.1} parent=11 // pred_region
          %s309 = ssub.s32 128, 128
          %310 = vsyncadd [#allocation3], %s309
          %s311 = sshll.u32 [#allocation2], 4
          %s312 = int_to_ptr.vmem [resolvable:$true] %s311
          %317 = dma.hbm_to_vmem [thread:$0]  %s2, 128, %s312, [#allocation3], 64, 64, 4
        $region16: #{tpu_custom_call.1} parent=11 // pred_fallthru
          _
        // Predicated region
        $region17: #{tpu_custom_call.1} parent=11 // pred_check
          %p318 = pneg %p117
        $region18: #{tpu_custom_call.1} parent=11 // pred_check_branch
          %320 = sbr.rel (%p318) target = $region20
        $region19: #{tpu_custom_call.1} parent=11 // pred_region
          %s322 = ssub.s32 1024, 1024
          %323 = vsyncadd [#allocation6], %s322
          %s324 = sshll.u32 [#allocation5], 4
          %s325 = int_to_ptr.vmem [resolvable:$true] %s324
          %330 = dma.hbm_to_vmem [thread:$0]  %s3, 1024, %s325, [#allocation6], 64, 64, 4
        $region20: #{tpu_custom_call.1} parent=11 // pred_fallthru
          _
        // Predicated region
        $region21: #{tpu_custom_call.1} parent=11 // pred_check
          %p331 = pneg %p138
        $region22: #{tpu_custom_call.1} parent=11 // pred_check_branch
          %333 = sbr.rel (%p331) target = $region24
        $region23: #{tpu_custom_call.1} parent=11 // pred_region
          _
        $region24: #{tpu_custom_call.1} parent=11 // pred_fallthru
          _
        // Predicated region
        $region25: #{tpu_custom_call.1} parent=11 // pred_check
          %p334 = pneg %p159
        $region26: #{tpu_custom_call.1} parent=11 // pred_check_branch
          %336 = sbr.rel (%p334) target = $region28
        $region27: #{tpu_custom_call.1} parent=11 // pred_region
          %s338 = ssub.s32 2048, 2048
          %339 = vsyncadd [#allocation6], %s338
          %s340 = sshll.u32 [#allocation7], 4
          %s341 = int_to_ptr.vmem [resolvable:$true] %s340
          %346 = dma.hbm_to_vmem [thread:$0]  %s5, 2048, %s341, [#allocation6], 128, 128, 8
        $region28: #{tpu_custom_call.1} parent=11 // pred_fallthru
          _
        // Predicated region
        $region29: #{tpu_custom_call.1} parent=11 // pred_check
          %p347 = pneg %p180
        $region30: #{tpu_custom_call.1} parent=11 // pred_check_branch
          %349 = sbr.rel (%p347) target = $region32
        $region31: #{tpu_custom_call.1} parent=11 // pred_region
          _
        $region32: #{tpu_custom_call.1} parent=11 // pred_fallthru
          _
        // Predicated region
        $region33: #{tpu_custom_call.1} parent=11 // pred_check
          %p350 = pneg %p201
        $region34: #{tpu_custom_call.1} parent=11 // pred_check_branch
          %352 = sbr.rel (%p350) target = $region36
        $region35: #{tpu_custom_call.1} parent=11 // pred_region
          _
        $region36: #{tpu_custom_call.1} parent=11 // pred_fallthru
          _
        // Predicated region
        $region37: #{tpu_custom_call.1} parent=11 // pred_check
          %p353 = pneg %p222
        $region38: #{tpu_custom_call.1} parent=11 // pred_check_branch
          %355 = sbr.rel (%p353) target = $region40
        $region39: #{tpu_custom_call.1} parent=11 // pred_region
          _
        $region40: #{tpu_custom_call.1} parent=11 // pred_fallthru
          _
        // Predicated region
        $region41: #{tpu_custom_call.1} parent=11 // pred_check
          %p356 = pneg %p243
        $region42: #{tpu_custom_call.1} parent=11 // pred_check_branch
          %358 = sbr.rel (%p356) target = $region44
        $region43: #{tpu_custom_call.1} parent=11 // pred_region
          %s360 = ssub.s32 2048, 2048
          %361 = vsyncadd [#allocation9], %s360
          %s362 = sshll.u32 [#allocation8], 4
          %s363 = int_to_ptr.vmem [resolvable:$true] %s362
          %368 = dma.hbm_to_vmem [thread:$0]  %s9, 2048, %s363, [#allocation9], 64, 64, 4
        $region44: #{tpu_custom_call.1} parent=11 // pred_fallthru
          _
        // Predicated region
        $region45: #{tpu_custom_call.1} parent=11 // pred_check
          %p369 = pneg %p264
        $region46: #{tpu_custom_call.1} parent=11 // pred_check_branch
          %371 = sbr.rel (%p369) target = $region48
        $region47: #{tpu_custom_call.1} parent=11 // pred_region
          _
        $region48: #{tpu_custom_call.1} parent=11 // pred_fallthru
          _
      $region12: #{tpu_custom_call.1} parent=5 // pred_fallthru
        _
      %p372 = scmp.lt.s32.totalorder %s23, 2
      // Predicated region
      $region49: #{tpu_custom_call.1} parent=5 // pred_check
        %p373 = pneg %p372
      $region50: #{tpu_custom_call.1} parent=5 // pred_check_branch
        %375 = sbr.rel (%p373) target = $region52
      $region51: #{tpu_custom_call.1} parent=5 // pred_region
        // Predicated region
        $region53: #{tpu_custom_call.1} parent=51 // pred_check
          %p376 = pneg %p43
        $region54: #{tpu_custom_call.1} parent=51 // pred_check_branch
          %378 = sbr.rel (%p376) target = $region56
        $region55: #{tpu_custom_call.1} parent=51 // pred_region
          %s379 = smul.u32 32, %s23
          %p380 = scmp.lt.s32.totalorder %s379, 63
          %s381 = scalar_select %p380, %s379, 63
          %s382 = smul.addr %s381, 4
          %s383 = scalar_lea.vmem %s0, %s382
          %s384 = smul.u32 32, %s23
        $region56: #{tpu_custom_call.1} parent=51 // pred_fallthru
          _
        // Predicated region
        $region57: #{tpu_custom_call.1} parent=51 // pred_check
          %p385 = pneg %p69
        $region58: #{tpu_custom_call.1} parent=51 // pred_check_branch
          %387 = sbr.rel (%p385) target = $region60
        $region59: #{tpu_custom_call.1} parent=51 // pred_region
          %s388 = smul.u32 32, %s23
          %p389 = scmp.lt.s32.totalorder %s388, 63
          %s390 = scalar_select %p389, %s388, 63
          %s391 = smul.addr %s390, 8
          %s392 = scalar_lea.vmem %s1, %s391
          %s393 = smul.u32 32, %s23
        $region60: #{tpu_custom_call.1} parent=51 // pred_fallthru
          _
      $region52: #{tpu_custom_call.1} parent=5 // pred_fallthru
        _
      %p394 = scmp.le.s32.totalorder 1, %s23
      %p395 = scmp.lt.s32.totalorder %s23, 3
      %p396 = pnand %p394, %p395
      %p397 = pneg %p396
      // Predicated region
      $region61: #{tpu_custom_call.1} parent=5 // pred_check
        _
      $region62: #{tpu_custom_call.1} parent=5 // pred_check_branch
        %399 = sbr.rel (%p396) target = $region64
      $region63: #{tpu_custom_call.1} parent=5 // pred_region
        %s400 = ssub.s32 %s23, 1
        // Predicated region
        $region65: #{tpu_custom_call.1} parent=63 // pred_check
          %p401 = pneg %p96
        $region66: #{tpu_custom_call.1} parent=63 // pred_check_branch
          %403 = sbr.rel (%p401) target = $region68
        $region67: #{tpu_custom_call.1} parent=63 // pred_region
          %404 = dma.done [#allocation3], 128
        $region68: #{tpu_custom_call.1} parent=63 // pred_fallthru
          _
        // Predicated region
        $region69: #{tpu_custom_call.1} parent=63 // pred_check
          %p405 = pneg %p117
        $region70: #{tpu_custom_call.1} parent=63 // pred_check_branch
          %407 = sbr.rel (%p405) target = $region72
        $region71: #{tpu_custom_call.1} parent=63 // pred_region
          %408 = dma.done [#allocation6], 1024
        $region72: #{tpu_custom_call.1} parent=63 // pred_fallthru
          _
        // Predicated region
        $region73: #{tpu_custom_call.1} parent=63 // pred_check
          %p409 = pneg %p159
        $region74: #{tpu_custom_call.1} parent=63 // pred_check_branch
          %411 = sbr.rel (%p409) target = $region76
        $region75: #{tpu_custom_call.1} parent=63 // pred_region
          %412 = dma.done [#allocation6], 2048
        $region76: #{tpu_custom_call.1} parent=63 // pred_fallthru
          _
        // Predicated region
        $region77: #{tpu_custom_call.1} parent=63 // pred_check
          %p413 = pneg %p243
        $region78: #{tpu_custom_call.1} parent=63 // pred_check_branch
          %415 = sbr.rel (%p413) target = $region80
        $region79: #{tpu_custom_call.1} parent=63 // pred_region
          %416 = dma.done [#allocation9], 2048
        $region80: #{tpu_custom_call.1} parent=63 // pred_fallthru
          _
        %s417 = smul.u32 32, %s28
        %p418 = scmp.lt.s32.totalorder %s417, 63
        %s419 = scalar_select %p418, %s417, 63
        %s420 = smul.addr %s419, 4
        %s421 = scalar_lea.vmem %s0, %s420
        %p422 = pneg %p49
        %p423 = pneg %p46
        %s424 = smul.u32 32, %s28
        %p425 = scmp.lt.s32.totalorder %s424, 63
        %s426 = scalar_select %p425, %s424, 63
        %s427 = smul.addr %s426, 8
        %s428 = scalar_lea.vmem %s1, %s427
        %p429 = pneg %p75
        %p430 = pneg %p72
        %p431 = pneg %p96
        %p432 = pneg %p93
        %p433 = pneg %p117
        %p434 = pneg %p114
        %p435 = pneg %p138
        %p436 = pneg %p135
        %p437 = pneg %p159
        %p438 = pneg %p156
        %p439 = pneg %p180
        %p440 = pneg %p177
        %p441 = pneg %p201
        %p442 = pneg %p198
        %p443 = pneg %p222
        %p444 = pneg %p219
        %p445 = pneg %p243
        %p446 = pneg %p240
        %p447 = pneg %p264
        %p448 = pneg %p261
        %p449 = pneg %p290
        %p450 = pneg %p287
        %s451 = sand.u32 %s277, 1
        %s452 = scalar_lea.sflag [#allocation4], %s451
        %s453 = sand.u32 %s277, 1
        %s454 = smul.addr %s453, 256
        %s455 = scalar_lea.vmem [#allocation10], %s454
        %s456 = smul.u32 32, %s28
        %p457 = scmp.lt.s32.totalorder %s456, 63
        %s458 = scalar_select %p457, %s456, 63
        %s459 = smul.addr %s458, 4
        %s460 = scalar_lea.vmem %s0, %s459
        %s461 = smul.u32 32, %s28
        %s462 = smul.u32 32, %s28
        %p463 = scmp.lt.s32.totalorder %s462, 63
        %s464 = scalar_select %p463, %s462, 63
        %s465 = smul.addr %s464, 8
        %s466 = scalar_lea.vmem %s1, %s465
        %s467 = smul.u32 32, %s28
        %s468 = smul.u32 32, %s28
        %v470 = vlaneseq
        %v471 = vand.u32 %v470, 127
        %v472 = vld [vmem:[%s466] sm:$0xff]
        %v473 = vld [vmem:[%s466 + $0x8] sm:$0xff]
        %v474 = vld [vmem:[%s466 + $0x10] sm:$0xff]
        %v475 = vld [vmem:[%s466 + $0x18] sm:$0xff]
        %v476 = vld [vmem:[%s466 + $0x20] sm:$0xff]
        %v477 = vld [vmem:[%s466 + $0x28] sm:$0xff]
        %v478 = vld [vmem:[%s466 + $0x30] sm:$0xff]
        %v479 = vld [vmem:[%s466 + $0x38] sm:$0xff]
        %v480 = vld [vmem:[%s466 + $0x40] sm:$0xff]
        %v481 = vld [vmem:[%s466 + $0x48] sm:$0xff]
        %v482 = vld [vmem:[%s466 + $0x50] sm:$0xff]
        %v483 = vld [vmem:[%s466 + $0x58] sm:$0xff]
        %v484 = vld [vmem:[%s466 + $0x60] sm:$0xff]
        %v485 = vld [vmem:[%s466 + $0x68] sm:$0xff]
        %v486 = vld [vmem:[%s466 + $0x70] sm:$0xff]
        %v487 = vld [vmem:[%s466 + $0x78] sm:$0xff]
        %v488 = vld [vmem:[%s466 + $0x80] sm:$0xff]
        %v489 = vld [vmem:[%s466 + $0x88] sm:$0xff]
        %v490 = vld [vmem:[%s466 + $0x90] sm:$0xff]
        %v491 = vld [vmem:[%s466 + $0x98] sm:$0xff]
        %v492 = vld [vmem:[%s466 + $0xa0] sm:$0xff]
        %v493 = vld [vmem:[%s466 + $0xa8] sm:$0xff]
        %v494 = vld [vmem:[%s466 + $0xb0] sm:$0xff]
        %v495 = vld [vmem:[%s466 + $0xb8] sm:$0xff]
        %v496 = vld [vmem:[%s466 + $0xc0] sm:$0xff]
        %v497 = vld [vmem:[%s466 + $0xc8] sm:$0xff]
        %v498 = vld [vmem:[%s466 + $0xd0] sm:$0xff]
        %v499 = vld [vmem:[%s466 + $0xd8] sm:$0xff]
        %v500 = vld [vmem:[%s466 + $0xe0] sm:$0xff]
        %v501 = vld [vmem:[%s466 + $0xe8] sm:$0xff]
        %v502 = vld [vmem:[%s466 + $0xf0] sm:$0xff]
        %v503 = vld [vmem:[%s466 + $0xf8] sm:$0xff]
        %504 = vset.pattern.permute.xlu0 0
        %505 = vperm.xlu0 %504, %v472
        %v506 = vpop.permute.xlu0 %505
        %507 = vset.pattern.permute.xlu0 0
        %508 = vperm.xlu0 %507, %v473
        %v509 = vpop.permute.xlu0 %508
        %510 = vset.pattern.permute.xlu0 0
        %511 = vperm.xlu0 %510, %v474
        %v512 = vpop.permute.xlu0 %511
        %513 = vset.pattern.permute.xlu0 0
        %514 = vperm.xlu0 %513, %v475
        %v515 = vpop.permute.xlu0 %514
        %516 = vset.pattern.permute.xlu0 0
        %517 = vperm.xlu0 %516, %v476
        %v518 = vpop.permute.xlu0 %517
        %519 = vset.pattern.permute.xlu0 0
        %520 = vperm.xlu0 %519, %v477
        %v521 = vpop.permute.xlu0 %520
        %522 = vset.pattern.permute.xlu0 0
        %523 = vperm.xlu0 %522, %v478
        %v524 = vpop.permute.xlu0 %523
        %525 = vset.pattern.permute.xlu0 0
        %526 = vperm.xlu0 %525, %v479
        %v527 = vpop.permute.xlu0 %526
        %528 = vset.pattern.permute.xlu0 0
        %529 = vperm.xlu0 %528, %v480
        %v530 = vpop.permute.xlu0 %529
        %531 = vset.pattern.permute.xlu0 0
        %532 = vperm.xlu0 %531, %v481
        %v533 = vpop.permute.xlu0 %532
        %534 = vset.pattern.permute.xlu0 0
        %535 = vperm.xlu0 %534, %v482
        %v536 = vpop.permute.xlu0 %535
        %537 = vset.pattern.permute.xlu0 0
        %538 = vperm.xlu0 %537, %v483
        %v539 = vpop.permute.xlu0 %538
        %540 = vset.pattern.permute.xlu0 0
        %541 = vperm.xlu0 %540, %v484
        %v542 = vpop.permute.xlu0 %541
        %543 = vset.pattern.permute.xlu0 0
        %544 = vperm.xlu0 %543, %v485
        %v545 = vpop.permute.xlu0 %544
        %546 = vset.pattern.permute.xlu0 0
        %547 = vperm.xlu0 %546, %v486
        %v548 = vpop.permute.xlu0 %547
        %549 = vset.pattern.permute.xlu0 0
        %550 = vperm.xlu0 %549, %v487
        %v551 = vpop.permute.xlu0 %550
        %552 = vset.pattern.permute.xlu0 0
        %553 = vperm.xlu0 %552, %v488
        %v554 = vpop.permute.xlu0 %553
        %555 = vset.pattern.permute.xlu0 0
        %556 = vperm.xlu0 %555, %v489
        %v557 = vpop.permute.xlu0 %556
        %558 = vset.pattern.permute.xlu0 0
        %559 = vperm.xlu0 %558, %v490
        %v560 = vpop.permute.xlu0 %559
        %561 = vset.pattern.permute.xlu0 0
        %562 = vperm.xlu0 %561, %v491
        %v563 = vpop.permute.xlu0 %562
        %564 = vset.pattern.permute.xlu0 0
        %565 = vperm.xlu0 %564, %v492
        %v566 = vpop.permute.xlu0 %565
        %567 = vset.pattern.permute.xlu0 0
        %568 = vperm.xlu0 %567, %v493
        %v569 = vpop.permute.xlu0 %568
        %570 = vset.pattern.permute.xlu0 0
        %571 = vperm.xlu0 %570, %v494
        %v572 = vpop.permute.xlu0 %571
        %573 = vset.pattern.permute.xlu0 0
        %574 = vperm.xlu0 %573, %v495
        %v575 = vpop.permute.xlu0 %574
        %576 = vset.pattern.permute.xlu0 0
        %577 = vperm.xlu0 %576, %v496
        %v578 = vpop.permute.xlu0 %577
        %579 = vset.pattern.permute.xlu0 0
        %580 = vperm.xlu0 %579, %v497
        %v581 = vpop.permute.xlu0 %580
        %582 = vset.pattern.permute.xlu0 0
        %583 = vperm.xlu0 %582, %v498
        %v584 = vpop.permute.xlu0 %583
        %585 = vset.pattern.permute.xlu0 0
        %586 = vperm.xlu0 %585, %v499
        %v587 = vpop.permute.xlu0 %586
        %588 = vset.pattern.permute.xlu0 0
        %589 = vperm.xlu0 %588, %v500
        %v590 = vpop.permute.xlu0 %589
        %591 = vset.pattern.permute.xlu0 0
        %592 = vperm.xlu0 %591, %v501
        %v593 = vpop.permute.xlu0 %592
        %594 = vset.pattern.permute.xlu0 0
        %595 = vperm.xlu0 %594, %v502
        %v596 = vpop.permute.xlu0 %595
        %597 = vset.pattern.permute.xlu0 0
        %598 = vperm.xlu0 %597, %v503
        %v599 = vpop.permute.xlu0 %598
        %vm600 = vcmp.eq.s32.totalorder %v506, %v471
        %vm601 = vcmp.eq.s32.totalorder %v509, %v471
        %vm602 = vcmp.eq.s32.totalorder %v512, %v471
        %vm603 = vcmp.eq.s32.totalorder %v515, %v471
        %vm604 = vcmp.eq.s32.totalorder %v518, %v471
        %vm605 = vcmp.eq.s32.totalorder %v521, %v471
        %vm606 = vcmp.eq.s32.totalorder %v524, %v471
        %vm607 = vcmp.eq.s32.totalorder %v527, %v471
        %vm608 = vcmp.eq.s32.totalorder %v530, %v471
        %vm609 = vcmp.eq.s32.totalorder %v533, %v471
        %vm610 = vcmp.eq.s32.totalorder %v536, %v471
        %vm611 = vcmp.eq.s32.totalorder %v539, %v471
        %vm612 = vcmp.eq.s32.totalorder %v542, %v471
        %vm613 = vcmp.eq.s32.totalorder %v545, %v471
        %vm614 = vcmp.eq.s32.totalorder %v548, %v471
        %vm615 = vcmp.eq.s32.totalorder %v551, %v471
        %vm616 = vcmp.eq.s32.totalorder %v554, %v471
        %vm617 = vcmp.eq.s32.totalorder %v557, %v471
        %vm618 = vcmp.eq.s32.totalorder %v560, %v471
        %vm619 = vcmp.eq.s32.totalorder %v563, %v471
        %vm620 = vcmp.eq.s32.totalorder %v566, %v471
        %vm621 = vcmp.eq.s32.totalorder %v569, %v471
        %vm622 = vcmp.eq.s32.totalorder %v572, %v471
        %vm623 = vcmp.eq.s32.totalorder %v575, %v471
        %vm624 = vcmp.eq.s32.totalorder %v578, %v471
        %vm625 = vcmp.eq.s32.totalorder %v581, %v471
        %vm626 = vcmp.eq.s32.totalorder %v584, %v471
        %vm627 = vcmp.eq.s32.totalorder %v587, %v471
        %vm628 = vcmp.eq.s32.totalorder %v590, %v471
        %vm629 = vcmp.eq.s32.totalorder %v593, %v471
        %vm630 = vcmp.eq.s32.totalorder %v596, %v471
        %vm631 = vcmp.eq.s32.totalorder %v599, %v471
        %v632 = vsel %vm600, 1.0, 0.0
        %v633 = vsel %vm601, 1.0, 0.0
        %v634 = vsel %vm602, 1.0, 0.0
        %v635 = vsel %vm603, 1.0, 0.0
        %v636 = vsel %vm604, 1.0, 0.0
        %v637 = vsel %vm605, 1.0, 0.0
        %v638 = vsel %vm606, 1.0, 0.0
        %v639 = vsel %vm607, 1.0, 0.0
        %v640 = vsel %vm608, 1.0, 0.0
        %v641 = vsel %vm609, 1.0, 0.0
        %v642 = vsel %vm610, 1.0, 0.0
        %v643 = vsel %vm611, 1.0, 0.0
        %v644 = vsel %vm612, 1.0, 0.0
        %v645 = vsel %vm613, 1.0, 0.0
        %v646 = vsel %vm614, 1.0, 0.0
        %v647 = vsel %vm615, 1.0, 0.0
        %v648 = vsel %vm616, 1.0, 0.0
        %v649 = vsel %vm617, 1.0, 0.0
        %v650 = vsel %vm618, 1.0, 0.0
        %v651 = vsel %vm619, 1.0, 0.0
        %v652 = vsel %vm620, 1.0, 0.0
        %v653 = vsel %vm621, 1.0, 0.0
        %v654 = vsel %vm622, 1.0, 0.0
        %v655 = vsel %vm623, 1.0, 0.0
        %v656 = vsel %vm624, 1.0, 0.0
        %v657 = vsel %vm625, 1.0, 0.0
        %v658 = vsel %vm626, 1.0, 0.0
        %v659 = vsel %vm627, 1.0, 0.0
        %v660 = vsel %vm628, 1.0, 0.0
        %v661 = vsel %vm629, 1.0, 0.0
        %v662 = vsel %vm630, 1.0, 0.0
        %v663 = vsel %vm631, 1.0, 0.0
        %v664 = vpack.c.bf16 %v633, %v632
        %v665 = vpack.c.bf16 %v635, %v634
        %v666 = vpack.c.bf16 %v637, %v636
        %v667 = vpack.c.bf16 %v639, %v638
        %v668 = vpack.c.bf16 %v641, %v640
        %v669 = vpack.c.bf16 %v643, %v642
        %v670 = vpack.c.bf16 %v645, %v644
        %v671 = vpack.c.bf16 %v647, %v646
        %v672 = vpack.c.bf16 %v649, %v648
        %v673 = vpack.c.bf16 %v651, %v650
        %v674 = vpack.c.bf16 %v653, %v652
        %v675 = vpack.c.bf16 %v655, %v654
        %v676 = vpack.c.bf16 %v657, %v656
        %v677 = vpack.c.bf16 %v659, %v658
        %v678 = vpack.c.bf16 %v661, %v660
        %v679 = vpack.c.bf16 %v663, %v662
        %v680 = vld [vmem:[#allocation2] sm:$0xf]
        %v681 = vld [vmem:[#allocation2 + $0x4] sm:$0xf]
        %v684 = vunpack.c.l.b16 %v680
        %v685 = vunpack.c.l.b16 %v681
        %v686 = vpack.c.b16 %v685, %v684
        %vm688 = vcmask 130048
        %v690 = vsel %vm688, %v664, 0
        %v693 = vsel %vm688, %v665, 0
        %v696 = vsel %vm688, %v666, 0
        %v699 = vsel %vm688, %v667, 0
        %v702 = vsel %vm688, %v668, 0
        %v705 = vsel %vm688, %v669, 0
        %v708 = vsel %vm688, %v670, 0
        %v711 = vsel %vm688, %v671, 0
        %v714 = vsel %vm688, %v672, 0
        %v717 = vsel %vm688, %v673, 0
        %v720 = vsel %vm688, %v674, 0
        %v723 = vsel %vm688, %v675, 0
        %v726 = vsel %vm688, %v676, 0
        %v729 = vsel %vm688, %v677, 0
        %v732 = vsel %vm688, %v678, 0
        %v735 = vsel %vm688, %v679, 0
        %737 = vmatprep.subr.bf16.mxu0 0
        %738 = vmatpush1.bf16.msra.mxu0 0
        %739 = vmatprep.subr.bf16.mxu0 0
        %740 = vmatpush1.bf16.msra.mxu0 0
        %741 = vmatprep.subr.bf16.mxu0 0
        %742 = vmatpush1.bf16.msra.mxu0 0
        %743 = vmatprep.subr.bf16.mxu0 0
        %744 = vmatpush1.bf16.msra.mxu0 0
        %745 = vmatprep.subr.bf16.mxu0 0
        %746 = vmatpush1.bf16.msra.mxu0 0
        %747 = vmatprep.subr.bf16.mxu0 0
        %748 = vmatpush1.bf16.msra.mxu0 0
        %749 = vmatprep.subr.bf16.mxu0 0
        %750 = vmatpush1.bf16.msra.mxu0 0
        %751 = vmatprep.subr.bf16.mxu0 0
        %752 = vmatpush1.bf16.msra.mxu0 %v686
        %753 = vmatprep.subr.bf16.mxu0 0
        %754 = vmatpush2.bf16.msra.mxu0 0
        %755 = vmatprep.subr.bf16.mxu0 0
        %756 = vmatpush2.bf16.msra.mxu0 0
        %757 = vmatprep.subr.bf16.mxu0 0
        %758 = vmatpush2.bf16.msra.mxu0 0
        %759 = vmatprep.subr.bf16.mxu0 0
        %760 = vmatpush2.bf16.msra.mxu0 0
        %761 = vmatprep.subr.bf16.mxu0 0
        %762 = vmatpush2.bf16.msra.mxu0 0
        %763 = vmatprep.subr.bf16.mxu0 0
        %764 = vmatpush2.bf16.msra.mxu0 0
        %765 = vmatprep.subr.bf16.mxu0 0
        %766 = vmatpush2.bf16.msra.mxu0 0
        %767 = vmatprep.subr.bf16.mxu0 0
        %768 = vmatpush2.bf16.msra.mxu0 0
        %769 = vmatprep.mubr.bf16.mxu0 0
        %770 = vmatmul.mubr.bf16.gmra.mxu0 %v690
        %v771 = vpop.f32.mrf.mxu0
        %v772 = vadd.f32 0.0, %v771
        %v773 = vpop.f32.mrf.mxu0
        %v774 = vpop.f32.mrf.mxu0
        %v775 = vadd.f32 0.0, %v774
        %v776 = vpop.f32.mrf.mxu0
        %777 = vmatprep.mubr.bf16.mxu0 0
        %778 = vmatmul.mubr.bf16.gmra.mxu0 %v693
        %v779 = vpop.f32.mrf.mxu0
        %v780 = vadd.f32 0.0, %v779
        %v781 = vpop.f32.mrf.mxu0
        %v782 = vpop.f32.mrf.mxu0
        %v783 = vadd.f32 0.0, %v782
        %v784 = vpop.f32.mrf.mxu0
        %785 = vmatprep.mubr.bf16.mxu0 0
        %786 = vmatmul.mubr.bf16.gmra.mxu0 %v696
        %v787 = vpop.f32.mrf.mxu0
        %v788 = vadd.f32 0.0, %v787
        %v789 = vpop.f32.mrf.mxu0
        %v790 = vpop.f32.mrf.mxu0
        %v791 = vadd.f32 0.0, %v790
        %v792 = vpop.f32.mrf.mxu0
        %793 = vmatprep.mubr.bf16.mxu0 0
        %794 = vmatmul.mubr.bf16.gmra.mxu0 %v699
        %v795 = vpop.f32.mrf.mxu0
        %v796 = vadd.f32 0.0, %v795
        %v797 = vpop.f32.mrf.mxu0
        %v798 = vpop.f32.mrf.mxu0
        %v799 = vadd.f32 0.0, %v798
        %v800 = vpop.f32.mrf.mxu0
        %801 = vmatprep.mubr.bf16.mxu0 0
        %802 = vmatmul.mubr.bf16.gmra.mxu0 %v702
        %v803 = vpop.f32.mrf.mxu0
        %v804 = vadd.f32 0.0, %v803
        %v805 = vpop.f32.mrf.mxu0
        %v806 = vpop.f32.mrf.mxu0
        %v807 = vadd.f32 0.0, %v806
        %v808 = vpop.f32.mrf.mxu0
        %809 = vmatprep.mubr.bf16.mxu0 0
        %810 = vmatmul.mubr.bf16.gmra.mxu0 %v705
        %v811 = vpop.f32.mrf.mxu0
        %v812 = vadd.f32 0.0, %v811
        %v813 = vpop.f32.mrf.mxu0
        %v814 = vpop.f32.mrf.mxu0
        %v815 = vadd.f32 0.0, %v814
        %v816 = vpop.f32.mrf.mxu0
        %817 = vmatprep.mubr.bf16.mxu0 0
        %818 = vmatmul.mubr.bf16.gmra.mxu0 %v708
        %v819 = vpop.f32.mrf.mxu0
        %v820 = vadd.f32 0.0, %v819
        %v821 = vpop.f32.mrf.mxu0
        %v822 = vpop.f32.mrf.mxu0
        %v823 = vadd.f32 0.0, %v822
        %v824 = vpop.f32.mrf.mxu0
        %825 = vmatprep.mubr.bf16.mxu0 0
        %826 = vmatmul.mubr.bf16.gmra.mxu0 %v711
        %v827 = vpop.f32.mrf.mxu0
        %v828 = vadd.f32 0.0, %v827
        %v829 = vpop.f32.mrf.mxu0
        %v830 = vpop.f32.mrf.mxu0
        %v831 = vadd.f32 0.0, %v830
        %v832 = vpop.f32.mrf.mxu0
        %833 = vmatprep.mubr.bf16.mxu0 0
        %834 = vmatmul.mubr.bf16.gmra.mxu0 %v714
        %v835 = vpop.f32.mrf.mxu0
        %v836 = vadd.f32 0.0, %v835
        %v837 = vpop.f32.mrf.mxu0
        %v838 = vpop.f32.mrf.mxu0
        %v839 = vadd.f32 0.0, %v838
        %v840 = vpop.f32.mrf.mxu0
        %841 = vmatprep.mubr.bf16.mxu0 0
        %842 = vmatmul.mubr.bf16.gmra.mxu0 %v717
        %v843 = vpop.f32.mrf.mxu0
        %v844 = vadd.f32 0.0, %v843
        %v845 = vpop.f32.mrf.mxu0
        %v846 = vpop.f32.mrf.mxu0
        %v847 = vadd.f32 0.0, %v846
        %v848 = vpop.f32.mrf.mxu0
        %849 = vmatprep.mubr.bf16.mxu0 0
        %850 = vmatmul.mubr.bf16.gmra.mxu0 %v720
        %v851 = vpop.f32.mrf.mxu0
        %v852 = vadd.f32 0.0, %v851
        %v853 = vpop.f32.mrf.mxu0
        %v854 = vpop.f32.mrf.mxu0
        %v855 = vadd.f32 0.0, %v854
        %v856 = vpop.f32.mrf.mxu0
        %857 = vmatprep.mubr.bf16.mxu0 0
        %858 = vmatmul.mubr.bf16.gmra.mxu0 %v723
        %v859 = vpop.f32.mrf.mxu0
        %v860 = vadd.f32 0.0, %v859
        %v861 = vpop.f32.mrf.mxu0
        %v862 = vpop.f32.mrf.mxu0
        %v863 = vadd.f32 0.0, %v862
        %v864 = vpop.f32.mrf.mxu0
        %865 = vmatprep.mubr.bf16.mxu0 0
        %866 = vmatmul.mubr.bf16.gmra.mxu0 %v726
        %v867 = vpop.f32.mrf.mxu0
        %v868 = vadd.f32 0.0, %v867
        %v869 = vpop.f32.mrf.mxu0
        %v870 = vpop.f32.mrf.mxu0
        %v871 = vadd.f32 0.0, %v870
        %v872 = vpop.f32.mrf.mxu0
        %873 = vmatprep.mubr.bf16.mxu0 0
        %874 = vmatmul.mubr.bf16.gmra.mxu0 %v729
        %v875 = vpop.f32.mrf.mxu0
        %v876 = vadd.f32 0.0, %v875
        %v877 = vpop.f32.mrf.mxu0
        %v878 = vpop.f32.mrf.mxu0
        %v879 = vadd.f32 0.0, %v878
        %v880 = vpop.f32.mrf.mxu0
        %881 = vmatprep.mubr.bf16.mxu0 0
        %882 = vmatmul.mubr.bf16.gmra.mxu0 %v732
        %v883 = vpop.f32.mrf.mxu0
        %v884 = vadd.f32 0.0, %v883
        %v885 = vpop.f32.mrf.mxu0
        %v886 = vpop.f32.mrf.mxu0
        %v887 = vadd.f32 0.0, %v886
        %v888 = vpop.f32.mrf.mxu0
        %889 = vmatprep.mubr.bf16.mxu0 0
        %890 = vmatmul.mubr.bf16.gmra.mxu0 %v735
        %v891 = vpop.f32.mrf.mxu0
        %v892 = vadd.f32 0.0, %v891
        %v893 = vpop.f32.mrf.mxu0
        %v894 = vpop.f32.mrf.mxu0
        %v895 = vadd.f32 0.0, %v894
        %v896 = vpop.f32.mrf.mxu0
        %897 = vdwg.mxu0
        %v898 = vld [vmem:[%s460] sm:$0xf]
        %v899 = vld [vmem:[%s460 + $0x4] sm:$0xf]
        %v900 = vld [vmem:[%s460 + $0x8] sm:$0xf]
        %v901 = vld [vmem:[%s460 + $0xc] sm:$0xf]
        %v902 = vld [vmem:[%s460 + $0x10] sm:$0xf]
        %v903 = vld [vmem:[%s460 + $0x14] sm:$0xf]
        %v904 = vld [vmem:[%s460 + $0x18] sm:$0xf]
        %v905 = vld [vmem:[%s460 + $0x1c] sm:$0xf]
        %v906 = vld [vmem:[%s460 + $0x20] sm:$0xf]
        %v907 = vld [vmem:[%s460 + $0x24] sm:$0xf]
        %v908 = vld [vmem:[%s460 + $0x28] sm:$0xf]
        %v909 = vld [vmem:[%s460 + $0x2c] sm:$0xf]
        %v910 = vld [vmem:[%s460 + $0x30] sm:$0xf]
        %v911 = vld [vmem:[%s460 + $0x34] sm:$0xf]
        %v912 = vld [vmem:[%s460 + $0x38] sm:$0xf]
        %v913 = vld [vmem:[%s460 + $0x3c] sm:$0xf]
        %v914 = vld [vmem:[%s460 + $0x40] sm:$0xf]
        %v915 = vld [vmem:[%s460 + $0x44] sm:$0xf]
        %v916 = vld [vmem:[%s460 + $0x48] sm:$0xf]
        %v917 = vld [vmem:[%s460 + $0x4c] sm:$0xf]
        %v918 = vld [vmem:[%s460 + $0x50] sm:$0xf]
        %v919 = vld [vmem:[%s460 + $0x54] sm:$0xf]
        %v920 = vld [vmem:[%s460 + $0x58] sm:$0xf]
        %v921 = vld [vmem:[%s460 + $0x5c] sm:$0xf]
        %v922 = vld [vmem:[%s460 + $0x60] sm:$0xf]
        %v923 = vld [vmem:[%s460 + $0x64] sm:$0xf]
        %v924 = vld [vmem:[%s460 + $0x68] sm:$0xf]
        %v925 = vld [vmem:[%s460 + $0x6c] sm:$0xf]
        %v926 = vld [vmem:[%s460 + $0x70] sm:$0xf]
        %v927 = vld [vmem:[%s460 + $0x74] sm:$0xf]
        %v928 = vld [vmem:[%s460 + $0x78] sm:$0xf]
        %v929 = vld [vmem:[%s460 + $0x7c] sm:$0xf]
        %v930 = vld [vmem:[#allocation5] sm:$0xf]
        %v931 = vld [vmem:[#allocation5 + $0x4] sm:$0xf]
        %v932 = vld [vmem:[#allocation5 + $0x8] sm:$0xf]
        %v933 = vld [vmem:[#allocation5 + $0xc] sm:$0xf]
        %v934 = vld [vmem:[#allocation5 + $0x10] sm:$0xf]
        %v935 = vld [vmem:[#allocation5 + $0x14] sm:$0xf]
        %v936 = vld [vmem:[#allocation5 + $0x18] sm:$0xf]
        %v937 = vld [vmem:[#allocation5 + $0x1c] sm:$0xf]
        %v938 = vld [vmem:[#allocation5 + $0x20] sm:$0xf]
        %v939 = vld [vmem:[#allocation5 + $0x24] sm:$0xf]
        %v940 = vld [vmem:[#allocation5 + $0x28] sm:$0xf]
        %v941 = vld [vmem:[#allocation5 + $0x2c] sm:$0xf]
        %v942 = vld [vmem:[#allocation5 + $0x30] sm:$0xf]
        %v943 = vld [vmem:[#allocation5 + $0x34] sm:$0xf]
        %v944 = vld [vmem:[#allocation5 + $0x38] sm:$0xf]
        %v945 = vld [vmem:[#allocation5 + $0x3c] sm:$0xf]
        %v946 = vld [vmem:[%s4] sm:$0x1]
        %v948 = vlaneseq
        %v949 = vshrl.u32 %v948, 7
        %v950 = vsub.s32 0, %v949
        %v951 = vrot.slane %v946, %v950
        %v985 = vunpack.c.l.b16 %v898
        %v986 = vunpack.c.l.b16 %v899
        %v987 = vunpack.c.l.b16 %v900
        %v988 = vunpack.c.l.b16 %v901
        %v989 = vunpack.c.l.b16 %v902
        %v990 = vunpack.c.l.b16 %v903
        %v991 = vunpack.c.l.b16 %v904
        %v992 = vunpack.c.l.b16 %v905
        %v993 = vunpack.c.l.b16 %v906
        %v994 = vunpack.c.l.b16 %v907
        %v995 = vunpack.c.l.b16 %v908
        %v996 = vunpack.c.l.b16 %v909
        %v997 = vunpack.c.l.b16 %v910
        %v998 = vunpack.c.l.b16 %v911
        %v999 = vunpack.c.l.b16 %v912
        %v1000 = vunpack.c.l.b16 %v913
        %v1001 = vunpack.c.l.b16 %v914
        %v1002 = vunpack.c.l.b16 %v915
        %v1003 = vunpack.c.l.b16 %v916
        %v1004 = vunpack.c.l.b16 %v917
        %v1005 = vunpack.c.l.b16 %v918
        %v1006 = vunpack.c.l.b16 %v919
        %v1007 = vunpack.c.l.b16 %v920
        %v1008 = vunpack.c.l.b16 %v921
        %v1009 = vunpack.c.l.b16 %v922
        %v1010 = vunpack.c.l.b16 %v923
        %v1011 = vunpack.c.l.b16 %v924
        %v1012 = vunpack.c.l.b16 %v925
        %v1013 = vunpack.c.l.b16 %v926
        %v1014 = vunpack.c.l.b16 %v927
        %v1015 = vunpack.c.l.b16 %v928
        %v1016 = vunpack.c.l.b16 %v929
        %v1017 = vpack.c.b16 %v986, %v985
        %v1018 = vpack.c.b16 %v988, %v987
        %v1019 = vpack.c.b16 %v990, %v989
        %v1020 = vpack.c.b16 %v992, %v991
        %v1021 = vpack.c.b16 %v994, %v993
        %v1022 = vpack.c.b16 %v996, %v995
        %v1023 = vpack.c.b16 %v998, %v997
        %v1024 = vpack.c.b16 %v1000, %v999
        %v1025 = vpack.c.b16 %v1002, %v1001
        %v1026 = vpack.c.b16 %v1004, %v1003
        %v1027 = vpack.c.b16 %v1006, %v1005
        %v1028 = vpack.c.b16 %v1008, %v1007
        %v1029 = vpack.c.b16 %v1010, %v1009
        %v1030 = vpack.c.b16 %v1012, %v1011
        %v1031 = vpack.c.b16 %v1014, %v1013
        %v1032 = vpack.c.b16 %v1016, %v1015
        %v1065 = vunpack.c.l.b16 %v930
        %v1066 = vunpack.c.l.b16 %v931
        %v1067 = vunpack.c.l.b16 %v932
        %v1068 = vunpack.c.l.b16 %v933
        %v1069 = vunpack.c.l.b16 %v934
        %v1070 = vunpack.c.l.b16 %v935
        %v1071 = vunpack.c.l.b16 %v936
        %v1072 = vunpack.c.l.b16 %v937
        %v1073 = vunpack.c.l.b16 %v938
        %v1074 = vunpack.c.l.b16 %v939
        %v1075 = vunpack.c.l.b16 %v940
        %v1076 = vunpack.c.l.b16 %v941
        %v1077 = vunpack.c.l.b16 %v942
        %v1078 = vunpack.c.l.b16 %v943
        %v1079 = vunpack.c.l.b16 %v944
        %v1080 = vunpack.c.l.b16 %v945
        %v1081 = vpack.c.b16 %v1066, %v1065
        %v1082 = vpack.c.b16 %v1068, %v1067
        %v1083 = vpack.c.b16 %v1070, %v1069
        %v1084 = vpack.c.b16 %v1072, %v1071
        %v1085 = vpack.c.b16 %v1074, %v1073
        %v1086 = vpack.c.b16 %v1076, %v1075
        %v1087 = vpack.c.b16 %v1078, %v1077
        %v1088 = vpack.c.b16 %v1080, %v1079
        %1097 = vmatprep.subr.bf16.mxu0 0
        %1098 = vmatpush1.bf16.msra.mxu0 %v1088
        %1099 = vmatprep.subr.bf16.mxu0 0
        %1100 = vmatpush1.bf16.msra.mxu0 %v1087
        %1101 = vmatprep.subr.bf16.mxu0 0
        %1102 = vmatpush1.bf16.msra.mxu0 %v1086
        %1103 = vmatprep.subr.bf16.mxu0 0
        %1104 = vmatpush1.bf16.msra.mxu0 %v1085
        %1105 = vmatprep.subr.bf16.mxu0 0
        %1106 = vmatpush1.bf16.msra.mxu0 %v1084
        %1107 = vmatprep.subr.bf16.mxu0 0
        %1108 = vmatpush1.bf16.msra.mxu0 %v1083
        %1109 = vmatprep.subr.bf16.mxu0 0
        %1110 = vmatpush1.bf16.msra.mxu0 %v1082
        %1111 = vmatprep.subr.bf16.mxu0 0
        %1112 = vmatpush1.bf16.msra.mxu0 %v1081
        %1113 = vmatprep.subr.bf16.mxu0 0
        %1114 = vmatpush2.bf16.msra.mxu0 0
        %1115 = vmatprep.subr.bf16.mxu0 0
        %1116 = vmatpush2.bf16.msra.mxu0 0
        %1117 = vmatprep.subr.bf16.mxu0 0
        %1118 = vmatpush2.bf16.msra.mxu0 0
        %1119 = vmatprep.subr.bf16.mxu0 0
        %1120 = vmatpush2.bf16.msra.mxu0 0
        %1121 = vmatprep.subr.bf16.mxu0 0
        %1122 = vmatpush2.bf16.msra.mxu0 0
        %1123 = vmatprep.subr.bf16.mxu0 0
        %1124 = vmatpush2.bf16.msra.mxu0 0
        %1125 = vmatprep.subr.bf16.mxu0 0
        %1126 = vmatpush2.bf16.msra.mxu0 0
        %1127 = vmatprep.subr.bf16.mxu0 0
        %1128 = vmatpush2.bf16.msra.mxu0 0
        %1129 = vmatprep.mubr.bf16.mxu0 0
        %1130 = vmatmul.mubr.bf16.gmra.mxu0 %v1017
        %v1131 = vpop.f32.mrf.mxu0
        %v1132 = vadd.f32 %v951, %v1131
        %v1133 = vpop.f32.mrf.mxu0
        %v1134 = vpop.f32.mrf.mxu0
        %v1135 = vadd.f32 %v951, %v1134
        %v1136 = vpop.f32.mrf.mxu0
        %1137 = vmatprep.mubr.bf16.mxu0 0
        %1138 = vmatmul.mubr.bf16.gmra.mxu0 %v1018
        %v1139 = vpop.f32.mrf.mxu0
        %v1140 = vadd.f32 %v951, %v1139
        %v1141 = vpop.f32.mrf.mxu0
        %v1142 = vpop.f32.mrf.mxu0
        %v1143 = vadd.f32 %v951, %v1142
        %v1144 = vpop.f32.mrf.mxu0
        %1145 = vmatprep.mubr.bf16.mxu0 0
        %1146 = vmatmul.mubr.bf16.gmra.mxu0 %v1019
        %v1147 = vpop.f32.mrf.mxu0
        %v1148 = vadd.f32 %v951, %v1147
        %v1149 = vpop.f32.mrf.mxu0
        %v1150 = vpop.f32.mrf.mxu0
        %v1151 = vadd.f32 %v951, %v1150
        %v1152 = vpop.f32.mrf.mxu0
        %1153 = vmatprep.mubr.bf16.mxu0 0
        %1154 = vmatmul.mubr.bf16.gmra.mxu0 %v1020
        %v1155 = vpop.f32.mrf.mxu0
        %v1156 = vadd.f32 %v951, %v1155
        %v1157 = vpop.f32.mrf.mxu0
        %v1158 = vpop.f32.mrf.mxu0
        %v1159 = vadd.f32 %v951, %v1158
        %v1160 = vpop.f32.mrf.mxu0
        %1161 = vmatprep.mubr.bf16.mxu0 0
        %1162 = vmatmul.mubr.bf16.gmra.mxu0 %v1021
        %v1163 = vpop.f32.mrf.mxu0
        %v1164 = vadd.f32 %v951, %v1163
        %v1165 = vpop.f32.mrf.mxu0
        %v1166 = vpop.f32.mrf.mxu0
        %v1167 = vadd.f32 %v951, %v1166
        %v1168 = vpop.f32.mrf.mxu0
        %1169 = vmatprep.mubr.bf16.mxu0 0
        %1170 = vmatmul.mubr.bf16.gmra.mxu0 %v1022
        %v1171 = vpop.f32.mrf.mxu0
        %v1172 = vadd.f32 %v951, %v1171
        %v1173 = vpop.f32.mrf.mxu0
        %v1174 = vpop.f32.mrf.mxu0
        %v1175 = vadd.f32 %v951, %v1174
        %v1176 = vpop.f32.mrf.mxu0
        %1177 = vmatprep.mubr.bf16.mxu0 0
        %1178 = vmatmul.mubr.bf16.gmra.mxu0 %v1023
        %v1179 = vpop.f32.mrf.mxu0
        %v1180 = vadd.f32 %v951, %v1179
        %v1181 = vpop.f32.mrf.mxu0
        %v1182 = vpop.f32.mrf.mxu0
        %v1183 = vadd.f32 %v951, %v1182
        %v1184 = vpop.f32.mrf.mxu0
        %1185 = vmatprep.mubr.bf16.mxu0 0
        %1186 = vmatmul.mubr.bf16.gmra.mxu0 %v1024
        %v1187 = vpop.f32.mrf.mxu0
        %v1188 = vadd.f32 %v951, %v1187
        %v1189 = vpop.f32.mrf.mxu0
        %v1190 = vpop.f32.mrf.mxu0
        %v1191 = vadd.f32 %v951, %v1190
        %v1192 = vpop.f32.mrf.mxu0
        %1193 = vmatprep.mubr.bf16.mxu0 0
        %1194 = vmatmul.mubr.bf16.gmra.mxu0 %v1025
        %v1195 = vpop.f32.mrf.mxu0
        %v1196 = vadd.f32 %v951, %v1195
        %v1197 = vpop.f32.mrf.mxu0
        %v1198 = vpop.f32.mrf.mxu0
        %v1199 = vadd.f32 %v951, %v1198
        %v1200 = vpop.f32.mrf.mxu0
        %1201 = vmatprep.mubr.bf16.mxu0 0
        %1202 = vmatmul.mubr.bf16.gmra.mxu0 %v1026
        %v1203 = vpop.f32.mrf.mxu0
        %v1204 = vadd.f32 %v951, %v1203
        %v1205 = vpop.f32.mrf.mxu0
        %v1206 = vpop.f32.mrf.mxu0
        %v1207 = vadd.f32 %v951, %v1206
        %v1208 = vpop.f32.mrf.mxu0
        %1209 = vmatprep.mubr.bf16.mxu0 0
        %1210 = vmatmul.mubr.bf16.gmra.mxu0 %v1027
        %v1211 = vpop.f32.mrf.mxu0
        %v1212 = vadd.f32 %v951, %v1211
        %v1213 = vpop.f32.mrf.mxu0
        %v1214 = vpop.f32.mrf.mxu0
        %v1215 = vadd.f32 %v951, %v1214
        %v1216 = vpop.f32.mrf.mxu0
        %1217 = vmatprep.mubr.bf16.mxu0 0
        %1218 = vmatmul.mubr.bf16.gmra.mxu0 %v1028
        %v1219 = vpop.f32.mrf.mxu0
        %v1220 = vadd.f32 %v951, %v1219
        %v1221 = vpop.f32.mrf.mxu0
        %v1222 = vpop.f32.mrf.mxu0
        %v1223 = vadd.f32 %v951, %v1222
        %v1224 = vpop.f32.mrf.mxu0
        %1225 = vmatprep.mubr.bf16.mxu0 0
        %1226 = vmatmul.mubr.bf16.gmra.mxu0 %v1029
        %v1227 = vpop.f32.mrf.mxu0
        %v1228 = vadd.f32 %v951, %v1227
        %v1229 = vpop.f32.mrf.mxu0
        %v1230 = vpop.f32.mrf.mxu0
        %v1231 = vadd.f32 %v951, %v1230
        %v1232 = vpop.f32.mrf.mxu0
        %1233 = vmatprep.mubr.bf16.mxu0 0
        %1234 = vmatmul.mubr.bf16.gmra.mxu0 %v1030
        %v1235 = vpop.f32.mrf.mxu0
        %v1236 = vadd.f32 %v951, %v1235
        %v1237 = vpop.f32.mrf.mxu0
        %v1238 = vpop.f32.mrf.mxu0
        %v1239 = vadd.f32 %v951, %v1238
        %v1240 = vpop.f32.mrf.mxu0
        %1241 = vmatprep.mubr.bf16.mxu0 0
        %1242 = vmatmul.mubr.bf16.gmra.mxu0 %v1031
        %v1243 = vpop.f32.mrf.mxu0
        %v1244 = vadd.f32 %v951, %v1243
        %v1245 = vpop.f32.mrf.mxu0
        %v1246 = vpop.f32.mrf.mxu0
        %v1247 = vadd.f32 %v951, %v1246
        %v1248 = vpop.f32.mrf.mxu0
        %1249 = vmatprep.mubr.bf16.mxu0 0
        %1250 = vmatmul.mubr.bf16.gmra.mxu0 %v1032
        %v1251 = vpop.f32.mrf.mxu0
        %v1252 = vadd.f32 %v951, %v1251
        %v1253 = vpop.f32.mrf.mxu0
        %v1254 = vpop.f32.mrf.mxu0
        %v1255 = vadd.f32 %v951, %v1254
        %v1256 = vpop.f32.mrf.mxu0
        %1257 = vdwg.mxu0
        %v1258 = vadd.f32 %v1132, %v772
        %v1259 = vadd.f32 %v1135, %v775
        %v1260 = vadd.f32 %v1140, %v780
        %v1261 = vadd.f32 %v1143, %v783
        %v1262 = vadd.f32 %v1148, %v788
        %v1263 = vadd.f32 %v1151, %v791
        %v1264 = vadd.f32 %v1156, %v796
        %v1265 = vadd.f32 %v1159, %v799
        %v1266 = vadd.f32 %v1164, %v804
        %v1267 = vadd.f32 %v1167, %v807
        %v1268 = vadd.f32 %v1172, %v812
        %v1269 = vadd.f32 %v1175, %v815
        %v1270 = vadd.f32 %v1180, %v820
        %v1271 = vadd.f32 %v1183, %v823
        %v1272 = vadd.f32 %v1188, %v828
        %v1273 = vadd.f32 %v1191, %v831
        %v1274 = vadd.f32 %v1196, %v836
        %v1275 = vadd.f32 %v1199, %v839
        %v1276 = vadd.f32 %v1204, %v844
        %v1277 = vadd.f32 %v1207, %v847
        %v1278 = vadd.f32 %v1212, %v852
        %v1279 = vadd.f32 %v1215, %v855
        %v1280 = vadd.f32 %v1220, %v860
        %v1281 = vadd.f32 %v1223, %v863
        %v1282 = vadd.f32 %v1228, %v868
        %v1283 = vadd.f32 %v1231, %v871
        %v1284 = vadd.f32 %v1236, %v876
        %v1285 = vadd.f32 %v1239, %v879
        %v1286 = vadd.f32 %v1244, %v884
        %v1287 = vadd.f32 %v1247, %v887
        %v1288 = vadd.f32 %v1252, %v892
        %v1289 = vadd.f32 %v1255, %v895
        %v1290 = vmul.f32 %v1258, 0.5
        %v1291 = vmul.f32 %v1259, 0.5
        %v1292 = vmul.f32 %v1260, 0.5
        %v1293 = vmul.f32 %v1261, 0.5
        %v1294 = vmul.f32 %v1262, 0.5
        %v1295 = vmul.f32 %v1263, 0.5
        %v1296 = vmul.f32 %v1264, 0.5
        %v1297 = vmul.f32 %v1265, 0.5
        %v1298 = vmul.f32 %v1266, 0.5
        %v1299 = vmul.f32 %v1267, 0.5
        %v1300 = vmul.f32 %v1268, 0.5
        %v1301 = vmul.f32 %v1269, 0.5
        %v1302 = vmul.f32 %v1270, 0.5
        %v1303 = vmul.f32 %v1271, 0.5
        %v1304 = vmul.f32 %v1272, 0.5
        %v1305 = vmul.f32 %v1273, 0.5
        %v1306 = vmul.f32 %v1274, 0.5
        %v1307 = vmul.f32 %v1275, 0.5
        %v1308 = vmul.f32 %v1276, 0.5
        %v1309 = vmul.f32 %v1277, 0.5
        %v1310 = vmul.f32 %v1278, 0.5
        %v1311 = vmul.f32 %v1279, 0.5
        %v1312 = vmul.f32 %v1280, 0.5
        %v1313 = vmul.f32 %v1281, 0.5
        %v1314 = vmul.f32 %v1282, 0.5
        %v1315 = vmul.f32 %v1283, 0.5
        %v1316 = vmul.f32 %v1284, 0.5
        %v1317 = vmul.f32 %v1285, 0.5
        %v1318 = vmul.f32 %v1286, 0.5
        %v1319 = vmul.f32 %v1287, 0.5
        %v1320 = vmul.f32 %v1288, 0.5
        %v1321 = vmul.f32 %v1289, 0.5
        %v1322 = vmul.f32 %v1258, 0.70710677
        %v1323 = vmul.f32 %v1259, 0.70710677
        %v1324 = vmul.f32 %v1260, 0.70710677
        %v1325 = vmul.f32 %v1261, 0.70710677
        %v1326 = vmul.f32 %v1262, 0.70710677
        %v1327 = vmul.f32 %v1263, 0.70710677
        %v1328 = vmul.f32 %v1264, 0.70710677
        %v1329 = vmul.f32 %v1265, 0.70710677
        %v1330 = vmul.f32 %v1266, 0.70710677
        %v1331 = vmul.f32 %v1267, 0.70710677
        %v1332 = vmul.f32 %v1268, 0.70710677
        %v1333 = vmul.f32 %v1269, 0.70710677
        %v1334 = vmul.f32 %v1270, 0.70710677
        %v1335 = vmul.f32 %v1271, 0.70710677
        %v1336 = vmul.f32 %v1272, 0.70710677
        %v1337 = vmul.f32 %v1273, 0.70710677
        %v1338 = vmul.f32 %v1274, 0.70710677
        %v1339 = vmul.f32 %v1275, 0.70710677
        %v1340 = vmul.f32 %v1276, 0.70710677
        %v1341 = vmul.f32 %v1277, 0.70710677
        %v1342 = vmul.f32 %v1278, 0.70710677
        %v1343 = vmul.f32 %v1279, 0.70710677
        %v1344 = vmul.f32 %v1280, 0.70710677
        %v1345 = vmul.f32 %v1281, 0.70710677
        %v1346 = vmul.f32 %v1282, 0.70710677
        %v1347 = vmul.f32 %v1283, 0.70710677
        %v1348 = vmul.f32 %v1284, 0.70710677
        %v1349 = vmul.f32 %v1285, 0.70710677
        %v1350 = vmul.f32 %v1286, 0.70710677
        %v1351 = vmul.f32 %v1287, 0.70710677
        %v1352 = vmul.f32 %v1288, 0.70710677
        %v1353 = vmul.f32 %v1289, 0.70710677
        %v1354 = verf.f32.pop %v1322
        %v1355 = verf.f32.pop %v1323
        %v1356 = verf.f32.pop %v1324
        %v1357 = verf.f32.pop %v1325
        %v1358 = verf.f32.pop %v1326
        %v1359 = verf.f32.pop %v1327
        %v1360 = verf.f32.pop %v1328
        %v1361 = verf.f32.pop %v1329
        %v1362 = verf.f32.pop %v1330
        %v1363 = verf.f32.pop %v1331
        %v1364 = verf.f32.pop %v1332
        %v1365 = verf.f32.pop %v1333
        %v1366 = verf.f32.pop %v1334
        %v1367 = verf.f32.pop %v1335
        %v1368 = verf.f32.pop %v1336
        %v1369 = verf.f32.pop %v1337
        %v1370 = verf.f32.pop %v1338
        %v1371 = verf.f32.pop %v1339
        %v1372 = verf.f32.pop %v1340
        %v1373 = verf.f32.pop %v1341
        %v1374 = verf.f32.pop %v1342
        %v1375 = verf.f32.pop %v1343
        %v1376 = verf.f32.pop %v1344
        %v1377 = verf.f32.pop %v1345
        %v1378 = verf.f32.pop %v1346
        %v1379 = verf.f32.pop %v1347
        %v1380 = verf.f32.pop %v1348
        %v1381 = verf.f32.pop %v1349
        %v1382 = verf.f32.pop %v1350
        %v1383 = verf.f32.pop %v1351
        %v1384 = verf.f32.pop %v1352
        %v1385 = verf.f32.pop %v1353
        %v1386 = vadd.f32 %v1354, 1.0
        %v1387 = vadd.f32 %v1355, 1.0
        %v1388 = vadd.f32 %v1356, 1.0
        %v1389 = vadd.f32 %v1357, 1.0
        %v1390 = vadd.f32 %v1358, 1.0
        %v1391 = vadd.f32 %v1359, 1.0
        %v1392 = vadd.f32 %v1360, 1.0
        %v1393 = vadd.f32 %v1361, 1.0
        %v1394 = vadd.f32 %v1362, 1.0
        %v1395 = vadd.f32 %v1363, 1.0
        %v1396 = vadd.f32 %v1364, 1.0
        %v1397 = vadd.f32 %v1365, 1.0
        %v1398 = vadd.f32 %v1366, 1.0
        %v1399 = vadd.f32 %v1367, 1.0
        %v1400 = vadd.f32 %v1368, 1.0
        %v1401 = vadd.f32 %v1369, 1.0
        %v1402 = vadd.f32 %v1370, 1.0
        %v1403 = vadd.f32 %v1371, 1.0
        %v1404 = vadd.f32 %v1372, 1.0
        %v1405 = vadd.f32 %v1373, 1.0
        %v1406 = vadd.f32 %v1374, 1.0
        %v1407 = vadd.f32 %v1375, 1.0
        %v1408 = vadd.f32 %v1376, 1.0
        %v1409 = vadd.f32 %v1377, 1.0
        %v1410 = vadd.f32 %v1378, 1.0
        %v1411 = vadd.f32 %v1379, 1.0
        %v1412 = vadd.f32 %v1380, 1.0
        %v1413 = vadd.f32 %v1381, 1.0
        %v1414 = vadd.f32 %v1382, 1.0
        %v1415 = vadd.f32 %v1383, 1.0
        %v1416 = vadd.f32 %v1384, 1.0
        %v1417 = vadd.f32 %v1385, 1.0
        %v1418 = vmul.f32 %v1290, %v1386
        %v1419 = vmul.f32 %v1291, %v1387
        %v1420 = vmul.f32 %v1292, %v1388
        %v1421 = vmul.f32 %v1293, %v1389
        %v1422 = vmul.f32 %v1294, %v1390
        %v1423 = vmul.f32 %v1295, %v1391
        %v1424 = vmul.f32 %v1296, %v1392
        %v1425 = vmul.f32 %v1297, %v1393
        %v1426 = vmul.f32 %v1298, %v1394
        %v1427 = vmul.f32 %v1299, %v1395
        %v1428 = vmul.f32 %v1300, %v1396
        %v1429 = vmul.f32 %v1301, %v1397
        %v1430 = vmul.f32 %v1302, %v1398
        %v1431 = vmul.f32 %v1303, %v1399
        %v1432 = vmul.f32 %v1304, %v1400
        %v1433 = vmul.f32 %v1305, %v1401
        %v1434 = vmul.f32 %v1306, %v1402
        %v1435 = vmul.f32 %v1307, %v1403
        %v1436 = vmul.f32 %v1308, %v1404
        %v1437 = vmul.f32 %v1309, %v1405
        %v1438 = vmul.f32 %v1310, %v1406
        %v1439 = vmul.f32 %v1311, %v1407
        %v1440 = vmul.f32 %v1312, %v1408
        %v1441 = vmul.f32 %v1313, %v1409
        %v1442 = vmul.f32 %v1314, %v1410
        %v1443 = vmul.f32 %v1315, %v1411
        %v1444 = vmul.f32 %v1316, %v1412
        %v1445 = vmul.f32 %v1317, %v1413
        %v1446 = vmul.f32 %v1318, %v1414
        %v1447 = vmul.f32 %v1319, %v1415
        %v1448 = vmul.f32 %v1320, %v1416
        %v1449 = vmul.f32 %v1321, %v1417
        %v1450 = vpack.c.bf16 %v1419, %v1418
        %v1451 = vpack.c.bf16 %v1421, %v1420
        %v1452 = vpack.c.bf16 %v1423, %v1422
        %v1453 = vpack.c.bf16 %v1425, %v1424
        %v1454 = vpack.c.bf16 %v1427, %v1426
        %v1455 = vpack.c.bf16 %v1429, %v1428
        %v1456 = vpack.c.bf16 %v1431, %v1430
        %v1457 = vpack.c.bf16 %v1433, %v1432
        %v1458 = vpack.c.bf16 %v1435, %v1434
        %v1459 = vpack.c.bf16 %v1437, %v1436
        %v1460 = vpack.c.bf16 %v1439, %v1438
        %v1461 = vpack.c.bf16 %v1441, %v1440
        %v1462 = vpack.c.bf16 %v1443, %v1442
        %v1463 = vpack.c.bf16 %v1445, %v1444
        %v1464 = vpack.c.bf16 %v1447, %v1446
        %v1465 = vpack.c.bf16 %v1449, %v1448
        %v1466 = vld [vmem:[#allocation7] sm:$0xff]
        %v1467 = vld [vmem:[#allocation7 + $0x8] sm:$0xff]
        %v1468 = vld [vmem:[#allocation7 + $0x10] sm:$0xff]
        %v1469 = vld [vmem:[#allocation7 + $0x18] sm:$0xff]
        %v1470 = vld [vmem:[#allocation7 + $0x20] sm:$0xff]
        %v1471 = vld [vmem:[#allocation7 + $0x28] sm:$0xff]
        %v1472 = vld [vmem:[#allocation7 + $0x30] sm:$0xff]
        %v1473 = vld [vmem:[#allocation7 + $0x38] sm:$0xff]
        %v1474 = vld [vmem:[#allocation7 + $0x40] sm:$0xff]
        %v1475 = vld [vmem:[#allocation7 + $0x48] sm:$0xff]
        %v1476 = vld [vmem:[#allocation7 + $0x50] sm:$0xff]
        %v1477 = vld [vmem:[#allocation7 + $0x58] sm:$0xff]
        %v1478 = vld [vmem:[#allocation7 + $0x60] sm:$0xff]
        %v1479 = vld [vmem:[#allocation7 + $0x68] sm:$0xff]
        %v1480 = vld [vmem:[#allocation7 + $0x70] sm:$0xff]
        %v1481 = vld [vmem:[#allocation7 + $0x78] sm:$0xff]
        %v1482 = vld [vmem:[%s6] sm:$0x3]
        %v1484 = vlaneseq
        %v1485 = vshrl.u32 %v1484, 7
        %v1486 = vsub.s32 0, %v1485
        %v1487 = vrot.slane %v1482, %v1486
        %v1488 = vlaneseq
        %v1489 = vshrl.u32 %v1488, 7
        %v1490 = vsub.s32 1, %v1489
        %v1491 = vrot.slane %v1482, %v1490
        %v1510 = vunpack.c.l.b16 %v1466
        %v1511 = vunpack.c.h.b16 %v1466
        %v1512 = vunpack.c.l.b16 %v1467
        %v1513 = vunpack.c.h.b16 %v1467
        %v1514 = vunpack.c.l.b16 %v1468
        %v1515 = vunpack.c.h.b16 %v1468
        %v1516 = vunpack.c.l.b16 %v1469
        %v1517 = vunpack.c.h.b16 %v1469
        %v1518 = vunpack.c.l.b16 %v1470
        %v1519 = vunpack.c.h.b16 %v1470
        %v1520 = vunpack.c.l.b16 %v1471
        %v1521 = vunpack.c.h.b16 %v1471
        %v1522 = vunpack.c.l.b16 %v1472
        %v1523 = vunpack.c.h.b16 %v1472
        %v1524 = vunpack.c.l.b16 %v1473
        %v1525 = vunpack.c.h.b16 %v1473
        %v1526 = vunpack.c.l.b16 %v1474
        %v1527 = vunpack.c.h.b16 %v1474
        %v1528 = vunpack.c.l.b16 %v1475
        %v1529 = vunpack.c.h.b16 %v1475
        %v1530 = vunpack.c.l.b16 %v1476
        %v1531 = vunpack.c.h.b16 %v1476
        %v1532 = vunpack.c.l.b16 %v1477
        %v1533 = vunpack.c.h.b16 %v1477
        %v1534 = vunpack.c.l.b16 %v1478
        %v1535 = vunpack.c.h.b16 %v1478
        %v1536 = vunpack.c.l.b16 %v1479
        %v1537 = vunpack.c.h.b16 %v1479
        %v1538 = vunpack.c.l.b16 %v1480
        %v1539 = vunpack.c.h.b16 %v1480
        %v1540 = vunpack.c.l.b16 %v1481
        %v1541 = vunpack.c.h.b16 %v1481
        %v1542 = vpack.c.b16 %v1512, %v1510
        %v1543 = vpack.c.b16 %v1513, %v1511
        %v1544 = vpack.c.b16 %v1516, %v1514
        %v1545 = vpack.c.b16 %v1517, %v1515
        %v1546 = vpack.c.b16 %v1520, %v1518
        %v1547 = vpack.c.b16 %v1521, %v1519
        %v1548 = vpack.c.b16 %v1524, %v1522
        %v1549 = vpack.c.b16 %v1525, %v1523
        %v1550 = vpack.c.b16 %v1528, %v1526
        %v1551 = vpack.c.b16 %v1529, %v1527
        %v1552 = vpack.c.b16 %v1532, %v1530
        %v1553 = vpack.c.b16 %v1533, %v1531
        %v1554 = vpack.c.b16 %v1536, %v1534
        %v1555 = vpack.c.b16 %v1537, %v1535
        %v1556 = vpack.c.b16 %v1540, %v1538
        %v1557 = vpack.c.b16 %v1541, %v1539
        %1574 = vmatprep.subr.bf16.mxu0 %v1557
        %1575 = vmatpush1.bf16.msra.mxu0 %v1556
        %1576 = vmatprep.subr.bf16.mxu0 %v1555
        %1577 = vmatpush1.bf16.msra.mxu0 %v1554
        %1578 = vmatprep.subr.bf16.mxu0 %v1553
        %1579 = vmatpush1.bf16.msra.mxu0 %v1552
        %1580 = vmatprep.subr.bf16.mxu0 %v1551
        %1581 = vmatpush1.bf16.msra.mxu0 %v1550
        %1582 = vmatprep.subr.bf16.mxu0 %v1549
        %1583 = vmatpush1.bf16.msra.mxu0 %v1548
        %1584 = vmatprep.subr.bf16.mxu0 %v1547
        %1585 = vmatpush1.bf16.msra.mxu0 %v1546
        %1586 = vmatprep.subr.bf16.mxu0 %v1545
        %1587 = vmatpush1.bf16.msra.mxu0 %v1544
        %1588 = vmatprep.subr.bf16.mxu0 %v1543
        %1589 = vmatpush1.bf16.msra.mxu0 %v1542
        %1590 = vmatprep.subr.bf16.mxu0 0
        %1591 = vmatpush2.bf16.msra.mxu0 0
        %1592 = vmatprep.subr.bf16.mxu0 0
        %1593 = vmatpush2.bf16.msra.mxu0 0
        %1594 = vmatprep.subr.bf16.mxu0 0
        %1595 = vmatpush2.bf16.msra.mxu0 0
        %1596 = vmatprep.subr.bf16.mxu0 0
        %1597 = vmatpush2.bf16.msra.mxu0 0
        %1598 = vmatprep.subr.bf16.mxu0 0
        %1599 = vmatpush2.bf16.msra.mxu0 0
        %1600 = vmatprep.subr.bf16.mxu0 0
        %1601 = vmatpush2.bf16.msra.mxu0 0
        %1602 = vmatprep.subr.bf16.mxu0 0
        %1603 = vmatpush2.bf16.msra.mxu0 0
        %1604 = vmatprep.subr.bf16.mxu0 0
        %1605 = vmatpush2.bf16.msra.mxu0 0
        %1606 = vmatprep.mubr.bf16.mxu0 0
        %1607 = vmatmul.mubr.bf16.gmra.mxu0 %v1450
        %v1608 = vpop.f32.mrf.mxu0
        %v1609 = vadd.f32 %v1487, %v1608
        %v1610 = vpop.f32.mrf.mxu0
        %v1611 = vadd.f32 %v1491, %v1610
        %v1612 = vpop.f32.mrf.mxu0
        %v1613 = vadd.f32 %v1487, %v1612
        %v1614 = vpop.f32.mrf.mxu0
        %v1615 = vadd.f32 %v1491, %v1614
        %1616 = vmatprep.mubr.bf16.mxu0 0
        %1617 = vmatmul.mubr.bf16.gmra.mxu0 %v1451
        %v1618 = vpop.f32.mrf.mxu0
        %v1619 = vadd.f32 %v1487, %v1618
        %v1620 = vpop.f32.mrf.mxu0
        %v1621 = vadd.f32 %v1491, %v1620
        %v1622 = vpop.f32.mrf.mxu0
        %v1623 = vadd.f32 %v1487, %v1622
        %v1624 = vpop.f32.mrf.mxu0
        %v1625 = vadd.f32 %v1491, %v1624
        %1626 = vmatprep.mubr.bf16.mxu0 0
        %1627 = vmatmul.mubr.bf16.gmra.mxu0 %v1452
        %v1628 = vpop.f32.mrf.mxu0
        %v1629 = vadd.f32 %v1487, %v1628
        %v1630 = vpop.f32.mrf.mxu0
        %v1631 = vadd.f32 %v1491, %v1630
        %v1632 = vpop.f32.mrf.mxu0
        %v1633 = vadd.f32 %v1487, %v1632
        %v1634 = vpop.f32.mrf.mxu0
        %v1635 = vadd.f32 %v1491, %v1634
        %1636 = vmatprep.mubr.bf16.mxu0 0
        %1637 = vmatmul.mubr.bf16.gmra.mxu0 %v1453
        %v1638 = vpop.f32.mrf.mxu0
        %v1639 = vadd.f32 %v1487, %v1638
        %v1640 = vpop.f32.mrf.mxu0
        %v1641 = vadd.f32 %v1491, %v1640
        %v1642 = vpop.f32.mrf.mxu0
        %v1643 = vadd.f32 %v1487, %v1642
        %v1644 = vpop.f32.mrf.mxu0
        %v1645 = vadd.f32 %v1491, %v1644
        %1646 = vmatprep.mubr.bf16.mxu0 0
        %1647 = vmatmul.mubr.bf16.gmra.mxu0 %v1454
        %v1648 = vpop.f32.mrf.mxu0
        %v1649 = vadd.f32 %v1487, %v1648
        %v1650 = vpop.f32.mrf.mxu0
        %v1651 = vadd.f32 %v1491, %v1650
        %v1652 = vpop.f32.mrf.mxu0
        %v1653 = vadd.f32 %v1487, %v1652
        %v1654 = vpop.f32.mrf.mxu0
        %v1655 = vadd.f32 %v1491, %v1654
        %1656 = vmatprep.mubr.bf16.mxu0 0
        %1657 = vmatmul.mubr.bf16.gmra.mxu0 %v1455
        %v1658 = vpop.f32.mrf.mxu0
        %v1659 = vadd.f32 %v1487, %v1658
        %v1660 = vpop.f32.mrf.mxu0
        %v1661 = vadd.f32 %v1491, %v1660
        %v1662 = vpop.f32.mrf.mxu0
        %v1663 = vadd.f32 %v1487, %v1662
        %v1664 = vpop.f32.mrf.mxu0
        %v1665 = vadd.f32 %v1491, %v1664
        %1666 = vmatprep.mubr.bf16.mxu0 0
        %1667 = vmatmul.mubr.bf16.gmra.mxu0 %v1456
        %v1668 = vpop.f32.mrf.mxu0
        %v1669 = vadd.f32 %v1487, %v1668
        %v1670 = vpop.f32.mrf.mxu0
        %v1671 = vadd.f32 %v1491, %v1670
        %v1672 = vpop.f32.mrf.mxu0
        %v1673 = vadd.f32 %v1487, %v1672
        %v1674 = vpop.f32.mrf.mxu0
        %v1675 = vadd.f32 %v1491, %v1674
        %1676 = vmatprep.mubr.bf16.mxu0 0
        %1677 = vmatmul.mubr.bf16.gmra.mxu0 %v1457
        %v1678 = vpop.f32.mrf.mxu0
        %v1679 = vadd.f32 %v1487, %v1678
        %v1680 = vpop.f32.mrf.mxu0
        %v1681 = vadd.f32 %v1491, %v1680
        %v1682 = vpop.f32.mrf.mxu0
        %v1683 = vadd.f32 %v1487, %v1682
        %v1684 = vpop.f32.mrf.mxu0
        %v1685 = vadd.f32 %v1491, %v1684
        %1686 = vmatprep.mubr.bf16.mxu0 0
        %1687 = vmatmul.mubr.bf16.gmra.mxu0 %v1458
        %v1688 = vpop.f32.mrf.mxu0
        %v1689 = vadd.f32 %v1487, %v1688
        %v1690 = vpop.f32.mrf.mxu0
        %v1691 = vadd.f32 %v1491, %v1690
        %v1692 = vpop.f32.mrf.mxu0
        %v1693 = vadd.f32 %v1487, %v1692
        %v1694 = vpop.f32.mrf.mxu0
        %v1695 = vadd.f32 %v1491, %v1694
        %1696 = vmatprep.mubr.bf16.mxu0 0
        %1697 = vmatmul.mubr.bf16.gmra.mxu0 %v1459
        %v1698 = vpop.f32.mrf.mxu0
        %v1699 = vadd.f32 %v1487, %v1698
        %v1700 = vpop.f32.mrf.mxu0
        %v1701 = vadd.f32 %v1491, %v1700
        %v1702 = vpop.f32.mrf.mxu0
        %v1703 = vadd.f32 %v1487, %v1702
        %v1704 = vpop.f32.mrf.mxu0
        %v1705 = vadd.f32 %v1491, %v1704
        %1706 = vmatprep.mubr.bf16.mxu0 0
        %1707 = vmatmul.mubr.bf16.gmra.mxu0 %v1460
        %v1708 = vpop.f32.mrf.mxu0
        %v1709 = vadd.f32 %v1487, %v1708
        %v1710 = vpop.f32.mrf.mxu0
        %v1711 = vadd.f32 %v1491, %v1710
        %v1712 = vpop.f32.mrf.mxu0
        %v1713 = vadd.f32 %v1487, %v1712
        %v1714 = vpop.f32.mrf.mxu0
        %v1715 = vadd.f32 %v1491, %v1714
        %1716 = vmatprep.mubr.bf16.mxu0 0
        %1717 = vmatmul.mubr.bf16.gmra.mxu0 %v1461
        %v1718 = vpop.f32.mrf.mxu0
        %v1719 = vadd.f32 %v1487, %v1718
        %v1720 = vpop.f32.mrf.mxu0
        %v1721 = vadd.f32 %v1491, %v1720
        %v1722 = vpop.f32.mrf.mxu0
        %v1723 = vadd.f32 %v1487, %v1722
        %v1724 = vpop.f32.mrf.mxu0
        %v1725 = vadd.f32 %v1491, %v1724
        %1726 = vmatprep.mubr.bf16.mxu0 0
        %1727 = vmatmul.mubr.bf16.gmra.mxu0 %v1462
        %v1728 = vpop.f32.mrf.mxu0
        %v1729 = vadd.f32 %v1487, %v1728
        %v1730 = vpop.f32.mrf.mxu0
        %v1731 = vadd.f32 %v1491, %v1730
        %v1732 = vpop.f32.mrf.mxu0
        %v1733 = vadd.f32 %v1487, %v1732
        %v1734 = vpop.f32.mrf.mxu0
        %v1735 = vadd.f32 %v1491, %v1734
        %1736 = vmatprep.mubr.bf16.mxu0 0
        %1737 = vmatmul.mubr.bf16.gmra.mxu0 %v1463
        %v1738 = vpop.f32.mrf.mxu0
        %v1739 = vadd.f32 %v1487, %v1738
        %v1740 = vpop.f32.mrf.mxu0
        %v1741 = vadd.f32 %v1491, %v1740
        %v1742 = vpop.f32.mrf.mxu0
        %v1743 = vadd.f32 %v1487, %v1742
        %v1744 = vpop.f32.mrf.mxu0
        %v1745 = vadd.f32 %v1491, %v1744
        %1746 = vmatprep.mubr.bf16.mxu0 0
        %1747 = vmatmul.mubr.bf16.gmra.mxu0 %v1464
        %v1748 = vpop.f32.mrf.mxu0
        %v1749 = vadd.f32 %v1487, %v1748
        %v1750 = vpop.f32.mrf.mxu0
        %v1751 = vadd.f32 %v1491, %v1750
        %v1752 = vpop.f32.mrf.mxu0
        %v1753 = vadd.f32 %v1487, %v1752
        %v1754 = vpop.f32.mrf.mxu0
        %v1755 = vadd.f32 %v1491, %v1754
        %1756 = vmatprep.mubr.bf16.mxu0 0
        %1757 = vmatmul.mubr.bf16.gmra.mxu0 %v1465
        %v1758 = vpop.f32.mrf.mxu0
        %v1759 = vadd.f32 %v1487, %v1758
        %v1760 = vpop.f32.mrf.mxu0
        %v1761 = vadd.f32 %v1491, %v1760
        %v1762 = vpop.f32.mrf.mxu0
        %v1763 = vadd.f32 %v1487, %v1762
        %v1764 = vpop.f32.mrf.mxu0
        %v1765 = vadd.f32 %v1491, %v1764
        %1766 = vdwg.mxu0
        %v1767 = vmul.f32 %v1609, 0.5
        %v1768 = vmul.f32 %v1611, 0.5
        %v1769 = vmul.f32 %v1613, 0.5
        %v1770 = vmul.f32 %v1615, 0.5
        %v1771 = vmul.f32 %v1619, 0.5
        %v1772 = vmul.f32 %v1621, 0.5
        %v1773 = vmul.f32 %v1623, 0.5
        %v1774 = vmul.f32 %v1625, 0.5
        %v1775 = vmul.f32 %v1629, 0.5
        %v1776 = vmul.f32 %v1631, 0.5
        %v1777 = vmul.f32 %v1633, 0.5
        %v1778 = vmul.f32 %v1635, 0.5
        %v1779 = vmul.f32 %v1639, 0.5
        %v1780 = vmul.f32 %v1641, 0.5
        %v1781 = vmul.f32 %v1643, 0.5
        %v1782 = vmul.f32 %v1645, 0.5
        %v1783 = vmul.f32 %v1649, 0.5
        %v1784 = vmul.f32 %v1651, 0.5
        %v1785 = vmul.f32 %v1653, 0.5
        %v1786 = vmul.f32 %v1655, 0.5
        %v1787 = vmul.f32 %v1659, 0.5
        %v1788 = vmul.f32 %v1661, 0.5
        %v1789 = vmul.f32 %v1663, 0.5
        %v1790 = vmul.f32 %v1665, 0.5
        %v1791 = vmul.f32 %v1669, 0.5
        %v1792 = vmul.f32 %v1671, 0.5
        %v1793 = vmul.f32 %v1673, 0.5
        %v1794 = vmul.f32 %v1675, 0.5
        %v1795 = vmul.f32 %v1679, 0.5
        %v1796 = vmul.f32 %v1681, 0.5
        %v1797 = vmul.f32 %v1683, 0.5
        %v1798 = vmul.f32 %v1685, 0.5
        %v1799 = vmul.f32 %v1689, 0.5
        %v1800 = vmul.f32 %v1691, 0.5
        %v1801 = vmul.f32 %v1693, 0.5
        %v1802 = vmul.f32 %v1695, 0.5
        %v1803 = vmul.f32 %v1699, 0.5
        %v1804 = vmul.f32 %v1701, 0.5
        %v1805 = vmul.f32 %v1703, 0.5
        %v1806 = vmul.f32 %v1705, 0.5
        %v1807 = vmul.f32 %v1709, 0.5
        %v1808 = vmul.f32 %v1711, 0.5
        %v1809 = vmul.f32 %v1713, 0.5
        %v1810 = vmul.f32 %v1715, 0.5
        %v1811 = vmul.f32 %v1719, 0.5
        %v1812 = vmul.f32 %v1721, 0.5
        %v1813 = vmul.f32 %v1723, 0.5
        %v1814 = vmul.f32 %v1725, 0.5
        %v1815 = vmul.f32 %v1729, 0.5
        %v1816 = vmul.f32 %v1731, 0.5
        %v1817 = vmul.f32 %v1733, 0.5
        %v1818 = vmul.f32 %v1735, 0.5
        %v1819 = vmul.f32 %v1739, 0.5
        %v1820 = vmul.f32 %v1741, 0.5
        %v1821 = vmul.f32 %v1743, 0.5
        %v1822 = vmul.f32 %v1745, 0.5
        %v1823 = vmul.f32 %v1749, 0.5
        %v1824 = vmul.f32 %v1751, 0.5
        %v1825 = vmul.f32 %v1753, 0.5
        %v1826 = vmul.f32 %v1755, 0.5
        %v1827 = vmul.f32 %v1759, 0.5
        %v1828 = vmul.f32 %v1761, 0.5
        %v1829 = vmul.f32 %v1763, 0.5
        %v1830 = vmul.f32 %v1765, 0.5
        %v1831 = vmul.f32 %v1609, 0.70710677
        %v1832 = vmul.f32 %v1611, 0.70710677
        %v1833 = vmul.f32 %v1613, 0.70710677
        %v1834 = vmul.f32 %v1615, 0.70710677
        %v1835 = vmul.f32 %v1619, 0.70710677
        %v1836 = vmul.f32 %v1621, 0.70710677
        %v1837 = vmul.f32 %v1623, 0.70710677
        %v1838 = vmul.f32 %v1625, 0.70710677
        %v1839 = vmul.f32 %v1629, 0.70710677
        %v1840 = vmul.f32 %v1631, 0.70710677
        %v1841 = vmul.f32 %v1633, 0.70710677
        %v1842 = vmul.f32 %v1635, 0.70710677
        %v1843 = vmul.f32 %v1639, 0.70710677
        %v1844 = vmul.f32 %v1641, 0.70710677
        %v1845 = vmul.f32 %v1643, 0.70710677
        %v1846 = vmul.f32 %v1645, 0.70710677
        %v1847 = vmul.f32 %v1649, 0.70710677
        %v1848 = vmul.f32 %v1651, 0.70710677
        %v1849 = vmul.f32 %v1653, 0.70710677
        %v1850 = vmul.f32 %v1655, 0.70710677
        %v1851 = vmul.f32 %v1659, 0.70710677
        %v1852 = vmul.f32 %v1661, 0.70710677
        %v1853 = vmul.f32 %v1663, 0.70710677
        %v1854 = vmul.f32 %v1665, 0.70710677
        %v1855 = vmul.f32 %v1669, 0.70710677
        %v1856 = vmul.f32 %v1671, 0.70710677
        %v1857 = vmul.f32 %v1673, 0.70710677
        %v1858 = vmul.f32 %v1675, 0.70710677
        %v1859 = vmul.f32 %v1679, 0.70710677
        %v1860 = vmul.f32 %v1681, 0.70710677
        %v1861 = vmul.f32 %v1683, 0.70710677
        %v1862 = vmul.f32 %v1685, 0.70710677
        %v1863 = vmul.f32 %v1689, 0.70710677
        %v1864 = vmul.f32 %v1691, 0.70710677
        %v1865 = vmul.f32 %v1693, 0.70710677
        %v1866 = vmul.f32 %v1695, 0.70710677
        %v1867 = vmul.f32 %v1699, 0.70710677
        %v1868 = vmul.f32 %v1701, 0.70710677
        %v1869 = vmul.f32 %v1703, 0.70710677
        %v1870 = vmul.f32 %v1705, 0.70710677
        %v1871 = vmul.f32 %v1709, 0.70710677
        %v1872 = vmul.f32 %v1711, 0.70710677
        %v1873 = vmul.f32 %v1713, 0.70710677
        %v1874 = vmul.f32 %v1715, 0.70710677
        %v1875 = vmul.f32 %v1719, 0.70710677
        %v1876 = vmul.f32 %v1721, 0.70710677
        %v1877 = vmul.f32 %v1723, 0.70710677
        %v1878 = vmul.f32 %v1725, 0.70710677
        %v1879 = vmul.f32 %v1729, 0.70710677
        %v1880 = vmul.f32 %v1731, 0.70710677
        %v1881 = vmul.f32 %v1733, 0.70710677
        %v1882 = vmul.f32 %v1735, 0.70710677
        %v1883 = vmul.f32 %v1739, 0.70710677
        %v1884 = vmul.f32 %v1741, 0.70710677
        %v1885 = vmul.f32 %v1743, 0.70710677
        %v1886 = vmul.f32 %v1745, 0.70710677
        %v1887 = vmul.f32 %v1749, 0.70710677
        %v1888 = vmul.f32 %v1751, 0.70710677
        %v1889 = vmul.f32 %v1753, 0.70710677
        %v1890 = vmul.f32 %v1755, 0.70710677
        %v1891 = vmul.f32 %v1759, 0.70710677
        %v1892 = vmul.f32 %v1761, 0.70710677
        %v1893 = vmul.f32 %v1763, 0.70710677
        %v1894 = vmul.f32 %v1765, 0.70710677
        %v1895 = verf.f32.pop %v1831
        %v1896 = verf.f32.pop %v1832
        %v1897 = verf.f32.pop %v1833
        %v1898 = verf.f32.pop %v1834
        %v1899 = verf.f32.pop %v1835
        %v1900 = verf.f32.pop %v1836
        %v1901 = verf.f32.pop %v1837
        %v1902 = verf.f32.pop %v1838
        %v1903 = verf.f32.pop %v1839
        %v1904 = verf.f32.pop %v1840
        %v1905 = verf.f32.pop %v1841
        %v1906 = verf.f32.pop %v1842
        %v1907 = verf.f32.pop %v1843
        %v1908 = verf.f32.pop %v1844
        %v1909 = verf.f32.pop %v1845
        %v1910 = verf.f32.pop %v1846
        %v1911 = verf.f32.pop %v1847
        %v1912 = verf.f32.pop %v1848
        %v1913 = verf.f32.pop %v1849
        %v1914 = verf.f32.pop %v1850
        %v1915 = verf.f32.pop %v1851
        %v1916 = verf.f32.pop %v1852
        %v1917 = verf.f32.pop %v1853
        %v1918 = verf.f32.pop %v1854
        %v1919 = verf.f32.pop %v1855
        %v1920 = verf.f32.pop %v1856
        %v1921 = verf.f32.pop %v1857
        %v1922 = verf.f32.pop %v1858
        %v1923 = verf.f32.pop %v1859
        %v1924 = verf.f32.pop %v1860
        %v1925 = verf.f32.pop %v1861
        %v1926 = verf.f32.pop %v1862
        %v1927 = verf.f32.pop %v1863
        %v1928 = verf.f32.pop %v1864
        %v1929 = verf.f32.pop %v1865
        %v1930 = verf.f32.pop %v1866
        %v1931 = verf.f32.pop %v1867
        %v1932 = verf.f32.pop %v1868
        %v1933 = verf.f32.pop %v1869
        %v1934 = verf.f32.pop %v1870
        %v1935 = verf.f32.pop %v1871
        %v1936 = verf.f32.pop %v1872
        %v1937 = verf.f32.pop %v1873
        %v1938 = verf.f32.pop %v1874
        %v1939 = verf.f32.pop %v1875
        %v1940 = verf.f32.pop %v1876
        %v1941 = verf.f32.pop %v1877
        %v1942 = verf.f32.pop %v1878
        %v1943 = verf.f32.pop %v1879
        %v1944 = verf.f32.pop %v1880
        %v1945 = verf.f32.pop %v1881
        %v1946 = verf.f32.pop %v1882
        %v1947 = verf.f32.pop %v1883
        %v1948 = verf.f32.pop %v1884
        %v1949 = verf.f32.pop %v1885
        %v1950 = verf.f32.pop %v1886
        %v1951 = verf.f32.pop %v1887
        %v1952 = verf.f32.pop %v1888
        %v1953 = verf.f32.pop %v1889
        %v1954 = verf.f32.pop %v1890
        %v1955 = verf.f32.pop %v1891
        %v1956 = verf.f32.pop %v1892
        %v1957 = verf.f32.pop %v1893
        %v1958 = verf.f32.pop %v1894
        %v1959 = vadd.f32 %v1895, 1.0
        %v1960 = vadd.f32 %v1896, 1.0
        %v1961 = vadd.f32 %v1897, 1.0
        %v1962 = vadd.f32 %v1898, 1.0
        %v1963 = vadd.f32 %v1899, 1.0
        %v1964 = vadd.f32 %v1900, 1.0
        %v1965 = vadd.f32 %v1901, 1.0
        %v1966 = vadd.f32 %v1902, 1.0
        %v1967 = vadd.f32 %v1903, 1.0
        %v1968 = vadd.f32 %v1904, 1.0
        %v1969 = vadd.f32 %v1905, 1.0
        %v1970 = vadd.f32 %v1906, 1.0
        %v1971 = vadd.f32 %v1907, 1.0
        %v1972 = vadd.f32 %v1908, 1.0
        %v1973 = vadd.f32 %v1909, 1.0
        %v1974 = vadd.f32 %v1910, 1.0
        %v1975 = vadd.f32 %v1911, 1.0
        %v1976 = vadd.f32 %v1912, 1.0
        %v1977 = vadd.f32 %v1913, 1.0
        %v1978 = vadd.f32 %v1914, 1.0
        %v1979 = vadd.f32 %v1915, 1.0
        %v1980 = vadd.f32 %v1916, 1.0
        %v1981 = vadd.f32 %v1917, 1.0
        %v1982 = vadd.f32 %v1918, 1.0
        %v1983 = vadd.f32 %v1919, 1.0
        %v1984 = vadd.f32 %v1920, 1.0
        %v1985 = vadd.f32 %v1921, 1.0
        %v1986 = vadd.f32 %v1922, 1.0
        %v1987 = vadd.f32 %v1923, 1.0
        %v1988 = vadd.f32 %v1924, 1.0
        %v1989 = vadd.f32 %v1925, 1.0
        %v1990 = vadd.f32 %v1926, 1.0
        %v1991 = vadd.f32 %v1927, 1.0
        %v1992 = vadd.f32 %v1928, 1.0
        %v1993 = vadd.f32 %v1929, 1.0
        %v1994 = vadd.f32 %v1930, 1.0
        %v1995 = vadd.f32 %v1931, 1.0
        %v1996 = vadd.f32 %v1932, 1.0
        %v1997 = vadd.f32 %v1933, 1.0
        %v1998 = vadd.f32 %v1934, 1.0
        %v1999 = vadd.f32 %v1935, 1.0
        %v2000 = vadd.f32 %v1936, 1.0
        %v2001 = vadd.f32 %v1937, 1.0
        %v2002 = vadd.f32 %v1938, 1.0
        %v2003 = vadd.f32 %v1939, 1.0
        %v2004 = vadd.f32 %v1940, 1.0
        %v2005 = vadd.f32 %v1941, 1.0
        %v2006 = vadd.f32 %v1942, 1.0
        %v2007 = vadd.f32 %v1943, 1.0
        %v2008 = vadd.f32 %v1944, 1.0
        %v2009 = vadd.f32 %v1945, 1.0
        %v2010 = vadd.f32 %v1946, 1.0
        %v2011 = vadd.f32 %v1947, 1.0
        %v2012 = vadd.f32 %v1948, 1.0
        %v2013 = vadd.f32 %v1949, 1.0
        %v2014 = vadd.f32 %v1950, 1.0
        %v2015 = vadd.f32 %v1951, 1.0
        %v2016 = vadd.f32 %v1952, 1.0
        %v2017 = vadd.f32 %v1953, 1.0
        %v2018 = vadd.f32 %v1954, 1.0
        %v2019 = vadd.f32 %v1955, 1.0
        %v2020 = vadd.f32 %v1956, 1.0
        %v2021 = vadd.f32 %v1957, 1.0
        %v2022 = vadd.f32 %v1958, 1.0
        %v2023 = vmul.f32 %v1767, %v1959
        %v2024 = vmul.f32 %v1768, %v1960
        %v2025 = vmul.f32 %v1769, %v1961
        %v2026 = vmul.f32 %v1770, %v1962
        %v2027 = vmul.f32 %v1771, %v1963
        %v2028 = vmul.f32 %v1772, %v1964
        %v2029 = vmul.f32 %v1773, %v1965
        %v2030 = vmul.f32 %v1774, %v1966
        %v2031 = vmul.f32 %v1775, %v1967
        %v2032 = vmul.f32 %v1776, %v1968
        %v2033 = vmul.f32 %v1777, %v1969
        %v2034 = vmul.f32 %v1778, %v1970
        %v2035 = vmul.f32 %v1779, %v1971
        %v2036 = vmul.f32 %v1780, %v1972
        %v2037 = vmul.f32 %v1781, %v1973
        %v2038 = vmul.f32 %v1782, %v1974
        %v2039 = vmul.f32 %v1783, %v1975
        %v2040 = vmul.f32 %v1784, %v1976
        %v2041 = vmul.f32 %v1785, %v1977
        %v2042 = vmul.f32 %v1786, %v1978
        %v2043 = vmul.f32 %v1787, %v1979
        %v2044 = vmul.f32 %v1788, %v1980
        %v2045 = vmul.f32 %v1789, %v1981
        %v2046 = vmul.f32 %v1790, %v1982
        %v2047 = vmul.f32 %v1791, %v1983
        %v2048 = vmul.f32 %v1792, %v1984
        %v2049 = vmul.f32 %v1793, %v1985
        %v2050 = vmul.f32 %v1794, %v1986
        %v2051 = vmul.f32 %v1795, %v1987
        %v2052 = vmul.f32 %v1796, %v1988
        %v2053 = vmul.f32 %v1797, %v1989
        %v2054 = vmul.f32 %v1798, %v1990
        %v2055 = vmul.f32 %v1799, %v1991
        %v2056 = vmul.f32 %v1800, %v1992
        %v2057 = vmul.f32 %v1801, %v1993
        %v2058 = vmul.f32 %v1802, %v1994
        %v2059 = vmul.f32 %v1803, %v1995
        %v2060 = vmul.f32 %v1804, %v1996
        %v2061 = vmul.f32 %v1805, %v1997
        %v2062 = vmul.f32 %v1806, %v1998
        %v2063 = vmul.f32 %v1807, %v1999
        %v2064 = vmul.f32 %v1808, %v2000
        %v2065 = vmul.f32 %v1809, %v2001
        %v2066 = vmul.f32 %v1810, %v2002
        %v2067 = vmul.f32 %v1811, %v2003
        %v2068 = vmul.f32 %v1812, %v2004
        %v2069 = vmul.f32 %v1813, %v2005
        %v2070 = vmul.f32 %v1814, %v2006
        %v2071 = vmul.f32 %v1815, %v2007
        %v2072 = vmul.f32 %v1816, %v2008
        %v2073 = vmul.f32 %v1817, %v2009
        %v2074 = vmul.f32 %v1818, %v2010
        %v2075 = vmul.f32 %v1819, %v2011
        %v2076 = vmul.f32 %v1820, %v2012
        %v2077 = vmul.f32 %v1821, %v2013
        %v2078 = vmul.f32 %v1822, %v2014
        %v2079 = vmul.f32 %v1823, %v2015
        %v2080 = vmul.f32 %v1824, %v2016
        %v2081 = vmul.f32 %v1825, %v2017
        %v2082 = vmul.f32 %v1826, %v2018
        %v2083 = vmul.f32 %v1827, %v2019
        %v2084 = vmul.f32 %v1828, %v2020
        %v2085 = vmul.f32 %v1829, %v2021
        %v2086 = vmul.f32 %v1830, %v2022
        %v2087 = vpack.c.bf16 %v2025, %v2023
        %v2088 = vpack.c.bf16 %v2026, %v2024
        %v2089 = vpack.c.bf16 %v2029, %v2027
        %v2090 = vpack.c.bf16 %v2030, %v2028
        %v2091 = vpack.c.bf16 %v2033, %v2031
        %v2092 = vpack.c.bf16 %v2034, %v2032
        %v2093 = vpack.c.bf16 %v2037, %v2035
        %v2094 = vpack.c.bf16 %v2038, %v2036
        %v2095 = vpack.c.bf16 %v2041, %v2039
        %v2096 = vpack.c.bf16 %v2042, %v2040
        %v2097 = vpack.c.bf16 %v2045, %v2043
        %v2098 = vpack.c.bf16 %v2046, %v2044
        %v2099 = vpack.c.bf16 %v2049, %v2047
        %v2100 = vpack.c.bf16 %v2050, %v2048
        %v2101 = vpack.c.bf16 %v2053, %v2051
        %v2102 = vpack.c.bf16 %v2054, %v2052
        %v2103 = vpack.c.bf16 %v2057, %v2055
        %v2104 = vpack.c.bf16 %v2058, %v2056
        %v2105 = vpack.c.bf16 %v2061, %v2059
        %v2106 = vpack.c.bf16 %v2062, %v2060
        %v2107 = vpack.c.bf16 %v2065, %v2063
        %v2108 = vpack.c.bf16 %v2066, %v2064
        %v2109 = vpack.c.bf16 %v2069, %v2067
        %v2110 = vpack.c.bf16 %v2070, %v2068
        %v2111 = vpack.c.bf16 %v2073, %v2071
        %v2112 = vpack.c.bf16 %v2074, %v2072
        %v2113 = vpack.c.bf16 %v2077, %v2075
        %v2114 = vpack.c.bf16 %v2078, %v2076
        %v2115 = vpack.c.bf16 %v2081, %v2079
        %v2116 = vpack.c.bf16 %v2082, %v2080
        %v2117 = vpack.c.bf16 %v2085, %v2083
        %v2118 = vpack.c.bf16 %v2086, %v2084
        %v2119 = vld [vmem:[%s7] sm:$0xff]
        %v2120 = vld [vmem:[%s7 + $0x8] sm:$0xff]
        %v2121 = vld [vmem:[%s7 + $0x10] sm:$0xff]
        %v2122 = vld [vmem:[%s7 + $0x18] sm:$0xff]
        %v2123 = vld [vmem:[%s7 + $0x20] sm:$0xff]
        %v2124 = vld [vmem:[%s7 + $0x28] sm:$0xff]
        %v2125 = vld [vmem:[%s7 + $0x30] sm:$0xff]
        %v2126 = vld [vmem:[%s7 + $0x38] sm:$0xff]
        %v2127 = vld [vmem:[%s7 + $0x40] sm:$0xff]
        %v2128 = vld [vmem:[%s7 + $0x48] sm:$0xff]
        %v2129 = vld [vmem:[%s7 + $0x50] sm:$0xff]
        %v2130 = vld [vmem:[%s7 + $0x58] sm:$0xff]
        %v2131 = vld [vmem:[%s7 + $0x60] sm:$0xff]
        %v2132 = vld [vmem:[%s7 + $0x68] sm:$0xff]
        %v2133 = vld [vmem:[%s7 + $0x70] sm:$0xff]
        %v2134 = vld [vmem:[%s7 + $0x78] sm:$0xff]
        %v2135 = vld [vmem:[%s7 + $0x80] sm:$0xff]
        %v2136 = vld [vmem:[%s7 + $0x88] sm:$0xff]
        %v2137 = vld [vmem:[%s7 + $0x90] sm:$0xff]
        %v2138 = vld [vmem:[%s7 + $0x98] sm:$0xff]
        %v2139 = vld [vmem:[%s7 + $0xa0] sm:$0xff]
        %v2140 = vld [vmem:[%s7 + $0xa8] sm:$0xff]
        %v2141 = vld [vmem:[%s7 + $0xb0] sm:$0xff]
        %v2142 = vld [vmem:[%s7 + $0xb8] sm:$0xff]
        %v2143 = vld [vmem:[%s7 + $0xc0] sm:$0xff]
        %v2144 = vld [vmem:[%s7 + $0xc8] sm:$0xff]
        %v2145 = vld [vmem:[%s7 + $0xd0] sm:$0xff]
        %v2146 = vld [vmem:[%s7 + $0xd8] sm:$0xff]
        %v2147 = vld [vmem:[%s7 + $0xe0] sm:$0xff]
        %v2148 = vld [vmem:[%s7 + $0xe8] sm:$0xff]
        %v2149 = vld [vmem:[%s7 + $0xf0] sm:$0xff]
        %v2150 = vld [vmem:[%s7 + $0xf8] sm:$0xff]
        %v2151 = vld [vmem:[%s8] sm:$0x3]
        %v2153 = vlaneseq
        %v2154 = vshrl.u32 %v2153, 7
        %v2155 = vsub.s32 0, %v2154
        %v2156 = vrot.slane %v2151, %v2155
        %v2157 = vlaneseq
        %v2158 = vshrl.u32 %v2157, 7
        %v2159 = vsub.s32 1, %v2158
        %v2160 = vrot.slane %v2151, %v2159
        %v2195 = vunpack.c.l.b16 %v2119
        %v2196 = vunpack.c.h.b16 %v2119
        %v2197 = vunpack.c.l.b16 %v2120
        %v2198 = vunpack.c.h.b16 %v2120
        %v2199 = vunpack.c.l.b16 %v2121
        %v2200 = vunpack.c.h.b16 %v2121
        %v2201 = vunpack.c.l.b16 %v2122
        %v2202 = vunpack.c.h.b16 %v2122
        %v2203 = vunpack.c.l.b16 %v2123
        %v2204 = vunpack.c.h.b16 %v2123
        %v2205 = vunpack.c.l.b16 %v2124
        %v2206 = vunpack.c.h.b16 %v2124
        %v2207 = vunpack.c.l.b16 %v2125
        %v2208 = vunpack.c.h.b16 %v2125
        %v2209 = vunpack.c.l.b16 %v2126
        %v2210 = vunpack.c.h.b16 %v2126
        %v2211 = vunpack.c.l.b16 %v2127
        %v2212 = vunpack.c.h.b16 %v2127
        %v2213 = vunpack.c.l.b16 %v2128
        %v2214 = vunpack.c.h.b16 %v2128
        %v2215 = vunpack.c.l.b16 %v2129
        %v2216 = vunpack.c.h.b16 %v2129
        %v2217 = vunpack.c.l.b16 %v2130
        %v2218 = vunpack.c.h.b16 %v2130
        %v2219 = vunpack.c.l.b16 %v2131
        %v2220 = vunpack.c.h.b16 %v2131
        %v2221 = vunpack.c.l.b16 %v2132
        %v2222 = vunpack.c.h.b16 %v2132
        %v2223 = vunpack.c.l.b16 %v2133
        %v2224 = vunpack.c.h.b16 %v2133
        %v2225 = vunpack.c.l.b16 %v2134
        %v2226 = vunpack.c.h.b16 %v2134
        %v2227 = vunpack.c.l.b16 %v2135
        %v2228 = vunpack.c.h.b16 %v2135
        %v2229 = vunpack.c.l.b16 %v2136
        %v2230 = vunpack.c.h.b16 %v2136
        %v2231 = vunpack.c.l.b16 %v2137
        %v2232 = vunpack.c.h.b16 %v2137
        %v2233 = vunpack.c.l.b16 %v2138
        %v2234 = vunpack.c.h.b16 %v2138
        %v2235 = vunpack.c.l.b16 %v2139
        %v2236 = vunpack.c.h.b16 %v2139
        %v2237 = vunpack.c.l.b16 %v2140
        %v2238 = vunpack.c.h.b16 %v2140
        %v2239 = vunpack.c.l.b16 %v2141
        %v2240 = vunpack.c.h.b16 %v2141
        %v2241 = vunpack.c.l.b16 %v2142
        %v2242 = vunpack.c.h.b16 %v2142
        %v2243 = vunpack.c.l.b16 %v2143
        %v2244 = vunpack.c.h.b16 %v2143
        %v2245 = vunpack.c.l.b16 %v2144
        %v2246 = vunpack.c.h.b16 %v2144
        %v2247 = vunpack.c.l.b16 %v2145
        %v2248 = vunpack.c.h.b16 %v2145
        %v2249 = vunpack.c.l.b16 %v2146
        %v2250 = vunpack.c.h.b16 %v2146
        %v2251 = vunpack.c.l.b16 %v2147
        %v2252 = vunpack.c.h.b16 %v2147
        %v2253 = vunpack.c.l.b16 %v2148
        %v2254 = vunpack.c.h.b16 %v2148
        %v2255 = vunpack.c.l.b16 %v2149
        %v2256 = vunpack.c.h.b16 %v2149
        %v2257 = vunpack.c.l.b16 %v2150
        %v2258 = vunpack.c.h.b16 %v2150
        %v2259 = vpack.c.b16 %v2197, %v2195
        %v2260 = vpack.c.b16 %v2198, %v2196
        %v2261 = vpack.c.b16 %v2201, %v2199
        %v2262 = vpack.c.b16 %v2202, %v2200
        %v2263 = vpack.c.b16 %v2205, %v2203
        %v2264 = vpack.c.b16 %v2206, %v2204
        %v2265 = vpack.c.b16 %v2209, %v2207
        %v2266 = vpack.c.b16 %v2210, %v2208
        %v2267 = vpack.c.b16 %v2213, %v2211
        %v2268 = vpack.c.b16 %v2214, %v2212
        %v2269 = vpack.c.b16 %v2217, %v2215
        %v2270 = vpack.c.b16 %v2218, %v2216
        %v2271 = vpack.c.b16 %v2221, %v2219
        %v2272 = vpack.c.b16 %v2222, %v2220
        %v2273 = vpack.c.b16 %v2225, %v2223
        %v2274 = vpack.c.b16 %v2226, %v2224
        %v2275 = vpack.c.b16 %v2229, %v2227
        %v2276 = vpack.c.b16 %v2230, %v2228
        %v2277 = vpack.c.b16 %v2233, %v2231
        %v2278 = vpack.c.b16 %v2234, %v2232
        %v2279 = vpack.c.b16 %v2237, %v2235
        %v2280 = vpack.c.b16 %v2238, %v2236
        %v2281 = vpack.c.b16 %v2241, %v2239
        %v2282 = vpack.c.b16 %v2242, %v2240
        %v2283 = vpack.c.b16 %v2245, %v2243
        %v2284 = vpack.c.b16 %v2246, %v2244
        %v2285 = vpack.c.b16 %v2249, %v2247
        %v2286 = vpack.c.b16 %v2250, %v2248
        %v2287 = vpack.c.b16 %v2253, %v2251
        %v2288 = vpack.c.b16 %v2254, %v2252
        %v2289 = vpack.c.b16 %v2257, %v2255
        %v2290 = vpack.c.b16 %v2258, %v2256
        %2323 = vmatprep.subr.bf16.mxu0 %v2274
        %2324 = vmatpush1.bf16.msra.mxu0 %v2273
        %2325 = vmatprep.subr.bf16.mxu0 %v2272
        %2326 = vmatpush1.bf16.msra.mxu0 %v2271
        %2327 = vmatprep.subr.bf16.mxu0 %v2270
        %2328 = vmatpush1.bf16.msra.mxu0 %v2269
        %2329 = vmatprep.subr.bf16.mxu0 %v2268
        %2330 = vmatpush1.bf16.msra.mxu0 %v2267
        %2331 = vmatprep.subr.bf16.mxu0 %v2266
        %2332 = vmatpush1.bf16.msra.mxu0 %v2265
        %2333 = vmatprep.subr.bf16.mxu0 %v2264
        %2334 = vmatpush1.bf16.msra.mxu0 %v2263
        %2335 = vmatprep.subr.bf16.mxu0 %v2262
        %2336 = vmatpush1.bf16.msra.mxu0 %v2261
        %2337 = vmatprep.subr.bf16.mxu0 %v2260
        %2338 = vmatpush1.bf16.msra.mxu0 %v2259
        %2339 = vmatprep.subr.bf16.mxu0 %v2290
        %2340 = vmatpush2.bf16.msra.mxu0 %v2289
        %2341 = vmatprep.subr.bf16.mxu0 %v2288
        %2342 = vmatpush2.bf16.msra.mxu0 %v2287
        %2343 = vmatprep.subr.bf16.mxu0 %v2286
        %2344 = vmatpush2.bf16.msra.mxu0 %v2285
        %2345 = vmatprep.subr.bf16.mxu0 %v2284
        %2346 = vmatpush2.bf16.msra.mxu0 %v2283
        %2347 = vmatprep.subr.bf16.mxu0 %v2282
        %2348 = vmatpush2.bf16.msra.mxu0 %v2281
        %2349 = vmatprep.subr.bf16.mxu0 %v2280
        %2350 = vmatpush2.bf16.msra.mxu0 %v2279
        %2351 = vmatprep.subr.bf16.mxu0 %v2278
        %2352 = vmatpush2.bf16.msra.mxu0 %v2277
        %2353 = vmatprep.subr.bf16.mxu0 %v2276
        %2354 = vmatpush2.bf16.msra.mxu0 %v2275
        %2355 = vmatprep.mubr.bf16.mxu0 %v2088
        %2356 = vmatmul.mubr.bf16.gmra.mxu0 %v2087
        %v2357 = vpop.f32.mrf.mxu0
        %v2358 = vadd.f32 %v2156, %v2357
        %v2359 = vpop.f32.mrf.mxu0
        %v2360 = vadd.f32 %v2160, %v2359
        %v2361 = vpop.f32.mrf.mxu0
        %v2362 = vadd.f32 %v2156, %v2361
        %v2363 = vpop.f32.mrf.mxu0
        %v2364 = vadd.f32 %v2160, %v2363
        %2365 = vmatprep.mubr.bf16.mxu0 %v2090
        %2366 = vmatmul.mubr.bf16.gmra.mxu0 %v2089
        %v2367 = vpop.f32.mrf.mxu0
        %v2368 = vadd.f32 %v2156, %v2367
        %v2369 = vpop.f32.mrf.mxu0
        %v2370 = vadd.f32 %v2160, %v2369
        %v2371 = vpop.f32.mrf.mxu0
        %v2372 = vadd.f32 %v2156, %v2371
        %v2373 = vpop.f32.mrf.mxu0
        %v2374 = vadd.f32 %v2160, %v2373
        %2375 = vmatprep.mubr.bf16.mxu0 %v2092
        %2376 = vmatmul.mubr.bf16.gmra.mxu0 %v2091
        %v2377 = vpop.f32.mrf.mxu0
        %v2378 = vadd.f32 %v2156, %v2377
        %v2379 = vpop.f32.mrf.mxu0
        %v2380 = vadd.f32 %v2160, %v2379
        %v2381 = vpop.f32.mrf.mxu0
        %v2382 = vadd.f32 %v2156, %v2381
        %v2383 = vpop.f32.mrf.mxu0
        %v2384 = vadd.f32 %v2160, %v2383
        %2385 = vmatprep.mubr.bf16.mxu0 %v2094
        %2386 = vmatmul.mubr.bf16.gmra.mxu0 %v2093
        %v2387 = vpop.f32.mrf.mxu0
        %v2388 = vadd.f32 %v2156, %v2387
        %v2389 = vpop.f32.mrf.mxu0
        %v2390 = vadd.f32 %v2160, %v2389
        %v2391 = vpop.f32.mrf.mxu0
        %v2392 = vadd.f32 %v2156, %v2391
        %v2393 = vpop.f32.mrf.mxu0
        %v2394 = vadd.f32 %v2160, %v2393
        %2395 = vmatprep.mubr.bf16.mxu0 %v2096
        %2396 = vmatmul.mubr.bf16.gmra.mxu0 %v2095
        %v2397 = vpop.f32.mrf.mxu0
        %v2398 = vadd.f32 %v2156, %v2397
        %v2399 = vpop.f32.mrf.mxu0
        %v2400 = vadd.f32 %v2160, %v2399
        %v2401 = vpop.f32.mrf.mxu0
        %v2402 = vadd.f32 %v2156, %v2401
        %v2403 = vpop.f32.mrf.mxu0
        %v2404 = vadd.f32 %v2160, %v2403
        %2405 = vmatprep.mubr.bf16.mxu0 %v2098
        %2406 = vmatmul.mubr.bf16.gmra.mxu0 %v2097
        %v2407 = vpop.f32.mrf.mxu0
        %v2408 = vadd.f32 %v2156, %v2407
        %v2409 = vpop.f32.mrf.mxu0
        %v2410 = vadd.f32 %v2160, %v2409
        %v2411 = vpop.f32.mrf.mxu0
        %v2412 = vadd.f32 %v2156, %v2411
        %v2413 = vpop.f32.mrf.mxu0
        %v2414 = vadd.f32 %v2160, %v2413
        %2415 = vmatprep.mubr.bf16.mxu0 %v2100
        %2416 = vmatmul.mubr.bf16.gmra.mxu0 %v2099
        %v2417 = vpop.f32.mrf.mxu0
        %v2418 = vadd.f32 %v2156, %v2417
        %v2419 = vpop.f32.mrf.mxu0
        %v2420 = vadd.f32 %v2160, %v2419
        %v2421 = vpop.f32.mrf.mxu0
        %v2422 = vadd.f32 %v2156, %v2421
        %v2423 = vpop.f32.mrf.mxu0
        %v2424 = vadd.f32 %v2160, %v2423
        %2425 = vmatprep.mubr.bf16.mxu0 %v2102
        %2426 = vmatmul.mubr.bf16.gmra.mxu0 %v2101
        %v2427 = vpop.f32.mrf.mxu0
        %v2428 = vadd.f32 %v2156, %v2427
        %v2429 = vpop.f32.mrf.mxu0
        %v2430 = vadd.f32 %v2160, %v2429
        %v2431 = vpop.f32.mrf.mxu0
        %v2432 = vadd.f32 %v2156, %v2431
        %v2433 = vpop.f32.mrf.mxu0
        %v2434 = vadd.f32 %v2160, %v2433
        %2435 = vmatprep.mubr.bf16.mxu0 %v2104
        %2436 = vmatmul.mubr.bf16.gmra.mxu0 %v2103
        %v2437 = vpop.f32.mrf.mxu0
        %v2438 = vadd.f32 %v2156, %v2437
        %v2439 = vpop.f32.mrf.mxu0
        %v2440 = vadd.f32 %v2160, %v2439
        %v2441 = vpop.f32.mrf.mxu0
        %v2442 = vadd.f32 %v2156, %v2441
        %v2443 = vpop.f32.mrf.mxu0
        %v2444 = vadd.f32 %v2160, %v2443
        %2445 = vmatprep.mubr.bf16.mxu0 %v2106
        %2446 = vmatmul.mubr.bf16.gmra.mxu0 %v2105
        %v2447 = vpop.f32.mrf.mxu0
        %v2448 = vadd.f32 %v2156, %v2447
        %v2449 = vpop.f32.mrf.mxu0
        %v2450 = vadd.f32 %v2160, %v2449
        %v2451 = vpop.f32.mrf.mxu0
        %v2452 = vadd.f32 %v2156, %v2451
        %v2453 = vpop.f32.mrf.mxu0
        %v2454 = vadd.f32 %v2160, %v2453
        %2455 = vmatprep.mubr.bf16.mxu0 %v2108
        %2456 = vmatmul.mubr.bf16.gmra.mxu0 %v2107
        %v2457 = vpop.f32.mrf.mxu0
        %v2458 = vadd.f32 %v2156, %v2457
        %v2459 = vpop.f32.mrf.mxu0
        %v2460 = vadd.f32 %v2160, %v2459
        %v2461 = vpop.f32.mrf.mxu0
        %v2462 = vadd.f32 %v2156, %v2461
        %v2463 = vpop.f32.mrf.mxu0
        %v2464 = vadd.f32 %v2160, %v2463
        %2465 = vmatprep.mubr.bf16.mxu0 %v2110
        %2466 = vmatmul.mubr.bf16.gmra.mxu0 %v2109
        %v2467 = vpop.f32.mrf.mxu0
        %v2468 = vadd.f32 %v2156, %v2467
        %v2469 = vpop.f32.mrf.mxu0
        %v2470 = vadd.f32 %v2160, %v2469
        %v2471 = vpop.f32.mrf.mxu0
        %v2472 = vadd.f32 %v2156, %v2471
        %v2473 = vpop.f32.mrf.mxu0
        %v2474 = vadd.f32 %v2160, %v2473
        %2475 = vmatprep.mubr.bf16.mxu0 %v2112
        %2476 = vmatmul.mubr.bf16.gmra.mxu0 %v2111
        %v2477 = vpop.f32.mrf.mxu0
        %v2478 = vadd.f32 %v2156, %v2477
        %v2479 = vpop.f32.mrf.mxu0
        %v2480 = vadd.f32 %v2160, %v2479
        %v2481 = vpop.f32.mrf.mxu0
        %v2482 = vadd.f32 %v2156, %v2481
        %v2483 = vpop.f32.mrf.mxu0
        %v2484 = vadd.f32 %v2160, %v2483
        %2485 = vmatprep.mubr.bf16.mxu0 %v2114
        %2486 = vmatmul.mubr.bf16.gmra.mxu0 %v2113
        %v2487 = vpop.f32.mrf.mxu0
        %v2488 = vadd.f32 %v2156, %v2487
        %v2489 = vpop.f32.mrf.mxu0
        %v2490 = vadd.f32 %v2160, %v2489
        %v2491 = vpop.f32.mrf.mxu0
        %v2492 = vadd.f32 %v2156, %v2491
        %v2493 = vpop.f32.mrf.mxu0
        %v2494 = vadd.f32 %v2160, %v2493
        %2495 = vmatprep.mubr.bf16.mxu0 %v2116
        %2496 = vmatmul.mubr.bf16.gmra.mxu0 %v2115
        %v2497 = vpop.f32.mrf.mxu0
        %v2498 = vadd.f32 %v2156, %v2497
        %v2499 = vpop.f32.mrf.mxu0
        %v2500 = vadd.f32 %v2160, %v2499
        %v2501 = vpop.f32.mrf.mxu0
        %v2502 = vadd.f32 %v2156, %v2501
        %v2503 = vpop.f32.mrf.mxu0
        %v2504 = vadd.f32 %v2160, %v2503
        %2505 = vmatprep.mubr.bf16.mxu0 %v2118
        %2506 = vmatmul.mubr.bf16.gmra.mxu0 %v2117
        %v2507 = vpop.f32.mrf.mxu0
        %v2508 = vadd.f32 %v2156, %v2507
        %v2509 = vpop.f32.mrf.mxu0
        %v2510 = vadd.f32 %v2160, %v2509
        %v2511 = vpop.f32.mrf.mxu0
        %v2512 = vadd.f32 %v2156, %v2511
        %v2513 = vpop.f32.mrf.mxu0
        %v2514 = vadd.f32 %v2160, %v2513
        %2515 = vdwg.mxu0
        %v2516 = vmul.f32 %v2358, 0.5
        %v2517 = vmul.f32 %v2360, 0.5
        %v2518 = vmul.f32 %v2362, 0.5
        %v2519 = vmul.f32 %v2364, 0.5
        %v2520 = vmul.f32 %v2368, 0.5
        %v2521 = vmul.f32 %v2370, 0.5
        %v2522 = vmul.f32 %v2372, 0.5
        %v2523 = vmul.f32 %v2374, 0.5
        %v2524 = vmul.f32 %v2378, 0.5
        %v2525 = vmul.f32 %v2380, 0.5
        %v2526 = vmul.f32 %v2382, 0.5
        %v2527 = vmul.f32 %v2384, 0.5
        %v2528 = vmul.f32 %v2388, 0.5
        %v2529 = vmul.f32 %v2390, 0.5
        %v2530 = vmul.f32 %v2392, 0.5
        %v2531 = vmul.f32 %v2394, 0.5
        %v2532 = vmul.f32 %v2398, 0.5
        %v2533 = vmul.f32 %v2400, 0.5
        %v2534 = vmul.f32 %v2402, 0.5
        %v2535 = vmul.f32 %v2404, 0.5
        %v2536 = vmul.f32 %v2408, 0.5
        %v2537 = vmul.f32 %v2410, 0.5
        %v2538 = vmul.f32 %v2412, 0.5
        %v2539 = vmul.f32 %v2414, 0.5
        %v2540 = vmul.f32 %v2418, 0.5
        %v2541 = vmul.f32 %v2420, 0.5
        %v2542 = vmul.f32 %v2422, 0.5
        %v2543 = vmul.f32 %v2424, 0.5
        %v2544 = vmul.f32 %v2428, 0.5
        %v2545 = vmul.f32 %v2430, 0.5
        %v2546 = vmul.f32 %v2432, 0.5
        %v2547 = vmul.f32 %v2434, 0.5
        %v2548 = vmul.f32 %v2438, 0.5
        %v2549 = vmul.f32 %v2440, 0.5
        %v2550 = vmul.f32 %v2442, 0.5
        %v2551 = vmul.f32 %v2444, 0.5
        %v2552 = vmul.f32 %v2448, 0.5
        %v2553 = vmul.f32 %v2450, 0.5
        %v2554 = vmul.f32 %v2452, 0.5
        %v2555 = vmul.f32 %v2454, 0.5
        %v2556 = vmul.f32 %v2458, 0.5
        %v2557 = vmul.f32 %v2460, 0.5
        %v2558 = vmul.f32 %v2462, 0.5
        %v2559 = vmul.f32 %v2464, 0.5
        %v2560 = vmul.f32 %v2468, 0.5
        %v2561 = vmul.f32 %v2470, 0.5
        %v2562 = vmul.f32 %v2472, 0.5
        %v2563 = vmul.f32 %v2474, 0.5
        %v2564 = vmul.f32 %v2478, 0.5
        %v2565 = vmul.f32 %v2480, 0.5
        %v2566 = vmul.f32 %v2482, 0.5
        %v2567 = vmul.f32 %v2484, 0.5
        %v2568 = vmul.f32 %v2488, 0.5
        %v2569 = vmul.f32 %v2490, 0.5
        %v2570 = vmul.f32 %v2492, 0.5
        %v2571 = vmul.f32 %v2494, 0.5
        %v2572 = vmul.f32 %v2498, 0.5
        %v2573 = vmul.f32 %v2500, 0.5
        %v2574 = vmul.f32 %v2502, 0.5
        %v2575 = vmul.f32 %v2504, 0.5
        %v2576 = vmul.f32 %v2508, 0.5
        %v2577 = vmul.f32 %v2510, 0.5
        %v2578 = vmul.f32 %v2512, 0.5
        %v2579 = vmul.f32 %v2514, 0.5
        %v2580 = vmul.f32 %v2358, 0.70710677
        %v2581 = vmul.f32 %v2360, 0.70710677
        %v2582 = vmul.f32 %v2362, 0.70710677
        %v2583 = vmul.f32 %v2364, 0.70710677
        %v2584 = vmul.f32 %v2368, 0.70710677
        %v2585 = vmul.f32 %v2370, 0.70710677
        %v2586 = vmul.f32 %v2372, 0.70710677
        %v2587 = vmul.f32 %v2374, 0.70710677
        %v2588 = vmul.f32 %v2378, 0.70710677
        %v2589 = vmul.f32 %v2380, 0.70710677
        %v2590 = vmul.f32 %v2382, 0.70710677
        %v2591 = vmul.f32 %v2384, 0.70710677
        %v2592 = vmul.f32 %v2388, 0.70710677
        %v2593 = vmul.f32 %v2390, 0.70710677
        %v2594 = vmul.f32 %v2392, 0.70710677
        %v2595 = vmul.f32 %v2394, 0.70710677
        %v2596 = vmul.f32 %v2398, 0.70710677
        %v2597 = vmul.f32 %v2400, 0.70710677
        %v2598 = vmul.f32 %v2402, 0.70710677
        %v2599 = vmul.f32 %v2404, 0.70710677
        %v2600 = vmul.f32 %v2408, 0.70710677
        %v2601 = vmul.f32 %v2410, 0.70710677
        %v2602 = vmul.f32 %v2412, 0.70710677
        %v2603 = vmul.f32 %v2414, 0.70710677
        %v2604 = vmul.f32 %v2418, 0.70710677
        %v2605 = vmul.f32 %v2420, 0.70710677
        %v2606 = vmul.f32 %v2422, 0.70710677
        %v2607 = vmul.f32 %v2424, 0.70710677
        %v2608 = vmul.f32 %v2428, 0.70710677
        %v2609 = vmul.f32 %v2430, 0.70710677
        %v2610 = vmul.f32 %v2432, 0.70710677
        %v2611 = vmul.f32 %v2434, 0.70710677
        %v2612 = vmul.f32 %v2438, 0.70710677
        %v2613 = vmul.f32 %v2440, 0.70710677
        %v2614 = vmul.f32 %v2442, 0.70710677
        %v2615 = vmul.f32 %v2444, 0.70710677
        %v2616 = vmul.f32 %v2448, 0.70710677
        %v2617 = vmul.f32 %v2450, 0.70710677
        %v2618 = vmul.f32 %v2452, 0.70710677
        %v2619 = vmul.f32 %v2454, 0.70710677
        %v2620 = vmul.f32 %v2458, 0.70710677
        %v2621 = vmul.f32 %v2460, 0.70710677
        %v2622 = vmul.f32 %v2462, 0.70710677
        %v2623 = vmul.f32 %v2464, 0.70710677
        %v2624 = vmul.f32 %v2468, 0.70710677
        %v2625 = vmul.f32 %v2470, 0.70710677
        %v2626 = vmul.f32 %v2472, 0.70710677
        %v2627 = vmul.f32 %v2474, 0.70710677
        %v2628 = vmul.f32 %v2478, 0.70710677
        %v2629 = vmul.f32 %v2480, 0.70710677
        %v2630 = vmul.f32 %v2482, 0.70710677
        %v2631 = vmul.f32 %v2484, 0.70710677
        %v2632 = vmul.f32 %v2488, 0.70710677
        %v2633 = vmul.f32 %v2490, 0.70710677
        %v2634 = vmul.f32 %v2492, 0.70710677
        %v2635 = vmul.f32 %v2494, 0.70710677
        %v2636 = vmul.f32 %v2498, 0.70710677
        %v2637 = vmul.f32 %v2500, 0.70710677
        %v2638 = vmul.f32 %v2502, 0.70710677
        %v2639 = vmul.f32 %v2504, 0.70710677
        %v2640 = vmul.f32 %v2508, 0.70710677
        %v2641 = vmul.f32 %v2510, 0.70710677
        %v2642 = vmul.f32 %v2512, 0.70710677
        %v2643 = vmul.f32 %v2514, 0.70710677
        %v2644 = verf.f32.pop %v2580
        %v2645 = verf.f32.pop %v2581
        %v2646 = verf.f32.pop %v2582
        %v2647 = verf.f32.pop %v2583
        %v2648 = verf.f32.pop %v2584
        %v2649 = verf.f32.pop %v2585
        %v2650 = verf.f32.pop %v2586
        %v2651 = verf.f32.pop %v2587
        %v2652 = verf.f32.pop %v2588
        %v2653 = verf.f32.pop %v2589
        %v2654 = verf.f32.pop %v2590
        %v2655 = verf.f32.pop %v2591
        %v2656 = verf.f32.pop %v2592
        %v2657 = verf.f32.pop %v2593
        %v2658 = verf.f32.pop %v2594
        %v2659 = verf.f32.pop %v2595
        %v2660 = verf.f32.pop %v2596
        %v2661 = verf.f32.pop %v2597
        %v2662 = verf.f32.pop %v2598
        %v2663 = verf.f32.pop %v2599
        %v2664 = verf.f32.pop %v2600
        %v2665 = verf.f32.pop %v2601
        %v2666 = verf.f32.pop %v2602
        %v2667 = verf.f32.pop %v2603
        %v2668 = verf.f32.pop %v2604
        %v2669 = verf.f32.pop %v2605
        %v2670 = verf.f32.pop %v2606
        %v2671 = verf.f32.pop %v2607
        %v2672 = verf.f32.pop %v2608
        %v2673 = verf.f32.pop %v2609
        %v2674 = verf.f32.pop %v2610
        %v2675 = verf.f32.pop %v2611
        %v2676 = verf.f32.pop %v2612
        %v2677 = verf.f32.pop %v2613
        %v2678 = verf.f32.pop %v2614
        %v2679 = verf.f32.pop %v2615
        %v2680 = verf.f32.pop %v2616
        %v2681 = verf.f32.pop %v2617
        %v2682 = verf.f32.pop %v2618
        %v2683 = verf.f32.pop %v2619
        %v2684 = verf.f32.pop %v2620
        %v2685 = verf.f32.pop %v2621
        %v2686 = verf.f32.pop %v2622
        %v2687 = verf.f32.pop %v2623
        %v2688 = verf.f32.pop %v2624
        %v2689 = verf.f32.pop %v2625
        %v2690 = verf.f32.pop %v2626
        %v2691 = verf.f32.pop %v2627
        %v2692 = verf.f32.pop %v2628
        %v2693 = verf.f32.pop %v2629
        %v2694 = verf.f32.pop %v2630
        %v2695 = verf.f32.pop %v2631
        %v2696 = verf.f32.pop %v2632
        %v2697 = verf.f32.pop %v2633
        %v2698 = verf.f32.pop %v2634
        %v2699 = verf.f32.pop %v2635
        %v2700 = verf.f32.pop %v2636
        %v2701 = verf.f32.pop %v2637
        %v2702 = verf.f32.pop %v2638
        %v2703 = verf.f32.pop %v2639
        %v2704 = verf.f32.pop %v2640
        %v2705 = verf.f32.pop %v2641
        %v2706 = verf.f32.pop %v2642
        %v2707 = verf.f32.pop %v2643
        %v2708 = vadd.f32 %v2644, 1.0
        %v2709 = vadd.f32 %v2645, 1.0
        %v2710 = vadd.f32 %v2646, 1.0
        %v2711 = vadd.f32 %v2647, 1.0
        %v2712 = vadd.f32 %v2648, 1.0
        %v2713 = vadd.f32 %v2649, 1.0
        %v2714 = vadd.f32 %v2650, 1.0
        %v2715 = vadd.f32 %v2651, 1.0
        %v2716 = vadd.f32 %v2652, 1.0
        %v2717 = vadd.f32 %v2653, 1.0
        %v2718 = vadd.f32 %v2654, 1.0
        %v2719 = vadd.f32 %v2655, 1.0
        %v2720 = vadd.f32 %v2656, 1.0
        %v2721 = vadd.f32 %v2657, 1.0
        %v2722 = vadd.f32 %v2658, 1.0
        %v2723 = vadd.f32 %v2659, 1.0
        %v2724 = vadd.f32 %v2660, 1.0
        %v2725 = vadd.f32 %v2661, 1.0
        %v2726 = vadd.f32 %v2662, 1.0
        %v2727 = vadd.f32 %v2663, 1.0
        %v2728 = vadd.f32 %v2664, 1.0
        %v2729 = vadd.f32 %v2665, 1.0
        %v2730 = vadd.f32 %v2666, 1.0
        %v2731 = vadd.f32 %v2667, 1.0
        %v2732 = vadd.f32 %v2668, 1.0
        %v2733 = vadd.f32 %v2669, 1.0
        %v2734 = vadd.f32 %v2670, 1.0
        %v2735 = vadd.f32 %v2671, 1.0
        %v2736 = vadd.f32 %v2672, 1.0
        %v2737 = vadd.f32 %v2673, 1.0
        %v2738 = vadd.f32 %v2674, 1.0
        %v2739 = vadd.f32 %v2675, 1.0
        %v2740 = vadd.f32 %v2676, 1.0
        %v2741 = vadd.f32 %v2677, 1.0
        %v2742 = vadd.f32 %v2678, 1.0
        %v2743 = vadd.f32 %v2679, 1.0
        %v2744 = vadd.f32 %v2680, 1.0
        %v2745 = vadd.f32 %v2681, 1.0
        %v2746 = vadd.f32 %v2682, 1.0
        %v2747 = vadd.f32 %v2683, 1.0
        %v2748 = vadd.f32 %v2684, 1.0
        %v2749 = vadd.f32 %v2685, 1.0
        %v2750 = vadd.f32 %v2686, 1.0
        %v2751 = vadd.f32 %v2687, 1.0
        %v2752 = vadd.f32 %v2688, 1.0
        %v2753 = vadd.f32 %v2689, 1.0
        %v2754 = vadd.f32 %v2690, 1.0
        %v2755 = vadd.f32 %v2691, 1.0
        %v2756 = vadd.f32 %v2692, 1.0
        %v2757 = vadd.f32 %v2693, 1.0
        %v2758 = vadd.f32 %v2694, 1.0
        %v2759 = vadd.f32 %v2695, 1.0
        %v2760 = vadd.f32 %v2696, 1.0
        %v2761 = vadd.f32 %v2697, 1.0
        %v2762 = vadd.f32 %v2698, 1.0
        %v2763 = vadd.f32 %v2699, 1.0
        %v2764 = vadd.f32 %v2700, 1.0
        %v2765 = vadd.f32 %v2701, 1.0
        %v2766 = vadd.f32 %v2702, 1.0
        %v2767 = vadd.f32 %v2703, 1.0
        %v2768 = vadd.f32 %v2704, 1.0
        %v2769 = vadd.f32 %v2705, 1.0
        %v2770 = vadd.f32 %v2706, 1.0
        %v2771 = vadd.f32 %v2707, 1.0
        %v2772 = vmul.f32 %v2516, %v2708
        %v2773 = vmul.f32 %v2517, %v2709
        %v2774 = vmul.f32 %v2518, %v2710
        %v2775 = vmul.f32 %v2519, %v2711
        %v2776 = vmul.f32 %v2520, %v2712
        %v2777 = vmul.f32 %v2521, %v2713
        %v2778 = vmul.f32 %v2522, %v2714
        %v2779 = vmul.f32 %v2523, %v2715
        %v2780 = vmul.f32 %v2524, %v2716
        %v2781 = vmul.f32 %v2525, %v2717
        %v2782 = vmul.f32 %v2526, %v2718
        %v2783 = vmul.f32 %v2527, %v2719
        %v2784 = vmul.f32 %v2528, %v2720
        %v2785 = vmul.f32 %v2529, %v2721
        %v2786 = vmul.f32 %v2530, %v2722
        %v2787 = vmul.f32 %v2531, %v2723
        %v2788 = vmul.f32 %v2532, %v2724
        %v2789 = vmul.f32 %v2533, %v2725
        %v2790 = vmul.f32 %v2534, %v2726
        %v2791 = vmul.f32 %v2535, %v2727
        %v2792 = vmul.f32 %v2536, %v2728
        %v2793 = vmul.f32 %v2537, %v2729
        %v2794 = vmul.f32 %v2538, %v2730
        %v2795 = vmul.f32 %v2539, %v2731
        %v2796 = vmul.f32 %v2540, %v2732
        %v2797 = vmul.f32 %v2541, %v2733
        %v2798 = vmul.f32 %v2542, %v2734
        %v2799 = vmul.f32 %v2543, %v2735
        %v2800 = vmul.f32 %v2544, %v2736
        %v2801 = vmul.f32 %v2545, %v2737
        %v2802 = vmul.f32 %v2546, %v2738
        %v2803 = vmul.f32 %v2547, %v2739
        %v2804 = vmul.f32 %v2548, %v2740
        %v2805 = vmul.f32 %v2549, %v2741
        %v2806 = vmul.f32 %v2550, %v2742
        %v2807 = vmul.f32 %v2551, %v2743
        %v2808 = vmul.f32 %v2552, %v2744
        %v2809 = vmul.f32 %v2553, %v2745
        %v2810 = vmul.f32 %v2554, %v2746
        %v2811 = vmul.f32 %v2555, %v2747
        %v2812 = vmul.f32 %v2556, %v2748
        %v2813 = vmul.f32 %v2557, %v2749
        %v2814 = vmul.f32 %v2558, %v2750
        %v2815 = vmul.f32 %v2559, %v2751
        %v2816 = vmul.f32 %v2560, %v2752
        %v2817 = vmul.f32 %v2561, %v2753
        %v2818 = vmul.f32 %v2562, %v2754
        %v2819 = vmul.f32 %v2563, %v2755
        %v2820 = vmul.f32 %v2564, %v2756
        %v2821 = vmul.f32 %v2565, %v2757
        %v2822 = vmul.f32 %v2566, %v2758
        %v2823 = vmul.f32 %v2567, %v2759
        %v2824 = vmul.f32 %v2568, %v2760
        %v2825 = vmul.f32 %v2569, %v2761
        %v2826 = vmul.f32 %v2570, %v2762
        %v2827 = vmul.f32 %v2571, %v2763
        %v2828 = vmul.f32 %v2572, %v2764
        %v2829 = vmul.f32 %v2573, %v2765
        %v2830 = vmul.f32 %v2574, %v2766
        %v2831 = vmul.f32 %v2575, %v2767
        %v2832 = vmul.f32 %v2576, %v2768
        %v2833 = vmul.f32 %v2577, %v2769
        %v2834 = vmul.f32 %v2578, %v2770
        %v2835 = vmul.f32 %v2579, %v2771
        %v2836 = vpack.c.bf16 %v2774, %v2772
        %v2837 = vpack.c.bf16 %v2775, %v2773
        %v2838 = vpack.c.bf16 %v2778, %v2776
        %v2839 = vpack.c.bf16 %v2779, %v2777
        %v2840 = vpack.c.bf16 %v2782, %v2780
        %v2841 = vpack.c.bf16 %v2783, %v2781
        %v2842 = vpack.c.bf16 %v2786, %v2784
        %v2843 = vpack.c.bf16 %v2787, %v2785
        %v2844 = vpack.c.bf16 %v2790, %v2788
        %v2845 = vpack.c.bf16 %v2791, %v2789
        %v2846 = vpack.c.bf16 %v2794, %v2792
        %v2847 = vpack.c.bf16 %v2795, %v2793
        %v2848 = vpack.c.bf16 %v2798, %v2796
        %v2849 = vpack.c.bf16 %v2799, %v2797
        %v2850 = vpack.c.bf16 %v2802, %v2800
        %v2851 = vpack.c.bf16 %v2803, %v2801
        %v2852 = vpack.c.bf16 %v2806, %v2804
        %v2853 = vpack.c.bf16 %v2807, %v2805
        %v2854 = vpack.c.bf16 %v2810, %v2808
        %v2855 = vpack.c.bf16 %v2811, %v2809
        %v2856 = vpack.c.bf16 %v2814, %v2812
        %v2857 = vpack.c.bf16 %v2815, %v2813
        %v2858 = vpack.c.bf16 %v2818, %v2816
        %v2859 = vpack.c.bf16 %v2819, %v2817
        %v2860 = vpack.c.bf16 %v2822, %v2820
        %v2861 = vpack.c.bf16 %v2823, %v2821
        %v2862 = vpack.c.bf16 %v2826, %v2824
        %v2863 = vpack.c.bf16 %v2827, %v2825
        %v2864 = vpack.c.bf16 %v2830, %v2828
        %v2865 = vpack.c.bf16 %v2831, %v2829
        %v2866 = vpack.c.bf16 %v2834, %v2832
        %v2867 = vpack.c.bf16 %v2835, %v2833
        %v2868 = vld [vmem:[#allocation8] sm:$0xf]
        %v2869 = vld [vmem:[#allocation8 + $0x4] sm:$0xf]
        %v2870 = vld [vmem:[#allocation8 + $0x8] sm:$0xf]
        %v2871 = vld [vmem:[#allocation8 + $0xc] sm:$0xf]
        %v2872 = vld [vmem:[#allocation8 + $0x10] sm:$0xf]
        %v2873 = vld [vmem:[#allocation8 + $0x14] sm:$0xf]
        %v2874 = vld [vmem:[#allocation8 + $0x18] sm:$0xf]
        %v2875 = vld [vmem:[#allocation8 + $0x1c] sm:$0xf]
        %v2876 = vld [vmem:[#allocation8 + $0x20] sm:$0xf]
        %v2877 = vld [vmem:[#allocation8 + $0x24] sm:$0xf]
        %v2878 = vld [vmem:[#allocation8 + $0x28] sm:$0xf]
        %v2879 = vld [vmem:[#allocation8 + $0x2c] sm:$0xf]
        %v2880 = vld [vmem:[#allocation8 + $0x30] sm:$0xf]
        %v2881 = vld [vmem:[#allocation8 + $0x34] sm:$0xf]
        %v2882 = vld [vmem:[#allocation8 + $0x38] sm:$0xf]
        %v2883 = vld [vmem:[#allocation8 + $0x3c] sm:$0xf]
        %v2884 = vld [vmem:[#allocation8 + $0x40] sm:$0xf]
        %v2885 = vld [vmem:[#allocation8 + $0x44] sm:$0xf]
        %v2886 = vld [vmem:[#allocation8 + $0x48] sm:$0xf]
        %v2887 = vld [vmem:[#allocation8 + $0x4c] sm:$0xf]
        %v2888 = vld [vmem:[#allocation8 + $0x50] sm:$0xf]
        %v2889 = vld [vmem:[#allocation8 + $0x54] sm:$0xf]
        %v2890 = vld [vmem:[#allocation8 + $0x58] sm:$0xf]
        %v2891 = vld [vmem:[#allocation8 + $0x5c] sm:$0xf]
        %v2892 = vld [vmem:[#allocation8 + $0x60] sm:$0xf]
        %v2893 = vld [vmem:[#allocation8 + $0x64] sm:$0xf]
        %v2894 = vld [vmem:[#allocation8 + $0x68] sm:$0xf]
        %v2895 = vld [vmem:[#allocation8 + $0x6c] sm:$0xf]
        %v2896 = vld [vmem:[#allocation8 + $0x70] sm:$0xf]
        %v2897 = vld [vmem:[#allocation8 + $0x74] sm:$0xf]
        %v2898 = vld [vmem:[#allocation8 + $0x78] sm:$0xf]
        %v2899 = vld [vmem:[#allocation8 + $0x7c] sm:$0xf]
        %v2900 = vld [vmem:[%s10] sm:$0x1]
        %v2902 = vlaneseq
        %v2903 = vshrl.u32 %v2902, 7
        %v2904 = vsub.s32 0, %v2903
        %v2905 = vrot.slane %v2900, %v2904
        %v2939 = vunpack.c.l.b16 %v2868
        %v2940 = vunpack.c.l.b16 %v2869
        %v2941 = vunpack.c.l.b16 %v2870
        %v2942 = vunpack.c.l.b16 %v2871
        %v2943 = vunpack.c.l.b16 %v2872
        %v2944 = vunpack.c.l.b16 %v2873
        %v2945 = vunpack.c.l.b16 %v2874
        %v2946 = vunpack.c.l.b16 %v2875
        %v2947 = vunpack.c.l.b16 %v2876
        %v2948 = vunpack.c.l.b16 %v2877
        %v2949 = vunpack.c.l.b16 %v2878
        %v2950 = vunpack.c.l.b16 %v2879
        %v2951 = vunpack.c.l.b16 %v2880
        %v2952 = vunpack.c.l.b16 %v2881
        %v2953 = vunpack.c.l.b16 %v2882
        %v2954 = vunpack.c.l.b16 %v2883
        %v2955 = vunpack.c.l.b16 %v2884
        %v2956 = vunpack.c.l.b16 %v2885
        %v2957 = vunpack.c.l.b16 %v2886
        %v2958 = vunpack.c.l.b16 %v2887
        %v2959 = vunpack.c.l.b16 %v2888
        %v2960 = vunpack.c.l.b16 %v2889
        %v2961 = vunpack.c.l.b16 %v2890
        %v2962 = vunpack.c.l.b16 %v2891
        %v2963 = vunpack.c.l.b16 %v2892
        %v2964 = vunpack.c.l.b16 %v2893
        %v2965 = vunpack.c.l.b16 %v2894
        %v2966 = vunpack.c.l.b16 %v2895
        %v2967 = vunpack.c.l.b16 %v2896
        %v2968 = vunpack.c.l.b16 %v2897
        %v2969 = vunpack.c.l.b16 %v2898
        %v2970 = vunpack.c.l.b16 %v2899
        %v2971 = vpack.c.b16 %v2940, %v2939
        %v2972 = vpack.c.b16 %v2942, %v2941
        %v2973 = vpack.c.b16 %v2944, %v2943
        %v2974 = vpack.c.b16 %v2946, %v2945
        %v2975 = vpack.c.b16 %v2948, %v2947
        %v2976 = vpack.c.b16 %v2950, %v2949
        %v2977 = vpack.c.b16 %v2952, %v2951
        %v2978 = vpack.c.b16 %v2954, %v2953
        %v2979 = vpack.c.b16 %v2956, %v2955
        %v2980 = vpack.c.b16 %v2958, %v2957
        %v2981 = vpack.c.b16 %v2960, %v2959
        %v2982 = vpack.c.b16 %v2962, %v2961
        %v2983 = vpack.c.b16 %v2964, %v2963
        %v2984 = vpack.c.b16 %v2966, %v2965
        %v2985 = vpack.c.b16 %v2968, %v2967
        %v2986 = vpack.c.b16 %v2970, %v2969
        %3003 = vmatprep.subr.bf16.mxu0 0
        %3004 = vmatpush1.bf16.msra.mxu0 %v2978
        %3005 = vmatprep.subr.bf16.mxu0 0
        %3006 = vmatpush1.bf16.msra.mxu0 %v2977
        %3007 = vmatprep.subr.bf16.mxu0 0
        %3008 = vmatpush1.bf16.msra.mxu0 %v2976
        %3009 = vmatprep.subr.bf16.mxu0 0
        %3010 = vmatpush1.bf16.msra.mxu0 %v2975
        %3011 = vmatprep.subr.bf16.mxu0 0
        %3012 = vmatpush1.bf16.msra.mxu0 %v2974
        %3013 = vmatprep.subr.bf16.mxu0 0
        %3014 = vmatpush1.bf16.msra.mxu0 %v2973
        %3015 = vmatprep.subr.bf16.mxu0 0
        %3016 = vmatpush1.bf16.msra.mxu0 %v2972
        %3017 = vmatprep.subr.bf16.mxu0 0
        %3018 = vmatpush1.bf16.msra.mxu0 %v2971
        %3019 = vmatprep.subr.bf16.mxu0 0
        %3020 = vmatpush2.bf16.msra.mxu0 %v2986
        %3021 = vmatprep.subr.bf16.mxu0 0
        %3022 = vmatpush2.bf16.msra.mxu0 %v2985
        %3023 = vmatprep.subr.bf16.mxu0 0
        %3024 = vmatpush2.bf16.msra.mxu0 %v2984
        %3025 = vmatprep.subr.bf16.mxu0 0
        %3026 = vmatpush2.bf16.msra.mxu0 %v2983
        %3027 = vmatprep.subr.bf16.mxu0 0
        %3028 = vmatpush2.bf16.msra.mxu0 %v2982
        %3029 = vmatprep.subr.bf16.mxu0 0
        %3030 = vmatpush2.bf16.msra.mxu0 %v2981
        %3031 = vmatprep.subr.bf16.mxu0 0
        %3032 = vmatpush2.bf16.msra.mxu0 %v2980
        %3033 = vmatprep.subr.bf16.mxu0 0
        %3034 = vmatpush2.bf16.msra.mxu0 %v2979
        %3035 = vmatprep.mubr.bf16.mxu0 %v2837
        %3036 = vmatmul.mubr.bf16.gmra.mxu0 %v2836
        %v3037 = vpop.f32.mrf.mxu0
        %v3038 = vadd.f32 %v2905, %v3037
        %v3039 = vpop.f32.mrf.mxu0
        %v3040 = vpop.f32.mrf.mxu0
        %v3041 = vadd.f32 %v2905, %v3040
        %v3042 = vpop.f32.mrf.mxu0
        %3043 = vmatprep.mubr.bf16.mxu0 %v2839
        %3044 = vmatmul.mubr.bf16.gmra.mxu0 %v2838
        %v3045 = vpop.f32.mrf.mxu0
        %v3046 = vadd.f32 %v2905, %v3045
        %v3047 = vpop.f32.mrf.mxu0
        %v3048 = vpop.f32.mrf.mxu0
        %v3049 = vadd.f32 %v2905, %v3048
        %v3050 = vpop.f32.mrf.mxu0
        %3051 = vmatprep.mubr.bf16.mxu0 %v2841
        %3052 = vmatmul.mubr.bf16.gmra.mxu0 %v2840
        %v3053 = vpop.f32.mrf.mxu0
        %v3054 = vadd.f32 %v2905, %v3053
        %v3055 = vpop.f32.mrf.mxu0
        %v3056 = vpop.f32.mrf.mxu0
        %v3057 = vadd.f32 %v2905, %v3056
        %v3058 = vpop.f32.mrf.mxu0
        %3059 = vmatprep.mubr.bf16.mxu0 %v2843
        %3060 = vmatmul.mubr.bf16.gmra.mxu0 %v2842
        %v3061 = vpop.f32.mrf.mxu0
        %v3062 = vadd.f32 %v2905, %v3061
        %v3063 = vpop.f32.mrf.mxu0
        %v3064 = vpop.f32.mrf.mxu0
        %v3065 = vadd.f32 %v2905, %v3064
        %v3066 = vpop.f32.mrf.mxu0
        %3067 = vmatprep.mubr.bf16.mxu0 %v2845
        %3068 = vmatmul.mubr.bf16.gmra.mxu0 %v2844
        %v3069 = vpop.f32.mrf.mxu0
        %v3070 = vadd.f32 %v2905, %v3069
        %v3071 = vpop.f32.mrf.mxu0
        %v3072 = vpop.f32.mrf.mxu0
        %v3073 = vadd.f32 %v2905, %v3072
        %v3074 = vpop.f32.mrf.mxu0
        %3075 = vmatprep.mubr.bf16.mxu0 %v2847
        %3076 = vmatmul.mubr.bf16.gmra.mxu0 %v2846
        %v3077 = vpop.f32.mrf.mxu0
        %v3078 = vadd.f32 %v2905, %v3077
        %v3079 = vpop.f32.mrf.mxu0
        %v3080 = vpop.f32.mrf.mxu0
        %v3081 = vadd.f32 %v2905, %v3080
        %v3082 = vpop.f32.mrf.mxu0
        %3083 = vmatprep.mubr.bf16.mxu0 %v2849
        %3084 = vmatmul.mubr.bf16.gmra.mxu0 %v2848
        %v3085 = vpop.f32.mrf.mxu0
        %v3086 = vadd.f32 %v2905, %v3085
        %v3087 = vpop.f32.mrf.mxu0
        %v3088 = vpop.f32.mrf.mxu0
        %v3089 = vadd.f32 %v2905, %v3088
        %v3090 = vpop.f32.mrf.mxu0
        %3091 = vmatprep.mubr.bf16.mxu0 %v2851
        %3092 = vmatmul.mubr.bf16.gmra.mxu0 %v2850
        %v3093 = vpop.f32.mrf.mxu0
        %v3094 = vadd.f32 %v2905, %v3093
        %v3095 = vpop.f32.mrf.mxu0
        %v3096 = vpop.f32.mrf.mxu0
        %v3097 = vadd.f32 %v2905, %v3096
        %v3098 = vpop.f32.mrf.mxu0
        %3099 = vmatprep.mubr.bf16.mxu0 %v2853
        %3100 = vmatmul.mubr.bf16.gmra.mxu0 %v2852
        %v3101 = vpop.f32.mrf.mxu0
        %v3102 = vadd.f32 %v2905, %v3101
        %v3103 = vpop.f32.mrf.mxu0
        %v3104 = vpop.f32.mrf.mxu0
        %v3105 = vadd.f32 %v2905, %v3104
        %v3106 = vpop.f32.mrf.mxu0
        %3107 = vmatprep.mubr.bf16.mxu0 %v2855
        %3108 = vmatmul.mubr.bf16.gmra.mxu0 %v2854
        %v3109 = vpop.f32.mrf.mxu0
        %v3110 = vadd.f32 %v2905, %v3109
        %v3111 = vpop.f32.mrf.mxu0
        %v3112 = vpop.f32.mrf.mxu0
        %v3113 = vadd.f32 %v2905, %v3112
        %v3114 = vpop.f32.mrf.mxu0
        %3115 = vmatprep.mubr.bf16.mxu0 %v2857
        %3116 = vmatmul.mubr.bf16.gmra.mxu0 %v2856
        %v3117 = vpop.f32.mrf.mxu0
        %v3118 = vadd.f32 %v2905, %v3117
        %v3119 = vpop.f32.mrf.mxu0
        %v3120 = vpop.f32.mrf.mxu0
        %v3121 = vadd.f32 %v2905, %v3120
        %v3122 = vpop.f32.mrf.mxu0
        %3123 = vmatprep.mubr.bf16.mxu0 %v2859
        %3124 = vmatmul.mubr.bf16.gmra.mxu0 %v2858
        %v3125 = vpop.f32.mrf.mxu0
        %v3126 = vadd.f32 %v2905, %v3125
        %v3127 = vpop.f32.mrf.mxu0
        %v3128 = vpop.f32.mrf.mxu0
        %v3129 = vadd.f32 %v2905, %v3128
        %v3130 = vpop.f32.mrf.mxu0
        %3131 = vmatprep.mubr.bf16.mxu0 %v2861
        %3132 = vmatmul.mubr.bf16.gmra.mxu0 %v2860
        %v3133 = vpop.f32.mrf.mxu0
        %v3134 = vadd.f32 %v2905, %v3133
        %v3135 = vpop.f32.mrf.mxu0
        %v3136 = vpop.f32.mrf.mxu0
        %v3137 = vadd.f32 %v2905, %v3136
        %v3138 = vpop.f32.mrf.mxu0
        %3139 = vmatprep.mubr.bf16.mxu0 %v2863
        %3140 = vmatmul.mubr.bf16.gmra.mxu0 %v2862
        %v3141 = vpop.f32.mrf.mxu0
        %v3142 = vadd.f32 %v2905, %v3141
        %v3143 = vpop.f32.mrf.mxu0
        %v3144 = vpop.f32.mrf.mxu0
        %v3145 = vadd.f32 %v2905, %v3144
        %v3146 = vpop.f32.mrf.mxu0
        %3147 = vmatprep.mubr.bf16.mxu0 %v2865
        %3148 = vmatmul.mubr.bf16.gmra.mxu0 %v2864
        %v3149 = vpop.f32.mrf.mxu0
        %v3150 = vadd.f32 %v2905, %v3149
        %v3151 = vpop.f32.mrf.mxu0
        %v3152 = vpop.f32.mrf.mxu0
        %v3153 = vadd.f32 %v2905, %v3152
        %v3154 = vpop.f32.mrf.mxu0
        %3155 = vmatprep.mubr.bf16.mxu0 %v2867
        %3156 = vmatmul.mubr.bf16.gmra.mxu0 %v2866
        %v3157 = vpop.f32.mrf.mxu0
        %v3158 = vadd.f32 %v2905, %v3157
        %v3159 = vpop.f32.mrf.mxu0
        %v3160 = vpop.f32.mrf.mxu0
        %v3161 = vadd.f32 %v2905, %v3160
        %v3162 = vpop.f32.mrf.mxu0
        %3163 = vdwg.mxu0
        %3164 = vst [vmem:[%s455] sm:$0xff] %v3038
        %3165 = vst [vmem:[%s455 + $0x8] sm:$0xff] %v3041
        %3166 = vst [vmem:[%s455 + $0x10] sm:$0xff] %v3046
        %3167 = vst [vmem:[%s455 + $0x18] sm:$0xff] %v3049
        %3168 = vst [vmem:[%s455 + $0x20] sm:$0xff] %v3054
        %3169 = vst [vmem:[%s455 + $0x28] sm:$0xff] %v3057
        %3170 = vst [vmem:[%s455 + $0x30] sm:$0xff] %v3062
        %3171 = vst [vmem:[%s455 + $0x38] sm:$0xff] %v3065
        %3172 = vst [vmem:[%s455 + $0x40] sm:$0xff] %v3070
        %3173 = vst [vmem:[%s455 + $0x48] sm:$0xff] %v3073
        %3174 = vst [vmem:[%s455 + $0x50] sm:$0xff] %v3078
        %3175 = vst [vmem:[%s455 + $0x58] sm:$0xff] %v3081
        %3176 = vst [vmem:[%s455 + $0x60] sm:$0xff] %v3086
        %3177 = vst [vmem:[%s455 + $0x68] sm:$0xff] %v3089
        %3178 = vst [vmem:[%s455 + $0x70] sm:$0xff] %v3094
        %3179 = vst [vmem:[%s455 + $0x78] sm:$0xff] %v3097
        %3180 = vst [vmem:[%s455 + $0x80] sm:$0xff] %v3102
        %3181 = vst [vmem:[%s455 + $0x88] sm:$0xff] %v3105
        %3182 = vst [vmem:[%s455 + $0x90] sm:$0xff] %v3110
        %3183 = vst [vmem:[%s455 + $0x98] sm:$0xff] %v3113
        %3184 = vst [vmem:[%s455 + $0xa0] sm:$0xff] %v3118
        %3185 = vst [vmem:[%s455 + $0xa8] sm:$0xff] %v3121
        %3186 = vst [vmem:[%s455 + $0xb0] sm:$0xff] %v3126
        %3187 = vst [vmem:[%s455 + $0xb8] sm:$0xff] %v3129
        %3188 = vst [vmem:[%s455 + $0xc0] sm:$0xff] %v3134
        %3189 = vst [vmem:[%s455 + $0xc8] sm:$0xff] %v3137
        %3190 = vst [vmem:[%s455 + $0xd0] sm:$0xff] %v3142
        %3191 = vst [vmem:[%s455 + $0xd8] sm:$0xff] %v3145
        %3192 = vst [vmem:[%s455 + $0xe0] sm:$0xff] %v3150
        %3193 = vst [vmem:[%s455 + $0xe8] sm:$0xff] %v3153
        %3194 = vst [vmem:[%s455 + $0xf0] sm:$0xff] %v3158
        %3195 = vst [vmem:[%s455 + $0xf8] sm:$0xff] %v3161
        %s3196 = sand.u32 %s277, 1
        %s3197 = scalar_lea.sflag [#allocation4], %s3196
        %s3198 = sand.u32 %s277, 1
        %s3199 = smul.addr %s3198, 256
        %s3200 = scalar_lea.vmem [#allocation10], %s3199
        // Predicated region
        $region81: #{tpu_custom_call.1} parent=63 // pred_check
          %p3201 = pneg %p287
        $region82: #{tpu_custom_call.1} parent=63 // pred_check_branch
          %3203 = sbr.rel (%p3201) target = $region84
        $region83: #{tpu_custom_call.1} parent=63 // pred_region
          %s3204 = smul.u32 32, %s28
          %s3206 = ssub.s32 4096, 4096
          %3207 = vsyncadd %s3197, %s3206
          %s3208 = smul.addr %s3204, 128
          %s3209 = scalar_lea.hbm %s11, %s3208
          %s3210 = sshll.u32 %s3200, 4
          %s3211 = int_to_ptr.vmem [resolvable:$true] %s3210
          %3216 = dma.vmem_to_hbm [thread:$0]  %s3211, 4096, %s3209, %s3197, 128, 128, 8
        $region84: #{tpu_custom_call.1} parent=63 // pred_fallthru
          _
      $region64: #{tpu_custom_call.1} parent=5 // pred_fallthru
        _
      %p3217 = scmp.le.s32.totalorder 2, %s23
      // Predicated region
      $region85: #{tpu_custom_call.1} parent=5 // pred_check
        %p3218 = pneg %p3217
      $region86: #{tpu_custom_call.1} parent=5 // pred_check_branch
        %3220 = sbr.rel (%p3218) target = $region88
      $region87: #{tpu_custom_call.1} parent=5 // pred_region
        %s3221 = ssub.s32 %s23, 2
        // Predicated region
        $region89: #{tpu_custom_call.1} parent=87 // pred_check
          %p3222 = pneg %p293
        $region90: #{tpu_custom_call.1} parent=87 // pred_check_branch
          %3224 = sbr.rel (%p3222) target = $region92
        $region91: #{tpu_custom_call.1} parent=87 // pred_region
          %s3225 = sand.u32 %s278, 1
          %s3226 = scalar_lea.sflag [#allocation4], %s3225
          %s3227 = sand.u32 %s278, 1
          %s3228 = smul.addr %s3227, 256
          %s3229 = scalar_lea.vmem [#allocation10], %s3228
          %3230 = dma.done %s3226, 4096
        $region92: #{tpu_custom_call.1} parent=87 // pred_fallthru
          _
      $region88: #{tpu_custom_call.1} parent=5 // pred_fallthru
        _
    $region6: #{tpu_custom_call.1} parent=1 // loop_footer
      %s27 = sadd.s32 1, %s23
    $region7: #{tpu_custom_call.1} parent=1 // loop_footer_branch
      %22 = sbr.rel target = $region3
    $region8: #{tpu_custom_call.1} parent=1 // loop_exit
      _
    %3231 = vsyncpa [#allocation3], 1
    %s3232 = scalar_lea.sflag [#allocation3], 1
    %3233 = vsyncpa %s3232, 1
    %3234 = vsyncpa [#allocation6], 1
    %3235 = vsyncpa [#allocation9], 1
    %3236 = vsyncpa [#allocation4], 1
    %s3237 = scalar_lea.sflag [#allocation4], 1
    %3238 = vsyncpa %s3237, 1

</llo_original>
